<compile_context>
chip_gen: v7x
topology: tpu7x:2x2x1
jax: 0.10.0
libtpu: 0.0.40
codegen_flags: <defaults>
</compile_context>

<pallas_src>
import numpy as np
import jax
import jax.numpy as jnp
from jax.experimental import pallas as pl
from jax.experimental.pallas import tpu as pltpu


# ----------------------------------------------------------------------------
# Deterministic parameter init (mimics torch.nn.Conv2d defaults)
# ----------------------------------------------------------------------------
def _init_conv_params(key, cin, cout, k):
    """Returns PyTorch-layout (w[cout, cin, k, k], b[cout])."""
    wkey, bkey = jax.random.split(key)
    fan_in = cin * k * k
    bound = 1.0 / np.sqrt(fan_in)
    w = jax.random.uniform(wkey, (cout, cin, k, k), jnp.float32, -bound, bound)
    b = jax.random.uniform(bkey, (cout,), jnp.float32, -bound, bound)
    return w, b


# ----------------------------------------------------------------------------
# QPeriodicCNN in JAX/Pallas
# ----------------------------------------------------------------------------
class QPeriodicCNNPallas:
    def __init__(self, key, *, hidden_channels, potential, lattice_size,
                 kernel_size, num_inner_layers=None, _zero_final_weight=True):
        if kernel_size % 2 == 0:
            raise ValueError("kernel_size must be odd")
        out_channels = 1 if potential.startswith("ising") else 2
        if num_inner_layers is None:
            if (lattice_size - 1) % (kernel_size - 1) == 0 and kernel_size % 2 != 0:
                num_inner_layers = (lattice_size - 1) // (kernel_size - 1)
            else:
                num_inner_layers = 1 + (lattice_size - 1) // (kernel_size - 1)

        self.L = L = lattice_size
        self.k = k = kernel_size
        self.out_channels = out_channels
        self.C = C = max(hidden_channels, out_channels, 1)   # padded channel width
        self.LC = LC = L * C

        # (cin, cout, apply_relu) per layer
        self.layer_defs = [(1, hidden_channels, True)]
        self.layer_defs += [(hidden_channels, hidden_channels, True)] * num_inner_layers
        self.layer_defs += [(hidden_channels, out_channels, False)]
        self.n_layers = NL = len(self.layer_defs)
        self.relu_flags = tuple(r for (_, _, r) in self.layer_defs)

        keys = jax.random.split(key, NL)
        self.torch_params = []
        for (cin, cout, _), lk in zip(self.layer_defs, keys):
            self.torch_params.append(_init_conv_params(lk, cin, cout, k))
        if _zero_final_weight:
            # exactly like `self.final_layer.weight.data *= 0.0`
            w_last, b_last = self.torch_params[-1]
            self.torch_params[-1] = (w_last * 0.0, b_last)

        # --- fold circular padding + conv taps + channel mixing into matmul operands
        p = (k - 1) // 2

        # vertical (H) circular shift matrices (shared across layers / samples)
        S = np.zeros((k, L, L), np.float32)
        for dh in range(k):
            for h in range(L):
                S[dh, h, (h + dh - p) % L] = 1.0

        # per-layer banded matrices: horizontal wrap-shift + cin->cout weights,
        # laid out for the interleaved (w, c) lane axis; plus interleaved bias.
        M = np.zeros((NL, k, LC, LC), np.float32)
        Bv = np.zeros((NL, 1, LC), np.float32)
        for li, ((cin, cout, _), (w, b)) in enumerate(
                zip(self.layer_defs, self.torch_params)):
            w_np = np.asarray(w)           # (cout, cin, k, k)
            b_np = np.asarray(b)           # (cout,)
            for dh in range(k):
                for dw in range(k):
                    blk = w_np[:, :, dh, dw].T        # (cin, cout)
                    for wcol in range(L):
                        wsrc = (wcol + dw - p) % L
                        M[li, dh,
                          wsrc * C:wsrc * C + cin,
                          wcol * C:wcol * C + cout] += blk
            for wcol in range(L):
                Bv[li, 0, wcol * C:wcol * C + cout] = b_np

        self.S = jnp.asarray(S)                                  # (k, L, L)
        self.M = jnp.asarray(M.reshape(NL, k * LC, LC))          # (NL, k*L*C, L*C)
        self.bias = jnp.asarray(Bv)                              # (NL, 1, L*C)

        self._kernel = self._build_kernel()
        self._forward = jax.jit(self._forward_impl)

    # ------------------------------------------------------------------ kernel
    def _build_kernel(self):
        NL, k = self.n_layers, self.k
        relu = self.relu_flags

        def kernel(x_ref, s_ref, m_ref, b_ref, o_ref):
            # x_ref: (1, L, L*C)   s_ref: (k, L, L)
            # m_ref: (NL, k*L*C, L*C)   b_ref: (NL, 1, L*C)   o_ref: (1, L, L*C)
            x = x_ref[0]                                           # (L, L*C)
            for li in range(NL):
                # H-wrap shifts via small circulant matmuls; dh blocks concat on lanes
                xcat = jnp.concatenate(
                    [jnp.dot(s_ref[dh], x, preferred_element_type=jnp.float32)
                     for dh in range(k)],
                    axis=1)                                        # (L, k*L*C)
                # all k*k taps + W-wrap + cin->cout mixing in ONE matmul
                acc = jnp.dot(xcat, m_ref[li],
                              preferred_element_type=jnp.float32)  # (L, L*C)
                acc = acc + b_ref[li]                              # bias broadcast
                if relu[li]:
                    acc = jnp.maximum(acc, 0.0)
                x = acc
            o_ref[0] = x

        return kernel

    # ----------------------------------------------------------------- forward
    def _forward_impl(self, state):
        B = state.shape[0]
        L, C, k, NL, LC = self.L, self.C, self.k, self.n_layers, self.LC
        # pack: channel 0 of the interleaved (w, c) lane layout carries the state
        x0 = jnp.zeros((B, L, L, C), jnp.float32)
        x0 = x0.at[..., 0].set(state.astype(jnp.float32)).reshape(B, L, LC)

        y = pl.pallas_call(
            self._kernel,
            out_shape=jax.ShapeDtypeStruct((B, L, LC), jnp.float32),
            grid=(B,),
            in_specs=[
                pl.BlockSpec((1, L, LC), lambda b: (b, 0, 0)),       # per-sample x
                pl.BlockSpec((k, L, L), lambda b: (0, 0, 0)),        # H-shift mats
                pl.BlockSpec((NL, k * LC, LC), lambda b: (0, 0, 0)),  # folded weights
                pl.BlockSpec((NL, 1, LC), lambda b: (0, 0, 0)),       # biases
            ],
            out_specs=pl.BlockSpec((1, L, LC), lambda b: (b, 0, 0)),
            compiler_params=pltpu.CompilerParams(
                dimension_semantics=("parallel",)),
        )(x0, self.S, self.M, self.bias)

        y = y.reshape(B, L, L, C)[..., : self.out_channels]
        return jnp.transpose(y, (0, 3, 1, 2))                        # NCHW

    def forward(self, state):
        """state: (B, L, L) float32  ->  (B, out_channels, L, L)."""
        return self._forward(state)

    # -------------------------------------------------- pure-JAX reference path
    def forward_ref(self, state):
        p = (self.k - 1) // 2
        x = state[..., None].astype(jnp.float32)                    # NHWC, 1 ch
        for (cin, cout, relu), (w, b) in zip(self.layer_defs, self.torch_params):
            L = x.shape[1]
            xpad = jnp.pad(x, ((0, 0), (p, p), (p, p), (0, 0)), mode="wrap")
            out = jnp.zeros(x.shape[:3] + (cout,), jnp.float32)
            for dh in range(self.k):
                for dw in range(self.k):
                    out = out + jnp.einsum(
                        "bhwc,dc->bhwd",
                        xpad[:, dh:dh + L, dw:dw + L, :], w[:, :, dh, dw],
                        precision=jax.lax.Precision.HIGHEST)
            out = out + b.reshape(1, 1, 1, -1)
            x = jnp.maximum(out, 0.0) if relu else out
        return jnp.transpose(x, (0, 3, 1, 2))


# ----------------------------------------------------------------------------
if __name__ == "__main__":
    key = jax.random.PRNGKey(0)
    pkey, xkey = jax.random.split(key)

    B, L, K, HIDDEN = 2, 16, 3, 8

    # spec-faithful model (final-layer weight zeroed, as in the PyTorch module)
    model = QPeriodicCNNPallas(
        pkey, hidden_channels=HIDDEN, potential="ising",
        lattice_size=L, kernel_size=K)

    # same params but with a NON-zero final layer, so the numeric check actually
    # exercises the full fused conv stack (with zeroed weights the output is
    # trivially just the final bias).
    probe = QPeriodicCNNPallas(
        pkey, hidden_channels=HIDDEN, potential="ising",
        lattice_size=L, kernel_size=K, _zero_final_weight=False)

    # Ising-like +/-1 spin configuration, shape (B, L, L)
    state = jnp.where(
        jax.random.bernoulli(xkey, 0.5, (B, L, L)), 1.0, -1.0
    ).astype(jnp.float32)

    out = jax.block_until_ready(model.forward(state))
    assert out.shape == (B, 1, L, L), out.shape
    np.testing.assert_allclose(np.asarray(out), np.asarray(model.forward_ref(state)),
                               rtol=1e-4, atol=1e-4)

    probe_out = jax.block_until_ready(probe.forward(state))
    np.testing.assert_allclose(np.asarray(probe_out),
                               np.asarray(probe.forward_ref(state)),
                               rtol=1e-4, atol=1e-4)

    print("KERNEL_OK")
</pallas_src>

<mosaic_0001>
module attributes {stable_mosaic.version = 11 : i64} {
  func.func @kernel(%arg0: i32, %arg1: memref<1x16x128xf32, #tpu.memory_space<vmem>>, %arg2: memref<3x16x16xf32, #tpu.memory_space<vmem>>, %arg3: memref<10x384x128xf32, #tpu.memory_space<vmem>>, %arg4: memref<10x1x128xf32, #tpu.memory_space<vmem>>, %arg5: memref<1x16x128xf32, #tpu.memory_space<vmem>>) attributes {dimension_semantics = [#tpu.dimension_semantics<parallel>], iteration_bounds = array<i64: 2>, scalar_prefetch = 0 : i64, scratch_operands = 0 : i64, tpu.core_type = #tpu.core_type<tc>, window_params = [{transform_indices = @transform_0, window_bounds = array<i64: 1, 16, 128>}, {pipeline_mode = #tpu.pipeline_mode<synchronous>, transform_indices = @transform_1, window_bounds = array<i64: 3, 16, 16>}, {pipeline_mode = #tpu.pipeline_mode<synchronous>, transform_indices = @transform_2, window_bounds = array<i64: 10, 384, 128>}, {pipeline_mode = #tpu.pipeline_mode<synchronous>, transform_indices = @transform_3, window_bounds = array<i64: 10, 1, 128>}, {transform_indices = @transform_4, window_bounds = array<i64: 1, 16, 128>}]} {
    %c0 = arith.constant 0 : index
    %c0_0 = arith.constant 0 : index
    %c0_1 = arith.constant 0 : index
    %0 = vector.load %arg1[%c0, %c0_0, %c0_1] : memref<1x16x128xf32, #tpu.memory_space<vmem>>, vector<1x16x128xf32>
    %1 = vector.shape_cast %0 : vector<1x16x128xf32> to vector<16x128xf32>
    %c0_2 = arith.constant 0 : index
    %c0_3 = arith.constant 0 : index
    %c0_4 = arith.constant 0 : index
    %2 = vector.load %arg2[%c0_2, %c0_3, %c0_4] : memref<3x16x16xf32, #tpu.memory_space<vmem>>, vector<1x16x16xf32>
    %3 = vector.shape_cast %2 : vector<1x16x16xf32> to vector<16x16xf32>
    %cst = arith.constant dense<0.000000e+00> : vector<16x128xf32>
    %4 = tpu.matmul %3, %1, %cst {dimension_numbers = #tpu.dot_dimension_numbers<[1], [0], [0], [1], [0, 0, 1, 1], [], []>} : vector<16x16xf32>, vector<16x128xf32>, vector<16x128xf32> -> vector<16x128xf32>
    %c1 = arith.constant 1 : index
    %c0_5 = arith.constant 0 : index
    %c0_6 = arith.constant 0 : index
    %5 = vector.load %arg2[%c1, %c0_5, %c0_6] : memref<3x16x16xf32, #tpu.memory_space<vmem>>, vector<1x16x16xf32>
    %6 = vector.shape_cast %5 : vector<1x16x16xf32> to vector<16x16xf32>
    %cst_7 = arith.constant dense<0.000000e+00> : vector<16x128xf32>
    %7 = tpu.matmul %6, %1, %cst_7 {dimension_numbers = #tpu.dot_dimension_numbers<[1], [0], [0], [1], [0, 0, 1, 1], [], []>} : vector<16x16xf32>, vector<16x128xf32>, vector<16x128xf32> -> vector<16x128xf32>
    %c2 = arith.constant 2 : index
    %c0_8 = arith.constant 0 : index
    %c0_9 = arith.constant 0 : index
    %8 = vector.load %arg2[%c2, %c0_8, %c0_9] : memref<3x16x16xf32, #tpu.memory_space<vmem>>, vector<1x16x16xf32>
    %9 = vector.shape_cast %8 : vector<1x16x16xf32> to vector<16x16xf32>
    %cst_10 = arith.constant dense<0.000000e+00> : vector<16x128xf32>
    %10 = tpu.matmul %9, %1, %cst_10 {dimension_numbers = #tpu.dot_dimension_numbers<[1], [0], [0], [1], [0, 0, 1, 1], [], []>} : vector<16x16xf32>, vector<16x128xf32>, vector<16x128xf32> -> vector<16x128xf32>
    %11 = tpu.concatenate %4, %7, %10 in 1 : vector<16x128xf32>, vector<16x128xf32>, vector<16x128xf32> -> vector<16x384xf32>
    %c0_11 = arith.constant 0 : index
    %c0_12 = arith.constant 0 : index
    %c0_13 = arith.constant 0 : index
    %12 = vector.load %arg3[%c0_11, %c0_12, %c0_13] : memref<10x384x128xf32, #tpu.memory_space<vmem>>, vector<1x384x128xf32>
    %13 = vector.shape_cast %12 : vector<1x384x128xf32> to vector<384x128xf32>
    %cst_14 = arith.constant dense<0.000000e+00> : vector<16x128xf32>
    %14 = tpu.matmul %11, %13, %cst_14 {dimension_numbers = #tpu.dot_dimension_numbers<[1], [0], [0], [1], [0, 0, 1, 1], [], []>} : vector<16x384xf32>, vector<384x128xf32>, vector<16x128xf32> -> vector<16x128xf32>
    %c0_15 = arith.constant 0 : index
    %c0_16 = arith.constant 0 : index
    %c0_17 = arith.constant 0 : index
    %15 = vector.load %arg4[%c0_15, %c0_16, %c0_17] : memref<10x1x128xf32, #tpu.memory_space<vmem>>, vector<1x1x128xf32>
    %16 = vector.shape_cast %15 : vector<1x1x128xf32> to vector<1x128xf32>
    %17 = vector.broadcast %16 : vector<1x128xf32> to vector<16x128xf32>
    %18 = arith.addf %14, %17 : vector<16x128xf32>
    %cst_18 = arith.constant 0.000000e+00 : f32
    %19 = vector.broadcast %cst_18 : f32 to vector<16x128xf32>
    %20 = arith.maximumf %18, %19 : vector<16x128xf32>
    %c0_19 = arith.constant 0 : index
    %c0_20 = arith.constant 0 : index
    %c0_21 = arith.constant 0 : index
    %21 = vector.load %arg2[%c0_19, %c0_20, %c0_21] : memref<3x16x16xf32, #tpu.memory_space<vmem>>, vector<1x16x16xf32>
    %22 = vector.shape_cast %21 : vector<1x16x16xf32> to vector<16x16xf32>
    %cst_22 = arith.constant dense<0.000000e+00> : vector<16x128xf32>
    %23 = tpu.matmul %22, %20, %cst_22 {dimension_numbers = #tpu.dot_dimension_numbers<[1], [0], [0], [1], [0, 0, 1, 1], [], []>} : vector<16x16xf32>, vector<16x128xf32>, vector<16x128xf32> -> vector<16x128xf32>
    %c1_23 = arith.constant 1 : index
    %c0_24 = arith.constant 0 : index
    %c0_25 = arith.constant 0 : index
    %24 = vector.load %arg2[%c1_23, %c0_24, %c0_25] : memref<3x16x16xf32, #tpu.memory_space<vmem>>, vector<1x16x16xf32>
    %25 = vector.shape_cast %24 : vector<1x16x16xf32> to vector<16x16xf32>
    %cst_26 = arith.constant dense<0.000000e+00> : vector<16x128xf32>
    %26 = tpu.matmul %25, %20, %cst_26 {dimension_numbers = #tpu.dot_dimension_numbers<[1], [0], [0], [1], [0, 0, 1, 1], [], []>} : vector<16x16xf32>, vector<16x128xf32>, vector<16x128xf32> -> vector<16x128xf32>
    %c2_27 = arith.constant 2 : index
    %c0_28 = arith.constant 0 : index
    %c0_29 = arith.constant 0 : index
    %27 = vector.load %arg2[%c2_27, %c0_28, %c0_29] : memref<3x16x16xf32, #tpu.memory_space<vmem>>, vector<1x16x16xf32>
    %28 = vector.shape_cast %27 : vector<1x16x16xf32> to vector<16x16xf32>
    %cst_30 = arith.constant dense<0.000000e+00> : vector<16x128xf32>
    %29 = tpu.matmul %28, %20, %cst_30 {dimension_numbers = #tpu.dot_dimension_numbers<[1], [0], [0], [1], [0, 0, 1, 1], [], []>} : vector<16x16xf32>, vector<16x128xf32>, vector<16x128xf32> -> vector<16x128xf32>
    %30 = tpu.concatenate %23, %26, %29 in 1 : vector<16x128xf32>, vector<16x128xf32>, vector<16x128xf32> -> vector<16x384xf32>
    %c1_31 = arith.constant 1 : index
    %c0_32 = arith.constant 0 : index
    %c0_33 = arith.constant 0 : index
    %31 = vector.load %arg3[%c1_31, %c0_32, %c0_33] : memref<10x384x128xf32, #tpu.memory_space<vmem>>, vector<1x384x128xf32>
    %32 = vector.shape_cast %31 : vector<1x384x128xf32> to vector<384x128xf32>
    %cst_34 = arith.constant dense<0.000000e+00> : vector<16x128xf32>
    %33 = tpu.matmul %30, %32, %cst_34 {dimension_numbers = #tpu.dot_dimension_numbers<[1], [0], [0], [1], [0, 0, 1, 1], [], []>} : vector<16x384xf32>, vector<384x128xf32>, vector<16x128xf32> -> vector<16x128xf32>
    %c1_35 = arith.constant 1 : index
    %c0_36 = arith.constant 0 : index
    %c0_37 = arith.constant 0 : index
    %34 = vector.load %arg4[%c1_35, %c0_36, %c0_37] : memref<10x1x128xf32, #tpu.memory_space<vmem>>, vector<1x1x128xf32>
    %35 = vector.shape_cast %34 : vector<1x1x128xf32> to vector<1x128xf32>
    %36 = vector.broadcast %35 : vector<1x128xf32> to vector<16x128xf32>
    %37 = arith.addf %33, %36 : vector<16x128xf32>
    %cst_38 = arith.constant 0.000000e+00 : f32
    %38 = vector.broadcast %cst_38 : f32 to vector<16x128xf32>
    %39 = arith.maximumf %37, %38 : vector<16x128xf32>
    %c0_39 = arith.constant 0 : index
    %c0_40 = arith.constant 0 : index
    %c0_41 = arith.constant 0 : index
    %40 = vector.load %arg2[%c0_39, %c0_40, %c0_41] : memref<3x16x16xf32, #tpu.memory_space<vmem>>, vector<1x16x16xf32>
    %41 = vector.shape_cast %40 : vector<1x16x16xf32> to vector<16x16xf32>
    %cst_42 = arith.constant dense<0.000000e+00> : vector<16x128xf32>
    %42 = tpu.matmul %41, %39, %cst_42 {dimension_numbers = #tpu.dot_dimension_numbers<[1], [0], [0], [1], [0, 0, 1, 1], [], []>} : vector<16x16xf32>, vector<16x128xf32>, vector<16x128xf32> -> vector<16x128xf32>
    %c1_43 = arith.constant 1 : index
    %c0_44 = arith.constant 0 : index
    %c0_45 = arith.constant 0 : index
    %43 = vector.load %arg2[%c1_43, %c0_44, %c0_45] : memref<3x16x16xf32, #tpu.memory_space<vmem>>, vector<1x16x16xf32>
    %44 = vector.shape_cast %43 : vector<1x16x16xf32> to vector<16x16xf32>
    %cst_46 = arith.constant dense<0.000000e+00> : vector<16x128xf32>
    %45 = tpu.matmul %44, %39, %cst_46 {dimension_numbers = #tpu.dot_dimension_numbers<[1], [0], [0], [1], [0, 0, 1, 1], [], []>} : vector<16x16xf32>, vector<16x128xf32>, vector<16x128xf32> -> vector<16x128xf32>
    %c2_47 = arith.constant 2 : index
    %c0_48 = arith.constant 0 : index
    %c0_49 = arith.constant 0 : index
    %46 = vector.load %arg2[%c2_47, %c0_48, %c0_49] : memref<3x16x16xf32, #tpu.memory_space<vmem>>, vector<1x16x16xf32>
    %47 = vector.shape_cast %46 : vector<1x16x16xf32> to vector<16x16xf32>
    %cst_50 = arith.constant dense<0.000000e+00> : vector<16x128xf32>
    %48 = tpu.matmul %47, %39, %cst_50 {dimension_numbers = #tpu.dot_dimension_numbers<[1], [0], [0], [1], [0, 0, 1, 1], [], []>} : vector<16x16xf32>, vector<16x128xf32>, vector<16x128xf32> -> vector<16x128xf32>
    %49 = tpu.concatenate %42, %45, %48 in 1 : vector<16x128xf32>, vector<16x128xf32>, vector<16x128xf32> -> vector<16x384xf32>
    %c2_51 = arith.constant 2 : index
    %c0_52 = arith.constant 0 : index
    %c0_53 = arith.constant 0 : index
    %50 = vector.load %arg3[%c2_51, %c0_52, %c0_53] : memref<10x384x128xf32, #tpu.memory_space<vmem>>, vector<1x384x128xf32>
    %51 = vector.shape_cast %50 : vector<1x384x128xf32> to vector<384x128xf32>
    %cst_54 = arith.constant dense<0.000000e+00> : vector<16x128xf32>
    %52 = tpu.matmul %49, %51, %cst_54 {dimension_numbers = #tpu.dot_dimension_numbers<[1], [0], [0], [1], [0, 0, 1, 1], [], []>} : vector<16x384xf32>, vector<384x128xf32>, vector<16x128xf32> -> vector<16x128xf32>
    %c2_55 = arith.constant 2 : index
    %c0_56 = arith.constant 0 : index
    %c0_57 = arith.constant 0 : index
    %53 = vector.load %arg4[%c2_55, %c0_56, %c0_57] : memref<10x1x128xf32, #tpu.memory_space<vmem>>, vector<1x1x128xf32>
    %54 = vector.shape_cast %53 : vector<1x1x128xf32> to vector<1x128xf32>
    %55 = vector.broadcast %54 : vector<1x128xf32> to vector<16x128xf32>
    %56 = arith.addf %52, %55 : vector<16x128xf32>
    %cst_58 = arith.constant 0.000000e+00 : f32
    %57 = vector.broadcast %cst_58 : f32 to vector<16x128xf32>
    %58 = arith.maximumf %56, %57 : vector<16x128xf32>
    %c0_59 = arith.constant 0 : index
    %c0_60 = arith.constant 0 : index
    %c0_61 = arith.constant 0 : index
    %59 = vector.load %arg2[%c0_59, %c0_60, %c0_61] : memref<3x16x16xf32, #tpu.memory_space<vmem>>, vector<1x16x16xf32>
    %60 = vector.shape_cast %59 : vector<1x16x16xf32> to vector<16x16xf32>
    %cst_62 = arith.constant dense<0.000000e+00> : vector<16x128xf32>
    %61 = tpu.matmul %60, %58, %cst_62 {dimension_numbers = #tpu.dot_dimension_numbers<[1], [0], [0], [1], [0, 0, 1, 1], [], []>} : vector<16x16xf32>, vector<16x128xf32>, vector<16x128xf32> -> vector<16x128xf32>
    %c1_63 = arith.constant 1 : index
    %c0_64 = arith.constant 0 : index
    %c0_65 = arith.constant 0 : index
    %62 = vector.load %arg2[%c1_63, %c0_64, %c0_65] : memref<3x16x16xf32, #tpu.memory_space<vmem>>, vector<1x16x16xf32>
    %63 = vector.shape_cast %62 : vector<1x16x16xf32> to vector<16x16xf32>
    %cst_66 = arith.constant dense<0.000000e+00> : vector<16x128xf32>
    %64 = tpu.matmul %63, %58, %cst_66 {dimension_numbers = #tpu.dot_dimension_numbers<[1], [0], [0], [1], [0, 0, 1, 1], [], []>} : vector<16x16xf32>, vector<16x128xf32>, vector<16x128xf32> -> vector<16x128xf32>
    %c2_67 = arith.constant 2 : index
    %c0_68 = arith.constant 0 : index
    %c0_69 = arith.constant 0 : index
    %65 = vector.load %arg2[%c2_67, %c0_68, %c0_69] : memref<3x16x16xf32, #tpu.memory_space<vmem>>, vector<1x16x16xf32>
    %66 = vector.shape_cast %65 : vector<1x16x16xf32> to vector<16x16xf32>
    %cst_70 = arith.constant dense<0.000000e+00> : vector<16x128xf32>
    %67 = tpu.matmul %66, %58, %cst_70 {dimension_numbers = #tpu.dot_dimension_numbers<[1], [0], [0], [1], [0, 0, 1, 1], [], []>} : vector<16x16xf32>, vector<16x128xf32>, vector<16x128xf32> -> vector<16x128xf32>
    %68 = tpu.concatenate %61, %64, %67 in 1 : vector<16x128xf32>, vector<16x128xf32>, vector<16x128xf32> -> vector<16x384xf32>
    %c3 = arith.constant 3 : index
    %c0_71 = arith.constant 0 : index
    %c0_72 = arith.constant 0 : index
    %69 = vector.load %arg3[%c3, %c0_71, %c0_72] : memref<10x384x128xf32, #tpu.memory_space<vmem>>, vector<1x384x128xf32>
    %70 = vector.shape_cast %69 : vector<1x384x128xf32> to vector<384x128xf32>
    %cst_73 = arith.constant dense<0.000000e+00> : vector<16x128xf32>
    %71 = tpu.matmul %68, %70, %cst_73 {dimension_numbers = #tpu.dot_dimension_numbers<[1], [0], [0], [1], [0, 0, 1, 1], [], []>} : vector<16x384xf32>, vector<384x128xf32>, vector<16x128xf32> -> vector<16x128xf32>
    %c3_74 = arith.constant 3 : index
    %c0_75 = arith.constant 0 : index
    %c0_76 = arith.constant 0 : index
    %72 = vector.load %arg4[%c3_74, %c0_75, %c0_76] : memref<10x1x128xf32, #tpu.memory_space<vmem>>, vector<1x1x128xf32>
    %73 = vector.shape_cast %72 : vector<1x1x128xf32> to vector<1x128xf32>
    %74 = vector.broadcast %73 : vector<1x128xf32> to vector<16x128xf32>
    %75 = arith.addf %71, %74 : vector<16x128xf32>
    %cst_77 = arith.constant 0.000000e+00 : f32
    %76 = vector.broadcast %cst_77 : f32 to vector<16x128xf32>
    %77 = arith.maximumf %75, %76 : vector<16x128xf32>
    %c0_78 = arith.constant 0 : index
    %c0_79 = arith.constant 0 : index
    %c0_80 = arith.constant 0 : index
    %78 = vector.load %arg2[%c0_78, %c0_79, %c0_80] : memref<3x16x16xf32, #tpu.memory_space<vmem>>, vector<1x16x16xf32>
    %79 = vector.shape_cast %78 : vector<1x16x16xf32> to vector<16x16xf32>
    %cst_81 = arith.constant dense<0.000000e+00> : vector<16x128xf32>
    %80 = tpu.matmul %79, %77, %cst_81 {dimension_numbers = #tpu.dot_dimension_numbers<[1], [0], [0], [1], [0, 0, 1, 1], [], []>} : vector<16x16xf32>, vector<16x128xf32>, vector<16x128xf32> -> vector<16x128xf32>
    %c1_82 = arith.constant 1 : index
    %c0_83 = arith.constant 0 : index
    %c0_84 = arith.constant 0 : index
    %81 = vector.load %arg2[%c1_82, %c0_83, %c0_84] : memref<3x16x16xf32, #tpu.memory_space<vmem>>, vector<1x16x16xf32>
    %82 = vector.shape_cast %81 : vector<1x16x16xf32> to vector<16x16xf32>
    %cst_85 = arith.constant dense<0.000000e+00> : vector<16x128xf32>
    %83 = tpu.matmul %82, %77, %cst_85 {dimension_numbers = #tpu.dot_dimension_numbers<[1], [0], [0], [1], [0, 0, 1, 1], [], []>} : vector<16x16xf32>, vector<16x128xf32>, vector<16x128xf32> -> vector<16x128xf32>
    %c2_86 = arith.constant 2 : index
    %c0_87 = arith.constant 0 : index
    %c0_88 = arith.constant 0 : index
    %84 = vector.load %arg2[%c2_86, %c0_87, %c0_88] : memref<3x16x16xf32, #tpu.memory_space<vmem>>, vector<1x16x16xf32>
    %85 = vector.shape_cast %84 : vector<1x16x16xf32> to vector<16x16xf32>
    %cst_89 = arith.constant dense<0.000000e+00> : vector<16x128xf32>
    %86 = tpu.matmul %85, %77, %cst_89 {dimension_numbers = #tpu.dot_dimension_numbers<[1], [0], [0], [1], [0, 0, 1, 1], [], []>} : vector<16x16xf32>, vector<16x128xf32>, vector<16x128xf32> -> vector<16x128xf32>
    %87 = tpu.concatenate %80, %83, %86 in 1 : vector<16x128xf32>, vector<16x128xf32>, vector<16x128xf32> -> vector<16x384xf32>
    %c4 = arith.constant 4 : index
    %c0_90 = arith.constant 0 : index
    %c0_91 = arith.constant 0 : index
    %88 = vector.load %arg3[%c4, %c0_90, %c0_91] : memref<10x384x128xf32, #tpu.memory_space<vmem>>, vector<1x384x128xf32>
    %89 = vector.shape_cast %88 : vector<1x384x128xf32> to vector<384x128xf32>
    %cst_92 = arith.constant dense<0.000000e+00> : vector<16x128xf32>
    %90 = tpu.matmul %87, %89, %cst_92 {dimension_numbers = #tpu.dot_dimension_numbers<[1], [0], [0], [1], [0, 0, 1, 1], [], []>} : vector<16x384xf32>, vector<384x128xf32>, vector<16x128xf32> -> vector<16x128xf32>
    %c4_93 = arith.constant 4 : index
    %c0_94 = arith.constant 0 : index
    %c0_95 = arith.constant 0 : index
    %91 = vector.load %arg4[%c4_93, %c0_94, %c0_95] : memref<10x1x128xf32, #tpu.memory_space<vmem>>, vector<1x1x128xf32>
    %92 = vector.shape_cast %91 : vector<1x1x128xf32> to vector<1x128xf32>
    %93 = vector.broadcast %92 : vector<1x128xf32> to vector<16x128xf32>
    %94 = arith.addf %90, %93 : vector<16x128xf32>
    %cst_96 = arith.constant 0.000000e+00 : f32
    %95 = vector.broadcast %cst_96 : f32 to vector<16x128xf32>
    %96 = arith.maximumf %94, %95 : vector<16x128xf32>
    %c0_97 = arith.constant 0 : index
    %c0_98 = arith.constant 0 : index
    %c0_99 = arith.constant 0 : index
    %97 = vector.load %arg2[%c0_97, %c0_98, %c0_99] : memref<3x16x16xf32, #tpu.memory_space<vmem>>, vector<1x16x16xf32>
    %98 = vector.shape_cast %97 : vector<1x16x16xf32> to vector<16x16xf32>
    %cst_100 = arith.constant dense<0.000000e+00> : vector<16x128xf32>
    %99 = tpu.matmul %98, %96, %cst_100 {dimension_numbers = #tpu.dot_dimension_numbers<[1], [0], [0], [1], [0, 0, 1, 1], [], []>} : vector<16x16xf32>, vector<16x128xf32>, vector<16x128xf32> -> vector<16x128xf32>
    %c1_101 = arith.constant 1 : index
    %c0_102 = arith.constant 0 : index
    %c0_103 = arith.constant 0 : index
    %100 = vector.load %arg2[%c1_101, %c0_102, %c0_103] : memref<3x16x16xf32, #tpu.memory_space<vmem>>, vector<1x16x16xf32>
    %101 = vector.shape_cast %100 : vector<1x16x16xf32> to vector<16x16xf32>
    %cst_104 = arith.constant dense<0.000000e+00> : vector<16x128xf32>
    %102 = tpu.matmul %101, %96, %cst_104 {dimension_numbers = #tpu.dot_dimension_numbers<[1], [0], [0], [1], [0, 0, 1, 1], [], []>} : vector<16x16xf32>, vector<16x128xf32>, vector<16x128xf32> -> vector<16x128xf32>
    %c2_105 = arith.constant 2 : index
    %c0_106 = arith.constant 0 : index
    %c0_107 = arith.constant 0 : index
    %103 = vector.load %arg2[%c2_105, %c0_106, %c0_107] : memref<3x16x16xf32, #tpu.memory_space<vmem>>, vector<1x16x16xf32>
    %104 = vector.shape_cast %103 : vector<1x16x16xf32> to vector<16x16xf32>
    %cst_108 = arith.constant dense<0.000000e+00> : vector<16x128xf32>
    %105 = tpu.matmul %104, %96, %cst_108 {dimension_numbers = #tpu.dot_dimension_numbers<[1], [0], [0], [1], [0, 0, 1, 1], [], []>} : vector<16x16xf32>, vector<16x128xf32>, vector<16x128xf32> -> vector<16x128xf32>
    %106 = tpu.concatenate %99, %102, %105 in 1 : vector<16x128xf32>, vector<16x128xf32>, vector<16x128xf32> -> vector<16x384xf32>
    %c5 = arith.constant 5 : index
    %c0_109 = arith.constant 0 : index
    %c0_110 = arith.constant 0 : index
    %107 = vector.load %arg3[%c5, %c0_109, %c0_110] : memref<10x384x128xf32, #tpu.memory_space<vmem>>, vector<1x384x128xf32>
    %108 = vector.shape_cast %107 : vector<1x384x128xf32> to vector<384x128xf32>
    %cst_111 = arith.constant dense<0.000000e+00> : vector<16x128xf32>
    %109 = tpu.matmul %106, %108, %cst_111 {dimension_numbers = #tpu.dot_dimension_numbers<[1], [0], [0], [1], [0, 0, 1, 1], [], []>} : vector<16x384xf32>, vector<384x128xf32>, vector<16x128xf32> -> vector<16x128xf32>
    %c5_112 = arith.constant 5 : index
    %c0_113 = arith.constant 0 : index
    %c0_114 = arith.constant 0 : index
    %110 = vector.load %arg4[%c5_112, %c0_113, %c0_114] : memref<10x1x128xf32, #tpu.memory_space<vmem>>, vector<1x1x128xf32>
    %111 = vector.shape_cast %110 : vector<1x1x128xf32> to vector<1x128xf32>
    %112 = vector.broadcast %111 : vector<1x128xf32> to vector<16x128xf32>
    %113 = arith.addf %109, %112 : vector<16x128xf32>
    %cst_115 = arith.constant 0.000000e+00 : f32
    %114 = vector.broadcast %cst_115 : f32 to vector<16x128xf32>
    %115 = arith.maximumf %113, %114 : vector<16x128xf32>
    %c0_116 = arith.constant 0 : index
    %c0_117 = arith.constant 0 : index
    %c0_118 = arith.constant 0 : index
    %116 = vector.load %arg2[%c0_116, %c0_117, %c0_118] : memref<3x16x16xf32, #tpu.memory_space<vmem>>, vector<1x16x16xf32>
    %117 = vector.shape_cast %116 : vector<1x16x16xf32> to vector<16x16xf32>
    %cst_119 = arith.constant dense<0.000000e+00> : vector<16x128xf32>
    %118 = tpu.matmul %117, %115, %cst_119 {dimension_numbers = #tpu.dot_dimension_numbers<[1], [0], [0], [1], [0, 0, 1, 1], [], []>} : vector<16x16xf32>, vector<16x128xf32>, vector<16x128xf32> -> vector<16x128xf32>
    %c1_120 = arith.constant 1 : index
    %c0_121 = arith.constant 0 : index
    %c0_122 = arith.constant 0 : index
    %119 = vector.load %arg2[%c1_120, %c0_121, %c0_122] : memref<3x16x16xf32, #tpu.memory_space<vmem>>, vector<1x16x16xf32>
    %120 = vector.shape_cast %119 : vector<1x16x16xf32> to vector<16x16xf32>
    %cst_123 = arith.constant dense<0.000000e+00> : vector<16x128xf32>
    %121 = tpu.matmul %120, %115, %cst_123 {dimension_numbers = #tpu.dot_dimension_numbers<[1], [0], [0], [1], [0, 0, 1, 1], [], []>} : vector<16x16xf32>, vector<16x128xf32>, vector<16x128xf32> -> vector<16x128xf32>
    %c2_124 = arith.constant 2 : index
    %c0_125 = arith.constant 0 : index
    %c0_126 = arith.constant 0 : index
    %122 = vector.load %arg2[%c2_124, %c0_125, %c0_126] : memref<3x16x16xf32, #tpu.memory_space<vmem>>, vector<1x16x16xf32>
    %123 = vector.shape_cast %122 : vector<1x16x16xf32> to vector<16x16xf32>
    %cst_127 = arith.constant dense<0.000000e+00> : vector<16x128xf32>
    %124 = tpu.matmul %123, %115, %cst_127 {dimension_numbers = #tpu.dot_dimension_numbers<[1], [0], [0], [1], [0, 0, 1, 1], [], []>} : vector<16x16xf32>, vector<16x128xf32>, vector<16x128xf32> -> vector<16x128xf32>
    %125 = tpu.concatenate %118, %121, %124 in 1 : vector<16x128xf32>, vector<16x128xf32>, vector<16x128xf32> -> vector<16x384xf32>
    %c6 = arith.constant 6 : index
    %c0_128 = arith.constant 0 : index
    %c0_129 = arith.constant 0 : index
    %126 = vector.load %arg3[%c6, %c0_128, %c0_129] : memref<10x384x128xf32, #tpu.memory_space<vmem>>, vector<1x384x128xf32>
    %127 = vector.shape_cast %126 : vector<1x384x128xf32> to vector<384x128xf32>
    %cst_130 = arith.constant dense<0.000000e+00> : vector<16x128xf32>
    %128 = tpu.matmul %125, %127, %cst_130 {dimension_numbers = #tpu.dot_dimension_numbers<[1], [0], [0], [1], [0, 0, 1, 1], [], []>} : vector<16x384xf32>, vector<384x128xf32>, vector<16x128xf32> -> vector<16x128xf32>
    %c6_131 = arith.constant 6 : index
    %c0_132 = arith.constant 0 : index
    %c0_133 = arith.constant 0 : index
    %129 = vector.load %arg4[%c6_131, %c0_132, %c0_133] : memref<10x1x128xf32, #tpu.memory_space<vmem>>, vector<1x1x128xf32>
    %130 = vector.shape_cast %129 : vector<1x1x128xf32> to vector<1x128xf32>
    %131 = vector.broadcast %130 : vector<1x128xf32> to vector<16x128xf32>
    %132 = arith.addf %128, %131 : vector<16x128xf32>
    %cst_134 = arith.constant 0.000000e+00 : f32
    %133 = vector.broadcast %cst_134 : f32 to vector<16x128xf32>
    %134 = arith.maximumf %132, %133 : vector<16x128xf32>
    %c0_135 = arith.constant 0 : index
    %c0_136 = arith.constant 0 : index
    %c0_137 = arith.constant 0 : index
    %135 = vector.load %arg2[%c0_135, %c0_136, %c0_137] : memref<3x16x16xf32, #tpu.memory_space<vmem>>, vector<1x16x16xf32>
    %136 = vector.shape_cast %135 : vector<1x16x16xf32> to vector<16x16xf32>
    %cst_138 = arith.constant dense<0.000000e+00> : vector<16x128xf32>
    %137 = tpu.matmul %136, %134, %cst_138 {dimension_numbers = #tpu.dot_dimension_numbers<[1], [0], [0], [1], [0, 0, 1, 1], [], []>} : vector<16x16xf32>, vector<16x128xf32>, vector<16x128xf32> -> vector<16x128xf32>
    %c1_139 = arith.constant 1 : index
    %c0_140 = arith.constant 0 : index
    %c0_141 = arith.constant 0 : index
    %138 = vector.load %arg2[%c1_139, %c0_140, %c0_141] : memref<3x16x16xf32, #tpu.memory_space<vmem>>, vector<1x16x16xf32>
    %139 = vector.shape_cast %138 : vector<1x16x16xf32> to vector<16x16xf32>
    %cst_142 = arith.constant dense<0.000000e+00> : vector<16x128xf32>
    %140 = tpu.matmul %139, %134, %cst_142 {dimension_numbers = #tpu.dot_dimension_numbers<[1], [0], [0], [1], [0, 0, 1, 1], [], []>} : vector<16x16xf32>, vector<16x128xf32>, vector<16x128xf32> -> vector<16x128xf32>
    %c2_143 = arith.constant 2 : index
    %c0_144 = arith.constant 0 : index
    %c0_145 = arith.constant 0 : index
    %141 = vector.load %arg2[%c2_143, %c0_144, %c0_145] : memref<3x16x16xf32, #tpu.memory_space<vmem>>, vector<1x16x16xf32>
    %142 = vector.shape_cast %141 : vector<1x16x16xf32> to vector<16x16xf32>
    %cst_146 = arith.constant dense<0.000000e+00> : vector<16x128xf32>
    %143 = tpu.matmul %142, %134, %cst_146 {dimension_numbers = #tpu.dot_dimension_numbers<[1], [0], [0], [1], [0, 0, 1, 1], [], []>} : vector<16x16xf32>, vector<16x128xf32>, vector<16x128xf32> -> vector<16x128xf32>
    %144 = tpu.concatenate %137, %140, %143 in 1 : vector<16x128xf32>, vector<16x128xf32>, vector<16x128xf32> -> vector<16x384xf32>
    %c7 = arith.constant 7 : index
    %c0_147 = arith.constant 0 : index
    %c0_148 = arith.constant 0 : index
    %145 = vector.load %arg3[%c7, %c0_147, %c0_148] : memref<10x384x128xf32, #tpu.memory_space<vmem>>, vector<1x384x128xf32>
    %146 = vector.shape_cast %145 : vector<1x384x128xf32> to vector<384x128xf32>
    %cst_149 = arith.constant dense<0.000000e+00> : vector<16x128xf32>
    %147 = tpu.matmul %144, %146, %cst_149 {dimension_numbers = #tpu.dot_dimension_numbers<[1], [0], [0], [1], [0, 0, 1, 1], [], []>} : vector<16x384xf32>, vector<384x128xf32>, vector<16x128xf32> -> vector<16x128xf32>
    %c7_150 = arith.constant 7 : index
    %c0_151 = arith.constant 0 : index
    %c0_152 = arith.constant 0 : index
    %148 = vector.load %arg4[%c7_150, %c0_151, %c0_152] : memref<10x1x128xf32, #tpu.memory_space<vmem>>, vector<1x1x128xf32>
    %149 = vector.shape_cast %148 : vector<1x1x128xf32> to vector<1x128xf32>
    %150 = vector.broadcast %149 : vector<1x128xf32> to vector<16x128xf32>
    %151 = arith.addf %147, %150 : vector<16x128xf32>
    %cst_153 = arith.constant 0.000000e+00 : f32
    %152 = vector.broadcast %cst_153 : f32 to vector<16x128xf32>
    %153 = arith.maximumf %151, %152 : vector<16x128xf32>
    %c0_154 = arith.constant 0 : index
    %c0_155 = arith.constant 0 : index
    %c0_156 = arith.constant 0 : index
    %154 = vector.load %arg2[%c0_154, %c0_155, %c0_156] : memref<3x16x16xf32, #tpu.memory_space<vmem>>, vector<1x16x16xf32>
    %155 = vector.shape_cast %154 : vector<1x16x16xf32> to vector<16x16xf32>
    %cst_157 = arith.constant dense<0.000000e+00> : vector<16x128xf32>
    %156 = tpu.matmul %155, %153, %cst_157 {dimension_numbers = #tpu.dot_dimension_numbers<[1], [0], [0], [1], [0, 0, 1, 1], [], []>} : vector<16x16xf32>, vector<16x128xf32>, vector<16x128xf32> -> vector<16x128xf32>
    %c1_158 = arith.constant 1 : index
    %c0_159 = arith.constant 0 : index
    %c0_160 = arith.constant 0 : index
    %157 = vector.load %arg2[%c1_158, %c0_159, %c0_160] : memref<3x16x16xf32, #tpu.memory_space<vmem>>, vector<1x16x16xf32>
    %158 = vector.shape_cast %157 : vector<1x16x16xf32> to vector<16x16xf32>
    %cst_161 = arith.constant dense<0.000000e+00> : vector<16x128xf32>
    %159 = tpu.matmul %158, %153, %cst_161 {dimension_numbers = #tpu.dot_dimension_numbers<[1], [0], [0], [1], [0, 0, 1, 1], [], []>} : vector<16x16xf32>, vector<16x128xf32>, vector<16x128xf32> -> vector<16x128xf32>
    %c2_162 = arith.constant 2 : index
    %c0_163 = arith.constant 0 : index
    %c0_164 = arith.constant 0 : index
    %160 = vector.load %arg2[%c2_162, %c0_163, %c0_164] : memref<3x16x16xf32, #tpu.memory_space<vmem>>, vector<1x16x16xf32>
    %161 = vector.shape_cast %160 : vector<1x16x16xf32> to vector<16x16xf32>
    %cst_165 = arith.constant dense<0.000000e+00> : vector<16x128xf32>
    %162 = tpu.matmul %161, %153, %cst_165 {dimension_numbers = #tpu.dot_dimension_numbers<[1], [0], [0], [1], [0, 0, 1, 1], [], []>} : vector<16x16xf32>, vector<16x128xf32>, vector<16x128xf32> -> vector<16x128xf32>
    %163 = tpu.concatenate %156, %159, %162 in 1 : vector<16x128xf32>, vector<16x128xf32>, vector<16x128xf32> -> vector<16x384xf32>
    %c8 = arith.constant 8 : index
    %c0_166 = arith.constant 0 : index
    %c0_167 = arith.constant 0 : index
    %164 = vector.load %arg3[%c8, %c0_166, %c0_167] : memref<10x384x128xf32, #tpu.memory_space<vmem>>, vector<1x384x128xf32>
    %165 = vector.shape_cast %164 : vector<1x384x128xf32> to vector<384x128xf32>
    %cst_168 = arith.constant dense<0.000000e+00> : vector<16x128xf32>
    %166 = tpu.matmul %163, %165, %cst_168 {dimension_numbers = #tpu.dot_dimension_numbers<[1], [0], [0], [1], [0, 0, 1, 1], [], []>} : vector<16x384xf32>, vector<384x128xf32>, vector<16x128xf32> -> vector<16x128xf32>
    %c8_169 = arith.constant 8 : index
    %c0_170 = arith.constant 0 : index
    %c0_171 = arith.constant 0 : index
    %167 = vector.load %arg4[%c8_169, %c0_170, %c0_171] : memref<10x1x128xf32, #tpu.memory_space<vmem>>, vector<1x1x128xf32>
    %168 = vector.shape_cast %167 : vector<1x1x128xf32> to vector<1x128xf32>
    %169 = vector.broadcast %168 : vector<1x128xf32> to vector<16x128xf32>
    %170 = arith.addf %166, %169 : vector<16x128xf32>
    %cst_172 = arith.constant 0.000000e+00 : f32
    %171 = vector.broadcast %cst_172 : f32 to vector<16x128xf32>
    %172 = arith.maximumf %170, %171 : vector<16x128xf32>
    %c0_173 = arith.constant 0 : index
    %c0_174 = arith.constant 0 : index
    %c0_175 = arith.constant 0 : index
    %173 = vector.load %arg2[%c0_173, %c0_174, %c0_175] : memref<3x16x16xf32, #tpu.memory_space<vmem>>, vector<1x16x16xf32>
    %174 = vector.shape_cast %173 : vector<1x16x16xf32> to vector<16x16xf32>
    %cst_176 = arith.constant dense<0.000000e+00> : vector<16x128xf32>
    %175 = tpu.matmul %174, %172, %cst_176 {dimension_numbers = #tpu.dot_dimension_numbers<[1], [0], [0], [1], [0, 0, 1, 1], [], []>} : vector<16x16xf32>, vector<16x128xf32>, vector<16x128xf32> -> vector<16x128xf32>
    %c1_177 = arith.constant 1 : index
    %c0_178 = arith.constant 0 : index
    %c0_179 = arith.constant 0 : index
    %176 = vector.load %arg2[%c1_177, %c0_178, %c0_179] : memref<3x16x16xf32, #tpu.memory_space<vmem>>, vector<1x16x16xf32>
    %177 = vector.shape_cast %176 : vector<1x16x16xf32> to vector<16x16xf32>
    %cst_180 = arith.constant dense<0.000000e+00> : vector<16x128xf32>
    %178 = tpu.matmul %177, %172, %cst_180 {dimension_numbers = #tpu.dot_dimension_numbers<[1], [0], [0], [1], [0, 0, 1, 1], [], []>} : vector<16x16xf32>, vector<16x128xf32>, vector<16x128xf32> -> vector<16x128xf32>
    %c2_181 = arith.constant 2 : index
    %c0_182 = arith.constant 0 : index
    %c0_183 = arith.constant 0 : index
    %179 = vector.load %arg2[%c2_181, %c0_182, %c0_183] : memref<3x16x16xf32, #tpu.memory_space<vmem>>, vector<1x16x16xf32>
    %180 = vector.shape_cast %179 : vector<1x16x16xf32> to vector<16x16xf32>
    %cst_184 = arith.constant dense<0.000000e+00> : vector<16x128xf32>
    %181 = tpu.matmul %180, %172, %cst_184 {dimension_numbers = #tpu.dot_dimension_numbers<[1], [0], [0], [1], [0, 0, 1, 1], [], []>} : vector<16x16xf32>, vector<16x128xf32>, vector<16x128xf32> -> vector<16x128xf32>
    %182 = tpu.concatenate %175, %178, %181 in 1 : vector<16x128xf32>, vector<16x128xf32>, vector<16x128xf32> -> vector<16x384xf32>
    %c9 = arith.constant 9 : index
    %c0_185 = arith.constant 0 : index
    %c0_186 = arith.constant 0 : index
    %183 = vector.load %arg3[%c9, %c0_185, %c0_186] : memref<10x384x128xf32, #tpu.memory_space<vmem>>, vector<1x384x128xf32>
    %184 = vector.shape_cast %183 : vector<1x384x128xf32> to vector<384x128xf32>
    %cst_187 = arith.constant dense<0.000000e+00> : vector<16x128xf32>
    %185 = tpu.matmul %182, %184, %cst_187 {dimension_numbers = #tpu.dot_dimension_numbers<[1], [0], [0], [1], [0, 0, 1, 1], [], []>} : vector<16x384xf32>, vector<384x128xf32>, vector<16x128xf32> -> vector<16x128xf32>
    %c9_188 = arith.constant 9 : index
    %c0_189 = arith.constant 0 : index
    %c0_190 = arith.constant 0 : index
    %186 = vector.load %arg4[%c9_188, %c0_189, %c0_190] : memref<10x1x128xf32, #tpu.memory_space<vmem>>, vector<1x1x128xf32>
    %187 = vector.shape_cast %186 : vector<1x1x128xf32> to vector<1x128xf32>
    %188 = vector.broadcast %187 : vector<1x128xf32> to vector<16x128xf32>
    %189 = arith.addf %185, %188 : vector<16x128xf32>
    %c0_191 = arith.constant 0 : index
    %c0_192 = arith.constant 0 : index
    %c0_193 = arith.constant 0 : index
    %190 = vector.load %arg5[%c0_191, %c0_192, %c0_193] : memref<1x16x128xf32, #tpu.memory_space<vmem>>, vector<1x16x128xf32>
    %191 = vector.shape_cast %190 : vector<1x16x128xf32> to vector<16x128xf32>
    %192 = vector.shape_cast %189 : vector<16x128xf32> to vector<1x16x128xf32>
    tpu.vector_store %arg5[%c0_191, %c0_192, %c0_193], %192 {strides = array<i32>} : memref<1x16x128xf32, #tpu.memory_space<vmem>>, vector<1x16x128xf32>,
    return
  }
  func.func @transform_0(%arg0: i32) -> (i32, i32, i32) {
    %c0_i32 = arith.constant 0 : i32
    %c0_i32_0 = arith.constant 0 : i32
    %c0_i32_1 = arith.constant 0 : i32
    return %arg0, %c0_i32, %c0_i32_0 : i32, i32, i32
  }
  func.func @transform_1(%arg0: i32) -> (i32, i32, i32) {
    %c0_i32 = arith.constant 0 : i32
    %c0_i32_0 = arith.constant 0 : i32
    %c0_i32_1 = arith.constant 0 : i32
    %c0_i32_2 = arith.constant 0 : i32
    return %c0_i32, %c0_i32_0, %c0_i32_1 : i32, i32, i32
  }
  func.func @transform_2(%arg0: i32) -> (i32, i32, i32) {
    %c0_i32 = arith.constant 0 : i32
    %c0_i32_0 = arith.constant 0 : i32
    %c0_i32_1 = arith.constant 0 : i32
    %c0_i32_2 = arith.constant 0 : i32
    return %c0_i32, %c0_i32_0, %c0_i32_1 : i32, i32, i32
  }
  func.func @transform_3(%arg0: i32) -> (i32, i32, i32) {
    %c0_i32 = arith.constant 0 : i32
    %c0_i32_0 = arith.constant 0 : i32
    %c0_i32_1 = arith.constant 0 : i32
    %c0_i32_2 = arith.constant 0 : i32
    return %c0_i32, %c0_i32_0, %c0_i32_1 : i32, i32, i32
  }
  func.func @transform_4(%arg0: i32) -> (i32, i32, i32) {
    %c0_i32 = arith.constant 0 : i32
    %c0_i32_0 = arith.constant 0 : i32
    %c0_i32_1 = arith.constant 0 : i32
    return %arg0, %c0_i32, %c0_i32_0 : i32, i32, i32
  }
}

</mosaic_0001>

<llo_original>
// kernel: _forward_impl.1
$region0: #{_forward_impl.1}
  #allocation0 [shape = 'u32[]', space=smem, size = 0x4, offset = 0x4, fixed_abs, tag = 'smem constant byte address 0x4 - core index']
  #allocation1 [shape = 'u32[144,128]{1,0:T(1,128)}', space=vmem, size = 0x12000, scoped, tag = 'internal scratch']
  %s0 = inlined_call_operand.vmem [shape: f32[2,16,128], index: 0, kind: input, shape index: {}]
  %s1 = inlined_call_operand.hbm [shape: f32[3,16,16], index: 1, kind: input, shape index: {}]
  %s2 = inlined_call_operand.hbm [shape: f32[10,384,128], index: 2, kind: input, shape index: {}]
  %s3 = inlined_call_operand.hbm [shape: f32[10,1,128], index: 3, kind: input, shape index: {}]
  %s4 = inlined_call_operand.vmem [shape: f32[2,16,128], index: 4, kind: output, shape index: {}]
  %s5 = sld [smem:[#allocation0]]
  $region61: #{_forward_impl.1} parent=0
    _
  %s7 = ssub.s32 1, %s5
  %s8 = scalar_select 0, %s7, %s5
  $region1: #{_forward_impl.1} parent=0
    #allocation2 [shape = 'u8[24576]{0}', space=vmem, size = 0x6000, scoped, tag = 'input window, operand 1, single buffered']
    #allocation3 [shape = 's32[2]{0}', space=sflag, size = 0x8, scoped, tag = 'scoped memory for _forward_impl.1']
    #allocation4 [shape = 'u8[1966080]{0}', space=vmem, size = 0x1e0000, scoped, tag = 'input window, operand 2, single buffered']
    #allocation5 [shape = 's32[1]{0}', space=sflag, size = 0x4, scoped, tag = 'scoped memory for _forward_impl.1']
    #allocation6 [shape = 'u8[5120]{0}', space=vmem, size = 0x1400, scoped, tag = 'input window, operand 3, single buffered']
    %9 = vsyncpa [#allocation3], 0
    %10 = vsyncpa [#allocation5], 0
    loop: start=0, step=1, limit=4
    $region2: #{_forward_impl.1} parent=1 // loop_pre_header
      _
    $region3: #{_forward_impl.1} parent=1 // loop_header
      %s12 = sphi 0, %s16
      %p13 = scmp.ge.s32.totalorder %s12, 4
      %s22 = sphi 0, %s24
      %s25 = sphi 0, %s22
      %s26 = sphi 0, %s25
      %s42 = sphi 0, %s26
      %s46 = sphi 0, %s46
      %s48 = sphi 0, %s46
      %s49 = sphi 0, %s48
      %s63 = sphi 0, %s49
      %s67 = sphi 0, %s67
      %s69 = sphi 0, %s67
      %s70 = sphi 0, %s69
      %s84 = sphi 0, %s70
      %s88 = sphi 0, %s88
      %s90 = sphi 0, %s88
      %s91 = sphi 0, %s90
      %s105 = sphi 0, %s91
      %s111 = sphi 0, %s113
      %s114 = sphi 0, %s111
      %s115 = sphi 0, %s114
      %s131 = sphi 0, %s115
    $region4: #{_forward_impl.1} parent=1 // loop_header_branch
      %15 = sbr.rel (%p13) target = $region8
    $region5: #{_forward_impl.1} parent=1 // loop_body
      %s17 = ssub.s32 %s12, 1
      %s18 = ssub.s32 %s12, 2
      %s19 = sadd.s32 %s12, 1
      %s20 = ssub.s32 %s12, %s19
      %p21 = scmp.eq.s32.totalorder %s20, 0
      %s23 = sadd.s32 %s22, 1
      %s24 = scalar_select %p21, %s22, %s23
      %p27 = pneg %p21
      %p28 = scmp.eq.s32.totalorder %s12, 1
      %p29 = por %p27, %p28
      %p30 = scmp.ne.s32.totalorder %s22, %s25
      %p31 = scmp.eq.s32.totalorder %s12, 0
      %p32 = por %p30, %p31
      %p33 = scmp.ne.s32.totalorder %s22, %s25
      %p34 = scmp.eq.s32.totalorder %s17, 1
      %p35 = por %p33, %p34
      %p36 = scmp.ne.s32.totalorder %s25, %s26
      %p37 = scmp.eq.s32.totalorder %s17, 0
      %p38 = por %p36, %p37
      %p39 = scmp.ne.s32.totalorder %s25, %s26
      %p40 = scmp.eq.s32.totalorder %s18, 1
      %p41 = por %p39, %p40
      %p43 = scmp.ne.s32.totalorder %s26, %s42
      %p44 = scmp.eq.s32.totalorder %s18, 0
      %p45 = por %p43, %p44
      %s47 = sadd.s32 %s46, 1
      %p50 = scmp.eq.s32.totalorder %s12, 1
      %p51 = scmp.ne.s32.totalorder %s46, %s48
      %p52 = scmp.eq.s32.totalorder %s12, 0
      %p53 = por %p51, %p52
      %p54 = scmp.ne.s32.totalorder %s46, %s48
      %p55 = scmp.eq.s32.totalorder %s17, 1
      %p56 = por %p54, %p55
      %p57 = scmp.ne.s32.totalorder %s48, %s49
      %p58 = scmp.eq.s32.totalorder %s17, 0
      %p59 = por %p57, %p58
      %p60 = scmp.ne.s32.totalorder %s48, %s49
      %p61 = scmp.eq.s32.totalorder %s18, 1
      %p62 = por %p60, %p61
      %p64 = scmp.ne.s32.totalorder %s49, %s63
      %p65 = scmp.eq.s32.totalorder %s18, 0
      %p66 = por %p64, %p65
      %s68 = sadd.s32 %s67, 1
      %p71 = scmp.eq.s32.totalorder %s12, 1
      %p72 = scmp.ne.s32.totalorder %s67, %s69
      %p73 = scmp.eq.s32.totalorder %s12, 0
      %p74 = por %p72, %p73
      %p75 = scmp.ne.s32.totalorder %s67, %s69
      %p76 = scmp.eq.s32.totalorder %s17, 1
      %p77 = por %p75, %p76
      %p78 = scmp.ne.s32.totalorder %s69, %s70
      %p79 = scmp.eq.s32.totalorder %s17, 0
      %p80 = por %p78, %p79
      %p81 = scmp.ne.s32.totalorder %s69, %s70
      %p82 = scmp.eq.s32.totalorder %s18, 1
      %p83 = por %p81, %p82
      %p85 = scmp.ne.s32.totalorder %s70, %s84
      %p86 = scmp.eq.s32.totalorder %s18, 0
      %p87 = por %p85, %p86
      %s89 = sadd.s32 %s88, 1
      %p92 = scmp.eq.s32.totalorder %s12, 1
      %p93 = scmp.ne.s32.totalorder %s88, %s90
      %p94 = scmp.eq.s32.totalorder %s12, 0
      %p95 = por %p93, %p94
      %p96 = scmp.ne.s32.totalorder %s88, %s90
      %p97 = scmp.eq.s32.totalorder %s17, 1
      %p98 = por %p96, %p97
      %p99 = scmp.ne.s32.totalorder %s90, %s91
      %p100 = scmp.eq.s32.totalorder %s17, 0
      %p101 = por %p99, %p100
      %p102 = scmp.ne.s32.totalorder %s90, %s91
      %p103 = scmp.eq.s32.totalorder %s18, 1
      %p104 = por %p102, %p103
      %p106 = scmp.ne.s32.totalorder %s91, %s105
      %p107 = scmp.eq.s32.totalorder %s18, 0
      %p108 = por %p106, %p107
      %s109 = ssub.s32 %s12, %s19
      %p110 = scmp.eq.s32.totalorder %s109, 0
      %s112 = sadd.s32 %s111, 1
      %s113 = scalar_select %p110, %s111, %s112
      %p116 = pneg %p110
      %p117 = scmp.eq.s32.totalorder %s12, 1
      %p118 = por %p116, %p117
      %p119 = scmp.ne.s32.totalorder %s111, %s114
      %p120 = scmp.eq.s32.totalorder %s12, 0
      %p121 = por %p119, %p120
      %p122 = scmp.ne.s32.totalorder %s111, %s114
      %p123 = scmp.eq.s32.totalorder %s17, 1
      %p124 = por %p122, %p123
      %p125 = scmp.ne.s32.totalorder %s114, %s115
      %p126 = scmp.eq.s32.totalorder %s17, 0
      %p127 = por %p125, %p126
      %p128 = scmp.ne.s32.totalorder %s114, %s115
      %p129 = scmp.eq.s32.totalorder %s18, 1
      %p130 = por %p128, %p129
      %p132 = scmp.ne.s32.totalorder %s115, %s131
      %p133 = scmp.eq.s32.totalorder %s18, 0
      %p134 = por %p132, %p133
      %p135 = scmp.le.s32.totalorder 1, %s12
      %p136 = scmp.lt.s32.totalorder %s12, 3
      %p137 = pnand %p135, %p136
      %p138 = pneg %p137
      // Predicated region
      $region9: #{_forward_impl.1} parent=5 // pred_check
        _
      $region10: #{_forward_impl.1} parent=5 // pred_check_branch
        %140 = sbr.rel (%p137) target = $region12
      $region11: #{_forward_impl.1} parent=5 // pred_region
        %s141 = ssub.s32 %s12, 1
        // Predicated region
        $region13: #{_forward_impl.1} parent=11 // pred_check
          %p142 = pneg %p59
        $region14: #{_forward_impl.1} parent=11 // pred_check_branch
          %144 = sbr.rel (%p142) target = $region16
        $region15: #{_forward_impl.1} parent=11 // pred_region
          %s146 = ssub.s32 768, 768
          %147 = vsyncadd [#allocation3], %s146
          %s148 = sshll.u32 [#allocation2], 4
          %s149 = int_to_ptr.vmem [resolvable:$true] %s148
          %154 = dma.hbm_to_vmem [thread:$0]  %s1, 768, %s149, [#allocation3], 128, 128, 8
        $region16: #{_forward_impl.1} parent=11 // pred_fallthru
          _
        // Predicated region
        $region17: #{_forward_impl.1} parent=11 // pred_check
          %p155 = pneg %p80
        $region18: #{_forward_impl.1} parent=11 // pred_check_branch
          %157 = sbr.rel (%p155) target = $region20
        $region19: #{_forward_impl.1} parent=11 // pred_region
          %s159 = ssub.s32 61440, 61440
          %160 = vsyncadd [#allocation5], %s159
          %s161 = sshll.u32 [#allocation4], 4
          %s162 = int_to_ptr.vmem [resolvable:$true] %s161
          %167 = dma.hbm_to_vmem [thread:$0]  %s2, 61440, %s162, [#allocation5], 128, 128, 8
        $region20: #{_forward_impl.1} parent=11 // pred_fallthru
          _
        // Predicated region
        $region21: #{_forward_impl.1} parent=11 // pred_check
          %p168 = pneg %p101
        $region22: #{_forward_impl.1} parent=11 // pred_check_branch
          %170 = sbr.rel (%p168) target = $region24
        $region23: #{_forward_impl.1} parent=11 // pred_region
          %s172 = ssub.s32 160, 160
          %173 = vsyncadd [#allocation5], %s172
          %s174 = sshll.u32 [#allocation6], 4
          %s175 = int_to_ptr.vmem [resolvable:$true] %s174
          %180 = dma.hbm_to_vmem [thread:$0]  %s3, 160, %s175, [#allocation5], 16, 16, 1
        $region24: #{_forward_impl.1} parent=11 // pred_fallthru
          _
      $region12: #{_forward_impl.1} parent=5 // pred_fallthru
        _
      %p181 = scmp.lt.s32.totalorder %s12, 2
      // Predicated region
      $region25: #{_forward_impl.1} parent=5 // pred_check
        %p182 = pneg %p181
      $region26: #{_forward_impl.1} parent=5 // pred_check_branch
        %184 = sbr.rel (%p182) target = $region28
      $region27: #{_forward_impl.1} parent=5 // pred_region
        // Predicated region
        $region29: #{_forward_impl.1} parent=27 // pred_check
          %p185 = pneg %p32
        $region30: #{_forward_impl.1} parent=27 // pred_check_branch
          %187 = sbr.rel (%p185) target = $region32
        $region31: #{_forward_impl.1} parent=27 // pred_region
          %p188 = scmp.lt.s32.totalorder %s12, 1
          %s189 = scalar_select %p188, %s12, 1
          %s190 = smul.addr %s189, 2
          %s191 = smul.addr %s190, 8
          %s192 = scalar_lea.vmem %s0, %s191
        $region32: #{_forward_impl.1} parent=27 // pred_fallthru
          _
      $region28: #{_forward_impl.1} parent=5 // pred_fallthru
        _
      %p193 = scmp.le.s32.totalorder 1, %s12
      %p194 = scmp.lt.s32.totalorder %s12, 3
      %p195 = pnand %p193, %p194
      %p196 = pneg %p195
      // Predicated region
      $region33: #{_forward_impl.1} parent=5 // pred_check
        _
      $region34: #{_forward_impl.1} parent=5 // pred_check_branch
        %198 = sbr.rel (%p195) target = $region36
      $region35: #{_forward_impl.1} parent=5 // pred_region
        %s199 = ssub.s32 %s12, 1
        // Predicated region
        $region37: #{_forward_impl.1} parent=35 // pred_check
          %p200 = pneg %p59
        $region38: #{_forward_impl.1} parent=35 // pred_check_branch
          %202 = sbr.rel (%p200) target = $region40
        $region39: #{_forward_impl.1} parent=35 // pred_region
          %203 = dma.done [#allocation3], 768
        $region40: #{_forward_impl.1} parent=35 // pred_fallthru
          _
        // Predicated region
        $region41: #{_forward_impl.1} parent=35 // pred_check
          %p204 = pneg %p80
        $region42: #{_forward_impl.1} parent=35 // pred_check_branch
          %206 = sbr.rel (%p204) target = $region44
        $region43: #{_forward_impl.1} parent=35 // pred_region
          %207 = dma.done [#allocation5], 61440
        $region44: #{_forward_impl.1} parent=35 // pred_fallthru
          _
        // Predicated region
        $region45: #{_forward_impl.1} parent=35 // pred_check
          %p208 = pneg %p101
        $region46: #{_forward_impl.1} parent=35 // pred_check_branch
          %210 = sbr.rel (%p208) target = $region48
        $region47: #{_forward_impl.1} parent=35 // pred_region
          %211 = dma.done [#allocation5], 160
        $region48: #{_forward_impl.1} parent=35 // pred_fallthru
          _
        %p212 = scmp.lt.s32.totalorder %s17, 1
        %s213 = scalar_select %p212, %s17, 1
        %s214 = smul.addr %s213, 2
        %s215 = smul.addr %s214, 8
        %s216 = scalar_lea.vmem %s0, %s215
        %p217 = pneg %p38
        %p218 = pneg %p35
        %p219 = pneg %p59
        %p220 = pneg %p56
        %p221 = pneg %p80
        %p222 = pneg %p77
        %p223 = pneg %p101
        %p224 = pneg %p98
        %p225 = pneg %p127
        %p226 = pneg %p124
        %p227 = scmp.lt.s32.totalorder %s17, 1
        %s228 = scalar_select %p227, %s17, 1
        %s229 = smul.addr %s228, 2
        %s230 = smul.addr %s229, 8
        %s231 = scalar_lea.vmem %s4, %s230
        %p232 = scmp.lt.s32.totalorder %s17, 1
        %s233 = scalar_select %p232, %s17, 1
        %s234 = smul.addr %s233, 2
        %s235 = smul.addr %s234, 8
        %s236 = scalar_lea.vmem %s0, %s235
        %p237 = scmp.lt.s32.totalorder %s17, 1
        %s238 = scalar_select %p237, %s17, 1
        %s239 = smul.addr %s238, 2
        %s240 = smul.addr %s239, 8
        %s241 = scalar_lea.vmem %s4, %s240
        %v242 = vld [vmem:[%s236] sm:$0xff]
        %v243 = vld [vmem:[%s236 + $0x8] sm:$0xff]
        %v244 = vld [vmem:[#allocation2] sm:$0xff]
        %v245 = vld [vmem:[#allocation2 + $0x8] sm:$0xff]
        %vm246 = vcmask 130048
        %v248 = vsel %vm246, %v244, 0
        %v251 = vsel %vm246, %v245, 0
        %253 = vmatprep.subr.mxu0 0.0
        %254 = vmatpush1.msra.mxu0 %v242
        %255 = vmatprep.subr.mxu0 0.0
        %256 = vmatpush1.msra.mxu0 %v243
        %257 = vmatprep.subr.mxu0 0.0
        %258 = vmatpush1.msra.mxu0 0.0
        %259 = vmatprep.subr.mxu0 0.0
        %260 = vmatpush1.msra.mxu0 0.0
        %261 = vmatprep.subr.mxu0 0.0
        %262 = vmatpush1.msra.mxu0 0.0
        %263 = vmatprep.subr.mxu0 0.0
        %264 = vmatpush1.msra.mxu0 0.0
        %265 = vmatprep.subr.mxu0 0.0
        %266 = vmatpush1.msra.mxu0 0.0
        %267 = vmatprep.subr.mxu0 0.0
        %268 = vmatpush1.msra.mxu0 0.0
        %269 = vmatprep.subr.mxu0 0.0
        %270 = vmatpush1.msra.mxu0 0.0
        %271 = vmatprep.subr.mxu0 0.0
        %272 = vmatpush1.msra.mxu0 0.0
        %273 = vmatprep.subr.mxu0 0.0
        %274 = vmatpush1.msra.mxu0 0.0
        %275 = vmatprep.subr.mxu0 0.0
        %276 = vmatpush1.msra.mxu0 0.0
        %277 = vmatprep.subr.mxu0 0.0
        %278 = vmatpush1.msra.mxu0 0.0
        %279 = vmatprep.subr.mxu0 0.0
        %280 = vmatpush1.msra.mxu0 0.0
        %281 = vmatprep.subr.mxu0 0.0
        %282 = vmatpush1.msra.mxu0 0.0
        %283 = vmatprep.subr.mxu0 0.0
        %284 = vmatpush1.msra.mxu0 0.0
        %285 = vmatprep.subr.mxu0 0.0
        %286 = vmatpush1.msra.mxu0 0.0
        %287 = vmatprep.subr.mxu0 0.0
        %288 = vmatpush1.msra.mxu0 0.0
        %289 = vmatprep.subr.mxu0 0.0
        %290 = vmatpush1.msra.mxu0 0.0
        %291 = vmatprep.subr.mxu0 0.0
        %292 = vmatpush1.msra.mxu0 0.0
        %293 = vmatprep.subr.mxu0 0.0
        %294 = vmatpush1.msra.mxu0 0.0
        %295 = vmatprep.subr.mxu0 0.0
        %296 = vmatpush1.msra.mxu0 0.0
        %297 = vmatprep.subr.mxu0 0.0
        %298 = vmatpush1.msra.mxu0 0.0
        %299 = vmatprep.subr.mxu0 0.0
        %300 = vmatpush1.msra.mxu0 0.0
        %301 = vmatprep.subr.mxu0 0.0
        %302 = vmatpush1.msra.mxu0 0.0
        %303 = vmatprep.subr.mxu0 0.0
        %304 = vmatpush1.msra.mxu0 0.0
        %305 = vmatprep.subr.mxu0 0.0
        %306 = vmatpush1.msra.mxu0 0.0
        %307 = vmatprep.subr.mxu0 0.0
        %308 = vmatpush1.msra.mxu0 0.0
        %309 = vmatprep.subr.mxu0 0.0
        %310 = vmatpush1.msra.mxu0 0.0
        %311 = vmatprep.subr.mxu0 0.0
        %312 = vmatpush1.msra.mxu0 0.0
        %313 = vmatprep.subr.mxu0 0.0
        %314 = vmatpush1.msra.mxu0 0.0
        %315 = vmatprep.subr.mxu0 0.0
        %316 = vmatpush1.msra.mxu0 0.0
        %317 = vmatprep.mubr.f32.mxu0 0.0
        %318 = vmatmul.mubr.f32.gmra.mrb[0].mxu0 %v248
        %v319 = vpop.f32.mrb[0].mxu0
        %v320 = vadd.f32 0.0, %v319
        %v321 = vpop.f32.mrb[0].mxu0
        %322 = vmatprep.mubr.f32.mxu0 0.0
        %323 = vmatmul.mubr.f32.gmra.mrb[0].mxu0 %v251
        %v324 = vpop.f32.mrb[0].mxu0
        %v325 = vadd.f32 0.0, %v324
        %v326 = vpop.f32.mrb[0].mxu0
        %327 = vdwg.mxu0
        %s328 = scalar_lea.vmem [#allocation2], 16
        %v329 = vld [vmem:[%s328] sm:$0xff]
        %v330 = vld [vmem:[%s328 + $0x8] sm:$0xff]
        %v332 = vsel %vm246, %v329, 0
        %v335 = vsel %vm246, %v330, 0
        %337 = vmatprep.subr.mxu0 0.0
        %338 = vmatpush1.msra.mxu0 %v242
        %339 = vmatprep.subr.mxu0 0.0
        %340 = vmatpush1.msra.mxu0 %v243
        %341 = vmatprep.subr.mxu0 0.0
        %342 = vmatpush1.msra.mxu0 0.0
        %343 = vmatprep.subr.mxu0 0.0
        %344 = vmatpush1.msra.mxu0 0.0
        %345 = vmatprep.subr.mxu0 0.0
        %346 = vmatpush1.msra.mxu0 0.0
        %347 = vmatprep.subr.mxu0 0.0
        %348 = vmatpush1.msra.mxu0 0.0
        %349 = vmatprep.subr.mxu0 0.0
        %350 = vmatpush1.msra.mxu0 0.0
        %351 = vmatprep.subr.mxu0 0.0
        %352 = vmatpush1.msra.mxu0 0.0
        %353 = vmatprep.subr.mxu0 0.0
        %354 = vmatpush1.msra.mxu0 0.0
        %355 = vmatprep.subr.mxu0 0.0
        %356 = vmatpush1.msra.mxu0 0.0
        %357 = vmatprep.subr.mxu0 0.0
        %358 = vmatpush1.msra.mxu0 0.0
        %359 = vmatprep.subr.mxu0 0.0
        %360 = vmatpush1.msra.mxu0 0.0
        %361 = vmatprep.subr.mxu0 0.0
        %362 = vmatpush1.msra.mxu0 0.0
        %363 = vmatprep.subr.mxu0 0.0
        %364 = vmatpush1.msra.mxu0 0.0
        %365 = vmatprep.subr.mxu0 0.0
        %366 = vmatpush1.msra.mxu0 0.0
        %367 = vmatprep.subr.mxu0 0.0
        %368 = vmatpush1.msra.mxu0 0.0
        %369 = vmatprep.subr.mxu0 0.0
        %370 = vmatpush1.msra.mxu0 0.0
        %371 = vmatprep.subr.mxu0 0.0
        %372 = vmatpush1.msra.mxu0 0.0
        %373 = vmatprep.subr.mxu0 0.0
        %374 = vmatpush1.msra.mxu0 0.0
        %375 = vmatprep.subr.mxu0 0.0
        %376 = vmatpush1.msra.mxu0 0.0
        %377 = vmatprep.subr.mxu0 0.0
        %378 = vmatpush1.msra.mxu0 0.0
        %379 = vmatprep.subr.mxu0 0.0
        %380 = vmatpush1.msra.mxu0 0.0
        %381 = vmatprep.subr.mxu0 0.0
        %382 = vmatpush1.msra.mxu0 0.0
        %383 = vmatprep.subr.mxu0 0.0
        %384 = vmatpush1.msra.mxu0 0.0
        %385 = vmatprep.subr.mxu0 0.0
        %386 = vmatpush1.msra.mxu0 0.0
        %387 = vmatprep.subr.mxu0 0.0
        %388 = vmatpush1.msra.mxu0 0.0
        %389 = vmatprep.subr.mxu0 0.0
        %390 = vmatpush1.msra.mxu0 0.0
        %391 = vmatprep.subr.mxu0 0.0
        %392 = vmatpush1.msra.mxu0 0.0
        %393 = vmatprep.subr.mxu0 0.0
        %394 = vmatpush1.msra.mxu0 0.0
        %395 = vmatprep.subr.mxu0 0.0
        %396 = vmatpush1.msra.mxu0 0.0
        %397 = vmatprep.subr.mxu0 0.0
        %398 = vmatpush1.msra.mxu0 0.0
        %399 = vmatprep.subr.mxu0 0.0
        %400 = vmatpush1.msra.mxu0 0.0
        %401 = vmatprep.mubr.f32.mxu0 0.0
        %402 = vmatmul.mubr.f32.gmra.mrb[0].mxu0 %v332
        %v403 = vpop.f32.mrb[0].mxu0
        %v404 = vadd.f32 0.0, %v403
        %v405 = vpop.f32.mrb[0].mxu0
        %406 = vmatprep.mubr.f32.mxu0 0.0
        %407 = vmatmul.mubr.f32.gmra.mrb[0].mxu0 %v335
        %v408 = vpop.f32.mrb[0].mxu0
        %v409 = vadd.f32 0.0, %v408
        %v410 = vpop.f32.mrb[0].mxu0
        %411 = vdwg.mxu0
        %s412 = scalar_lea.vmem [#allocation2], 32
        %v413 = vld [vmem:[%s412] sm:$0xff]
        %v414 = vld [vmem:[%s412 + $0x8] sm:$0xff]
        %v416 = vsel %vm246, %v413, 0
        %v419 = vsel %vm246, %v414, 0
        %421 = vmatprep.subr.mxu0 0.0
        %422 = vmatpush1.msra.mxu0 %v242
        %423 = vmatprep.subr.mxu0 0.0
        %424 = vmatpush1.msra.mxu0 %v243
        %425 = vmatprep.subr.mxu0 0.0
        %426 = vmatpush1.msra.mxu0 0.0
        %427 = vmatprep.subr.mxu0 0.0
        %428 = vmatpush1.msra.mxu0 0.0
        %429 = vmatprep.subr.mxu0 0.0
        %430 = vmatpush1.msra.mxu0 0.0
        %431 = vmatprep.subr.mxu0 0.0
        %432 = vmatpush1.msra.mxu0 0.0
        %433 = vmatprep.subr.mxu0 0.0
        %434 = vmatpush1.msra.mxu0 0.0
        %435 = vmatprep.subr.mxu0 0.0
        %436 = vmatpush1.msra.mxu0 0.0
        %437 = vmatprep.subr.mxu0 0.0
        %438 = vmatpush1.msra.mxu0 0.0
        %439 = vmatprep.subr.mxu0 0.0
        %440 = vmatpush1.msra.mxu0 0.0
        %441 = vmatprep.subr.mxu0 0.0
        %442 = vmatpush1.msra.mxu0 0.0
        %443 = vmatprep.subr.mxu0 0.0
        %444 = vmatpush1.msra.mxu0 0.0
        %445 = vmatprep.subr.mxu0 0.0
        %446 = vmatpush1.msra.mxu0 0.0
        %447 = vmatprep.subr.mxu0 0.0
        %448 = vmatpush1.msra.mxu0 0.0
        %449 = vmatprep.subr.mxu0 0.0
        %450 = vmatpush1.msra.mxu0 0.0
        %451 = vmatprep.subr.mxu0 0.0
        %452 = vmatpush1.msra.mxu0 0.0
        %453 = vmatprep.subr.mxu0 0.0
        %454 = vmatpush1.msra.mxu0 0.0
        %455 = vmatprep.subr.mxu0 0.0
        %456 = vmatpush1.msra.mxu0 0.0
        %457 = vmatprep.subr.mxu0 0.0
        %458 = vmatpush1.msra.mxu0 0.0
        %459 = vmatprep.subr.mxu0 0.0
        %460 = vmatpush1.msra.mxu0 0.0
        %461 = vmatprep.subr.mxu0 0.0
        %462 = vmatpush1.msra.mxu0 0.0
        %463 = vmatprep.subr.mxu0 0.0
        %464 = vmatpush1.msra.mxu0 0.0
        %465 = vmatprep.subr.mxu0 0.0
        %466 = vmatpush1.msra.mxu0 0.0
        %467 = vmatprep.subr.mxu0 0.0
        %468 = vmatpush1.msra.mxu0 0.0
        %469 = vmatprep.subr.mxu0 0.0
        %470 = vmatpush1.msra.mxu0 0.0
        %471 = vmatprep.subr.mxu0 0.0
        %472 = vmatpush1.msra.mxu0 0.0
        %473 = vmatprep.subr.mxu0 0.0
        %474 = vmatpush1.msra.mxu0 0.0
        %475 = vmatprep.subr.mxu0 0.0
        %476 = vmatpush1.msra.mxu0 0.0
        %477 = vmatprep.subr.mxu0 0.0
        %478 = vmatpush1.msra.mxu0 0.0
        %479 = vmatprep.subr.mxu0 0.0
        %480 = vmatpush1.msra.mxu0 0.0
        %481 = vmatprep.subr.mxu0 0.0
        %482 = vmatpush1.msra.mxu0 0.0
        %483 = vmatprep.subr.mxu0 0.0
        %484 = vmatpush1.msra.mxu0 0.0
        %485 = vmatprep.mubr.f32.mxu0 0.0
        %486 = vmatmul.mubr.f32.gmra.mrb[0].mxu0 %v416
        %v487 = vpop.f32.mrb[0].mxu0
        %v488 = vadd.f32 0.0, %v487
        %v489 = vpop.f32.mrb[0].mxu0
        %490 = vmatprep.mubr.f32.mxu0 0.0
        %491 = vmatmul.mubr.f32.gmra.mrb[0].mxu0 %v419
        %v492 = vpop.f32.mrb[0].mxu0
        %v493 = vadd.f32 0.0, %v492
        %v494 = vpop.f32.mrb[0].mxu0
        %495 = vdwg.mxu0
        %v496 = vld [vmem:[#allocation4] sm:$0xff]
        %v497 = vld [vmem:[#allocation4 + $0x8] sm:$0xff]
        %v498 = vld [vmem:[#allocation4 + $0x10] sm:$0xff]
        %v499 = vld [vmem:[#allocation4 + $0x18] sm:$0xff]
        %v500 = vld [vmem:[#allocation4 + $0x20] sm:$0xff]
        %v501 = vld [vmem:[#allocation4 + $0x28] sm:$0xff]
        %v502 = vld [vmem:[#allocation4 + $0x30] sm:$0xff]
        %v503 = vld [vmem:[#allocation4 + $0x38] sm:$0xff]
        %v504 = vld [vmem:[#allocation4 + $0x40] sm:$0xff]
        %v505 = vld [vmem:[#allocation4 + $0x48] sm:$0xff]
        %v506 = vld [vmem:[#allocation4 + $0x50] sm:$0xff]
        %v507 = vld [vmem:[#allocation4 + $0x58] sm:$0xff]
        %v508 = vld [vmem:[#allocation4 + $0x60] sm:$0xff]
        %v509 = vld [vmem:[#allocation4 + $0x68] sm:$0xff]
        %v510 = vld [vmem:[#allocation4 + $0x70] sm:$0xff]
        %v511 = vld [vmem:[#allocation4 + $0x78] sm:$0xff]
        %v512 = vld [vmem:[#allocation4 + $0x80] sm:$0xff]
        %v513 = vld [vmem:[#allocation4 + $0x88] sm:$0xff]
        %v514 = vld [vmem:[#allocation4 + $0x90] sm:$0xff]
        %v515 = vld [vmem:[#allocation4 + $0x98] sm:$0xff]
        %v516 = vld [vmem:[#allocation4 + $0xa0] sm:$0xff]
        %v517 = vld [vmem:[#allocation4 + $0xa8] sm:$0xff]
        %v518 = vld [vmem:[#allocation4 + $0xb0] sm:$0xff]
        %v519 = vld [vmem:[#allocation4 + $0xb8] sm:$0xff]
        %v520 = vld [vmem:[#allocation4 + $0xc0] sm:$0xff]
        %v521 = vld [vmem:[#allocation4 + $0xc8] sm:$0xff]
        %v522 = vld [vmem:[#allocation4 + $0xd0] sm:$0xff]
        %v523 = vld [vmem:[#allocation4 + $0xd8] sm:$0xff]
        %v524 = vld [vmem:[#allocation4 + $0xe0] sm:$0xff]
        %v525 = vld [vmem:[#allocation4 + $0xe8] sm:$0xff]
        %v526 = vld [vmem:[#allocation4 + $0xf0] sm:$0xff]
        %v527 = vld [vmem:[#allocation4 + $0xf8] sm:$0xff]
        %v528 = vld [vmem:[#allocation4 + $0x100] sm:$0xff]
        %v529 = vld [vmem:[#allocation4 + $0x108] sm:$0xff]
        %v530 = vld [vmem:[#allocation4 + $0x110] sm:$0xff]
        %v531 = vld [vmem:[#allocation4 + $0x118] sm:$0xff]
        %v532 = vld [vmem:[#allocation4 + $0x120] sm:$0xff]
        %v533 = vld [vmem:[#allocation4 + $0x128] sm:$0xff]
        %v534 = vld [vmem:[#allocation4 + $0x130] sm:$0xff]
        %v535 = vld [vmem:[#allocation4 + $0x138] sm:$0xff]
        %v536 = vld [vmem:[#allocation4 + $0x140] sm:$0xff]
        %v537 = vld [vmem:[#allocation4 + $0x148] sm:$0xff]
        %v538 = vld [vmem:[#allocation4 + $0x150] sm:$0xff]
        %v539 = vld [vmem:[#allocation4 + $0x158] sm:$0xff]
        %v540 = vld [vmem:[#allocation4 + $0x160] sm:$0xff]
        %v541 = vld [vmem:[#allocation4 + $0x168] sm:$0xff]
        %v542 = vld [vmem:[#allocation4 + $0x170] sm:$0xff]
        %v543 = vld [vmem:[#allocation4 + $0x178] sm:$0xff]
        %v544 = vld [vmem:[#allocation6] sm:$0x1]
        %v546 = vlaneseq
        %v547 = vshrl.u32 %v546, 7
        %v548 = vsub.s32 0, %v547
        %v549 = vrot.slane %v544, %v548
        %551 = vmatprep.subr.mxu0 0.0
        %552 = vmatpush1.msra.mxu0 %v496
        %553 = vmatprep.subr.mxu0 0.0
        %554 = vmatpush1.msra.mxu0 %v497
        %555 = vmatprep.subr.mxu0 0.0
        %556 = vmatpush1.msra.mxu0 %v498
        %557 = vmatprep.subr.mxu0 0.0
        %558 = vmatpush1.msra.mxu0 %v499
        %559 = vmatprep.subr.mxu0 0.0
        %560 = vmatpush1.msra.mxu0 %v500
        %561 = vmatprep.subr.mxu0 0.0
        %562 = vmatpush1.msra.mxu0 %v501
        %563 = vmatprep.subr.mxu0 0.0
        %564 = vmatpush1.msra.mxu0 %v502
        %565 = vmatprep.subr.mxu0 0.0
        %566 = vmatpush1.msra.mxu0 %v503
        %567 = vmatprep.subr.mxu0 0.0
        %568 = vmatpush1.msra.mxu0 %v504
        %569 = vmatprep.subr.mxu0 0.0
        %570 = vmatpush1.msra.mxu0 %v505
        %571 = vmatprep.subr.mxu0 0.0
        %572 = vmatpush1.msra.mxu0 %v506
        %573 = vmatprep.subr.mxu0 0.0
        %574 = vmatpush1.msra.mxu0 %v507
        %575 = vmatprep.subr.mxu0 0.0
        %576 = vmatpush1.msra.mxu0 %v508
        %577 = vmatprep.subr.mxu0 0.0
        %578 = vmatpush1.msra.mxu0 %v509
        %579 = vmatprep.subr.mxu0 0.0
        %580 = vmatpush1.msra.mxu0 %v510
        %581 = vmatprep.subr.mxu0 0.0
        %582 = vmatpush1.msra.mxu0 %v511
        %583 = vmatprep.subr.mxu0 0.0
        %584 = vmatpush1.msra.mxu0 %v512
        %585 = vmatprep.subr.mxu0 0.0
        %586 = vmatpush1.msra.mxu0 %v513
        %587 = vmatprep.subr.mxu0 0.0
        %588 = vmatpush1.msra.mxu0 %v514
        %589 = vmatprep.subr.mxu0 0.0
        %590 = vmatpush1.msra.mxu0 %v515
        %591 = vmatprep.subr.mxu0 0.0
        %592 = vmatpush1.msra.mxu0 %v516
        %593 = vmatprep.subr.mxu0 0.0
        %594 = vmatpush1.msra.mxu0 %v517
        %595 = vmatprep.subr.mxu0 0.0
        %596 = vmatpush1.msra.mxu0 %v518
        %597 = vmatprep.subr.mxu0 0.0
        %598 = vmatpush1.msra.mxu0 %v519
        %599 = vmatprep.subr.mxu0 0.0
        %600 = vmatpush1.msra.mxu0 %v520
        %601 = vmatprep.subr.mxu0 0.0
        %602 = vmatpush1.msra.mxu0 %v521
        %603 = vmatprep.subr.mxu0 0.0
        %604 = vmatpush1.msra.mxu0 %v522
        %605 = vmatprep.subr.mxu0 0.0
        %606 = vmatpush1.msra.mxu0 %v523
        %607 = vmatprep.subr.mxu0 0.0
        %608 = vmatpush1.msra.mxu0 %v524
        %609 = vmatprep.subr.mxu0 0.0
        %610 = vmatpush1.msra.mxu0 %v525
        %611 = vmatprep.subr.mxu0 0.0
        %612 = vmatpush1.msra.mxu0 %v526
        %613 = vmatprep.subr.mxu0 0.0
        %614 = vmatpush1.msra.mxu0 %v527
        %615 = vmatprep.mubr.f32.mxu0 %v404
        %616 = vmatmul.mubr.f32.gmra.mrb[0].mxu0 %v320
        %v617 = vpop.f32.mrb[0].mxu0
        %v618 = vadd.f32 %v549, %v617
        %v619 = vpop.f32.mrb[0].mxu0
        %620 = vmatprep.mubr.f32.mxu0 %v409
        %621 = vmatmul.mubr.f32.gmra.mrb[0].mxu0 %v325
        %v622 = vpop.f32.mrb[0].mxu0
        %v623 = vadd.f32 %v549, %v622
        %v624 = vpop.f32.mrb[0].mxu0
        %625 = vdwg.mxu0
        %626 = vmatprep.subr.mxu0 0.0
        %627 = vmatpush1.msra.mxu0 %v528
        %628 = vmatprep.subr.mxu0 0.0
        %629 = vmatpush1.msra.mxu0 %v529
        %630 = vmatprep.subr.mxu0 0.0
        %631 = vmatpush1.msra.mxu0 %v530
        %632 = vmatprep.subr.mxu0 0.0
        %633 = vmatpush1.msra.mxu0 %v531
        %634 = vmatprep.subr.mxu0 0.0
        %635 = vmatpush1.msra.mxu0 %v532
        %636 = vmatprep.subr.mxu0 0.0
        %637 = vmatpush1.msra.mxu0 %v533
        %638 = vmatprep.subr.mxu0 0.0
        %639 = vmatpush1.msra.mxu0 %v534
        %640 = vmatprep.subr.mxu0 0.0
        %641 = vmatpush1.msra.mxu0 %v535
        %642 = vmatprep.subr.mxu0 0.0
        %643 = vmatpush1.msra.mxu0 %v536
        %644 = vmatprep.subr.mxu0 0.0
        %645 = vmatpush1.msra.mxu0 %v537
        %646 = vmatprep.subr.mxu0 0.0
        %647 = vmatpush1.msra.mxu0 %v538
        %648 = vmatprep.subr.mxu0 0.0
        %649 = vmatpush1.msra.mxu0 %v539
        %650 = vmatprep.subr.mxu0 0.0
        %651 = vmatpush1.msra.mxu0 %v540
        %652 = vmatprep.subr.mxu0 0.0
        %653 = vmatpush1.msra.mxu0 %v541
        %654 = vmatprep.subr.mxu0 0.0
        %655 = vmatpush1.msra.mxu0 %v542
        %656 = vmatprep.subr.mxu0 0.0
        %657 = vmatpush1.msra.mxu0 %v543
        %658 = vmatprep.subr.mxu0 0.0
        %659 = vmatpush1.msra.mxu0 0.0
        %660 = vmatprep.subr.mxu0 0.0
        %661 = vmatpush1.msra.mxu0 0.0
        %662 = vmatprep.subr.mxu0 0.0
        %663 = vmatpush1.msra.mxu0 0.0
        %664 = vmatprep.subr.mxu0 0.0
        %665 = vmatpush1.msra.mxu0 0.0
        %666 = vmatprep.subr.mxu0 0.0
        %667 = vmatpush1.msra.mxu0 0.0
        %668 = vmatprep.subr.mxu0 0.0
        %669 = vmatpush1.msra.mxu0 0.0
        %670 = vmatprep.subr.mxu0 0.0
        %671 = vmatpush1.msra.mxu0 0.0
        %672 = vmatprep.subr.mxu0 0.0
        %673 = vmatpush1.msra.mxu0 0.0
        %674 = vmatprep.subr.mxu0 0.0
        %675 = vmatpush1.msra.mxu0 0.0
        %676 = vmatprep.subr.mxu0 0.0
        %677 = vmatpush1.msra.mxu0 0.0
        %678 = vmatprep.subr.mxu0 0.0
        %679 = vmatpush1.msra.mxu0 0.0
        %680 = vmatprep.subr.mxu0 0.0
        %681 = vmatpush1.msra.mxu0 0.0
        %682 = vmatprep.subr.mxu0 0.0
        %683 = vmatpush1.msra.mxu0 0.0
        %684 = vmatprep.subr.mxu0 0.0
        %685 = vmatpush1.msra.mxu0 0.0
        %686 = vmatprep.subr.mxu0 0.0
        %687 = vmatpush1.msra.mxu0 0.0
        %688 = vmatprep.subr.mxu0 0.0
        %689 = vmatpush1.msra.mxu0 0.0
        %690 = vmatprep.mubr.f32.mxu0 0.0
        %691 = vmatmul.mubr.f32.gmra.mrb[0].mxu0 %v488
        %v692 = vpop.f32.mrb[0].mxu0
        %v693 = vadd.f32 %v618, %v692
        %v694 = vpop.f32.mrb[0].mxu0
        %695 = vmatprep.mubr.f32.mxu0 0.0
        %696 = vmatmul.mubr.f32.gmra.mrb[0].mxu0 %v493
        %v697 = vpop.f32.mrb[0].mxu0
        %v698 = vadd.f32 %v623, %v697
        %v699 = vpop.f32.mrb[0].mxu0
        %700 = vdwg.mxu0
        %v701 = vmax.f32 %v693, 0.0
        %v702 = vmax.f32 %v698, 0.0
        %703 = vmatprep.subr.mxu0 0.0
        %704 = vmatpush1.msra.mxu0 %v701
        %705 = vmatprep.subr.mxu0 0.0
        %706 = vmatpush1.msra.mxu0 %v702
        %707 = vmatprep.subr.mxu0 0.0
        %708 = vmatpush1.msra.mxu0 0.0
        %709 = vmatprep.subr.mxu0 0.0
        %710 = vmatpush1.msra.mxu0 0.0
        %711 = vmatprep.subr.mxu0 0.0
        %712 = vmatpush1.msra.mxu0 0.0
        %713 = vmatprep.subr.mxu0 0.0
        %714 = vmatpush1.msra.mxu0 0.0
        %715 = vmatprep.subr.mxu0 0.0
        %716 = vmatpush1.msra.mxu0 0.0
        %717 = vmatprep.subr.mxu0 0.0
        %718 = vmatpush1.msra.mxu0 0.0
        %719 = vmatprep.subr.mxu0 0.0
        %720 = vmatpush1.msra.mxu0 0.0
        %721 = vmatprep.subr.mxu0 0.0
        %722 = vmatpush1.msra.mxu0 0.0
        %723 = vmatprep.subr.mxu0 0.0
        %724 = vmatpush1.msra.mxu0 0.0
        %725 = vmatprep.subr.mxu0 0.0
        %726 = vmatpush1.msra.mxu0 0.0
        %727 = vmatprep.subr.mxu0 0.0
        %728 = vmatpush1.msra.mxu0 0.0
        %729 = vmatprep.subr.mxu0 0.0
        %730 = vmatpush1.msra.mxu0 0.0
        %731 = vmatprep.subr.mxu0 0.0
        %732 = vmatpush1.msra.mxu0 0.0
        %733 = vmatprep.subr.mxu0 0.0
        %734 = vmatpush1.msra.mxu0 0.0
        %735 = vmatprep.subr.mxu0 0.0
        %736 = vmatpush1.msra.mxu0 0.0
        %737 = vmatprep.subr.mxu0 0.0
        %738 = vmatpush1.msra.mxu0 0.0
        %739 = vmatprep.subr.mxu0 0.0
        %740 = vmatpush1.msra.mxu0 0.0
        %741 = vmatprep.subr.mxu0 0.0
        %742 = vmatpush1.msra.mxu0 0.0
        %743 = vmatprep.subr.mxu0 0.0
        %744 = vmatpush1.msra.mxu0 0.0
        %745 = vmatprep.subr.mxu0 0.0
        %746 = vmatpush1.msra.mxu0 0.0
        %747 = vmatprep.subr.mxu0 0.0
        %748 = vmatpush1.msra.mxu0 0.0
        %749 = vmatprep.subr.mxu0 0.0
        %750 = vmatpush1.msra.mxu0 0.0
        %751 = vmatprep.subr.mxu0 0.0
        %752 = vmatpush1.msra.mxu0 0.0
        %753 = vmatprep.subr.mxu0 0.0
        %754 = vmatpush1.msra.mxu0 0.0
        %755 = vmatprep.subr.mxu0 0.0
        %756 = vmatpush1.msra.mxu0 0.0
        %757 = vmatprep.subr.mxu0 0.0
        %758 = vmatpush1.msra.mxu0 0.0
        %759 = vmatprep.subr.mxu0 0.0
        %760 = vmatpush1.msra.mxu0 0.0
        %761 = vmatprep.subr.mxu0 0.0
        %762 = vmatpush1.msra.mxu0 0.0
        %763 = vmatprep.subr.mxu0 0.0
        %764 = vmatpush1.msra.mxu0 0.0
        %765 = vmatprep.subr.mxu0 0.0
        %766 = vmatpush1.msra.mxu0 0.0
        %767 = vmatprep.mubr.f32.mxu0 0.0
        %768 = vmatmul.mubr.f32.gmra.mrb[0].mxu0 %v248
        %v769 = vpop.f32.mrb[0].mxu0
        %v770 = vadd.f32 0.0, %v769
        %v771 = vpop.f32.mrb[0].mxu0
        %772 = vmatprep.mubr.f32.mxu0 0.0
        %773 = vmatmul.mubr.f32.gmra.mrb[0].mxu0 %v251
        %v774 = vpop.f32.mrb[0].mxu0
        %v775 = vadd.f32 0.0, %v774
        %v776 = vpop.f32.mrb[0].mxu0
        %777 = vdwg.mxu0
        %778 = vmatprep.subr.mxu0 0.0
        %779 = vmatpush1.msra.mxu0 %v701
        %780 = vmatprep.subr.mxu0 0.0
        %781 = vmatpush1.msra.mxu0 %v702
        %782 = vmatprep.subr.mxu0 0.0
        %783 = vmatpush1.msra.mxu0 0.0
        %784 = vmatprep.subr.mxu0 0.0
        %785 = vmatpush1.msra.mxu0 0.0
        %786 = vmatprep.subr.mxu0 0.0
        %787 = vmatpush1.msra.mxu0 0.0
        %788 = vmatprep.subr.mxu0 0.0
        %789 = vmatpush1.msra.mxu0 0.0
        %790 = vmatprep.subr.mxu0 0.0
        %791 = vmatpush1.msra.mxu0 0.0
        %792 = vmatprep.subr.mxu0 0.0
        %793 = vmatpush1.msra.mxu0 0.0
        %794 = vmatprep.subr.mxu0 0.0
        %795 = vmatpush1.msra.mxu0 0.0
        %796 = vmatprep.subr.mxu0 0.0
        %797 = vmatpush1.msra.mxu0 0.0
        %798 = vmatprep.subr.mxu0 0.0
        %799 = vmatpush1.msra.mxu0 0.0
        %800 = vmatprep.subr.mxu0 0.0
        %801 = vmatpush1.msra.mxu0 0.0
        %802 = vmatprep.subr.mxu0 0.0
        %803 = vmatpush1.msra.mxu0 0.0
        %804 = vmatprep.subr.mxu0 0.0
        %805 = vmatpush1.msra.mxu0 0.0
        %806 = vmatprep.subr.mxu0 0.0
        %807 = vmatpush1.msra.mxu0 0.0
        %808 = vmatprep.subr.mxu0 0.0
        %809 = vmatpush1.msra.mxu0 0.0
        %810 = vmatprep.subr.mxu0 0.0
        %811 = vmatpush1.msra.mxu0 0.0
        %812 = vmatprep.subr.mxu0 0.0
        %813 = vmatpush1.msra.mxu0 0.0
        %814 = vmatprep.subr.mxu0 0.0
        %815 = vmatpush1.msra.mxu0 0.0
        %816 = vmatprep.subr.mxu0 0.0
        %817 = vmatpush1.msra.mxu0 0.0
        %818 = vmatprep.subr.mxu0 0.0
        %819 = vmatpush1.msra.mxu0 0.0
        %820 = vmatprep.subr.mxu0 0.0
        %821 = vmatpush1.msra.mxu0 0.0
        %822 = vmatprep.subr.mxu0 0.0
        %823 = vmatpush1.msra.mxu0 0.0
        %824 = vmatprep.subr.mxu0 0.0
        %825 = vmatpush1.msra.mxu0 0.0
        %826 = vmatprep.subr.mxu0 0.0
        %827 = vmatpush1.msra.mxu0 0.0
        %828 = vmatprep.subr.mxu0 0.0
        %829 = vmatpush1.msra.mxu0 0.0
        %830 = vmatprep.subr.mxu0 0.0
        %831 = vmatpush1.msra.mxu0 0.0
        %832 = vmatprep.subr.mxu0 0.0
        %833 = vmatpush1.msra.mxu0 0.0
        %834 = vmatprep.subr.mxu0 0.0
        %835 = vmatpush1.msra.mxu0 0.0
        %836 = vmatprep.subr.mxu0 0.0
        %837 = vmatpush1.msra.mxu0 0.0
        %838 = vmatprep.subr.mxu0 0.0
        %839 = vmatpush1.msra.mxu0 0.0
        %840 = vmatprep.subr.mxu0 0.0
        %841 = vmatpush1.msra.mxu0 0.0
        %842 = vmatprep.mubr.f32.mxu0 0.0
        %843 = vmatmul.mubr.f32.gmra.mrb[0].mxu0 %v332
        %v844 = vpop.f32.mrb[0].mxu0
        %v845 = vadd.f32 0.0, %v844
        %v846 = vpop.f32.mrb[0].mxu0
        %847 = vmatprep.mubr.f32.mxu0 0.0
        %848 = vmatmul.mubr.f32.gmra.mrb[0].mxu0 %v335
        %v849 = vpop.f32.mrb[0].mxu0
        %v850 = vadd.f32 0.0, %v849
        %v851 = vpop.f32.mrb[0].mxu0
        %852 = vdwg.mxu0
        %853 = vmatprep.subr.mxu0 0.0
        %854 = vmatpush1.msra.mxu0 %v701
        %855 = vmatprep.subr.mxu0 0.0
        %856 = vmatpush1.msra.mxu0 %v702
        %857 = vmatprep.subr.mxu0 0.0
        %858 = vmatpush1.msra.mxu0 0.0
        %859 = vmatprep.subr.mxu0 0.0
        %860 = vmatpush1.msra.mxu0 0.0
        %861 = vmatprep.subr.mxu0 0.0
        %862 = vmatpush1.msra.mxu0 0.0
        %863 = vmatprep.subr.mxu0 0.0
        %864 = vmatpush1.msra.mxu0 0.0
        %865 = vmatprep.subr.mxu0 0.0
        %866 = vmatpush1.msra.mxu0 0.0
        %867 = vmatprep.subr.mxu0 0.0
        %868 = vmatpush1.msra.mxu0 0.0
        %869 = vmatprep.subr.mxu0 0.0
        %870 = vmatpush1.msra.mxu0 0.0
        %871 = vmatprep.subr.mxu0 0.0
        %872 = vmatpush1.msra.mxu0 0.0
        %873 = vmatprep.subr.mxu0 0.0
        %874 = vmatpush1.msra.mxu0 0.0
        %875 = vmatprep.subr.mxu0 0.0
        %876 = vmatpush1.msra.mxu0 0.0
        %877 = vmatprep.subr.mxu0 0.0
        %878 = vmatpush1.msra.mxu0 0.0
        %879 = vmatprep.subr.mxu0 0.0
        %880 = vmatpush1.msra.mxu0 0.0
        %881 = vmatprep.subr.mxu0 0.0
        %882 = vmatpush1.msra.mxu0 0.0
        %883 = vmatprep.subr.mxu0 0.0
        %884 = vmatpush1.msra.mxu0 0.0
        %885 = vmatprep.subr.mxu0 0.0
        %886 = vmatpush1.msra.mxu0 0.0
        %887 = vmatprep.subr.mxu0 0.0
        %888 = vmatpush1.msra.mxu0 0.0
        %889 = vmatprep.subr.mxu0 0.0
        %890 = vmatpush1.msra.mxu0 0.0
        %891 = vmatprep.subr.mxu0 0.0
        %892 = vmatpush1.msra.mxu0 0.0
        %893 = vmatprep.subr.mxu0 0.0
        %894 = vmatpush1.msra.mxu0 0.0
        %895 = vmatprep.subr.mxu0 0.0
        %896 = vmatpush1.msra.mxu0 0.0
        %897 = vmatprep.subr.mxu0 0.0
        %898 = vmatpush1.msra.mxu0 0.0
        %899 = vmatprep.subr.mxu0 0.0
        %900 = vmatpush1.msra.mxu0 0.0
        %901 = vmatprep.subr.mxu0 0.0
        %902 = vmatpush1.msra.mxu0 0.0
        %903 = vmatprep.subr.mxu0 0.0
        %904 = vmatpush1.msra.mxu0 0.0
        %905 = vmatprep.subr.mxu0 0.0
        %906 = vmatpush1.msra.mxu0 0.0
        %907 = vmatprep.subr.mxu0 0.0
        %908 = vmatpush1.msra.mxu0 0.0
        %909 = vmatprep.subr.mxu0 0.0
        %910 = vmatpush1.msra.mxu0 0.0
        %911 = vmatprep.subr.mxu0 0.0
        %912 = vmatpush1.msra.mxu0 0.0
        %913 = vmatprep.subr.mxu0 0.0
        %914 = vmatpush1.msra.mxu0 0.0
        %915 = vmatprep.subr.mxu0 0.0
        %916 = vmatpush1.msra.mxu0 0.0
        %917 = vmatprep.mubr.f32.mxu0 0.0
        %918 = vmatmul.mubr.f32.gmra.mrb[0].mxu0 %v416
        %v919 = vpop.f32.mrb[0].mxu0
        %v920 = vadd.f32 0.0, %v919
        %v921 = vpop.f32.mrb[0].mxu0
        %922 = vmatprep.mubr.f32.mxu0 0.0
        %923 = vmatmul.mubr.f32.gmra.mrb[0].mxu0 %v419
        %v924 = vpop.f32.mrb[0].mxu0
        %v925 = vadd.f32 0.0, %v924
        %v926 = vpop.f32.mrb[0].mxu0
        %927 = vdwg.mxu0
        %s928 = scalar_lea.vmem [#allocation4], 384
        %v929 = vld [vmem:[%s928] sm:$0xff]
        %v930 = vld [vmem:[%s928 + $0x8] sm:$0xff]
        %v931 = vld [vmem:[%s928 + $0x10] sm:$0xff]
        %v932 = vld [vmem:[%s928 + $0x18] sm:$0xff]
        %v933 = vld [vmem:[%s928 + $0x20] sm:$0xff]
        %v934 = vld [vmem:[%s928 + $0x28] sm:$0xff]
        %v935 = vld [vmem:[%s928 + $0x30] sm:$0xff]
        %v936 = vld [vmem:[%s928 + $0x38] sm:$0xff]
        %v937 = vld [vmem:[%s928 + $0x40] sm:$0xff]
        %v938 = vld [vmem:[%s928 + $0x48] sm:$0xff]
        %v939 = vld [vmem:[%s928 + $0x50] sm:$0xff]
        %v940 = vld [vmem:[%s928 + $0x58] sm:$0xff]
        %v941 = vld [vmem:[%s928 + $0x60] sm:$0xff]
        %v942 = vld [vmem:[%s928 + $0x68] sm:$0xff]
        %v943 = vld [vmem:[%s928 + $0x70] sm:$0xff]
        %v944 = vld [vmem:[%s928 + $0x78] sm:$0xff]
        %v945 = vld [vmem:[%s928 + $0x80] sm:$0xff]
        %v946 = vld [vmem:[%s928 + $0x88] sm:$0xff]
        %v947 = vld [vmem:[%s928 + $0x90] sm:$0xff]
        %v948 = vld [vmem:[%s928 + $0x98] sm:$0xff]
        %v949 = vld [vmem:[%s928 + $0xa0] sm:$0xff]
        %v950 = vld [vmem:[%s928 + $0xa8] sm:$0xff]
        %v951 = vld [vmem:[%s928 + $0xb0] sm:$0xff]
        %v952 = vld [vmem:[%s928 + $0xb8] sm:$0xff]
        %v953 = vld [vmem:[%s928 + $0xc0] sm:$0xff]
        %v954 = vld [vmem:[%s928 + $0xc8] sm:$0xff]
        %v955 = vld [vmem:[%s928 + $0xd0] sm:$0xff]
        %v956 = vld [vmem:[%s928 + $0xd8] sm:$0xff]
        %v957 = vld [vmem:[%s928 + $0xe0] sm:$0xff]
        %v958 = vld [vmem:[%s928 + $0xe8] sm:$0xff]
        %v959 = vld [vmem:[%s928 + $0xf0] sm:$0xff]
        %v960 = vld [vmem:[%s928 + $0xf8] sm:$0xff]
        %v961 = vld [vmem:[%s928 + $0x100] sm:$0xff]
        %v962 = vld [vmem:[%s928 + $0x108] sm:$0xff]
        %v963 = vld [vmem:[%s928 + $0x110] sm:$0xff]
        %v964 = vld [vmem:[%s928 + $0x118] sm:$0xff]
        %v965 = vld [vmem:[%s928 + $0x120] sm:$0xff]
        %v966 = vld [vmem:[%s928 + $0x128] sm:$0xff]
        %v967 = vld [vmem:[%s928 + $0x130] sm:$0xff]
        %v968 = vld [vmem:[%s928 + $0x138] sm:$0xff]
        %v969 = vld [vmem:[%s928 + $0x140] sm:$0xff]
        %v970 = vld [vmem:[%s928 + $0x148] sm:$0xff]
        %v971 = vld [vmem:[%s928 + $0x150] sm:$0xff]
        %v972 = vld [vmem:[%s928 + $0x158] sm:$0xff]
        %v973 = vld [vmem:[%s928 + $0x160] sm:$0xff]
        %v974 = vld [vmem:[%s928 + $0x168] sm:$0xff]
        %v975 = vld [vmem:[%s928 + $0x170] sm:$0xff]
        %v976 = vld [vmem:[%s928 + $0x178] sm:$0xff]
        %s977 = scalar_lea.vmem [#allocation6], 1
        %v978 = vld [vmem:[%s977] sm:$0x1]
        %v980 = vlaneseq
        %v981 = vshrl.u32 %v980, 7
        %v982 = vsub.s32 0, %v981
        %v983 = vrot.slane %v978, %v982
        %985 = vmatprep.subr.mxu0 0.0
        %986 = vmatpush1.msra.mxu0 %v929
        %987 = vmatprep.subr.mxu0 0.0
        %988 = vmatpush1.msra.mxu0 %v930
        %989 = vmatprep.subr.mxu0 0.0
        %990 = vmatpush1.msra.mxu0 %v931
        %991 = vmatprep.subr.mxu0 0.0
        %992 = vmatpush1.msra.mxu0 %v932
        %993 = vmatprep.subr.mxu0 0.0
        %994 = vmatpush1.msra.mxu0 %v933
        %995 = vmatprep.subr.mxu0 0.0
        %996 = vmatpush1.msra.mxu0 %v934
        %997 = vmatprep.subr.mxu0 0.0
        %998 = vmatpush1.msra.mxu0 %v935
        %999 = vmatprep.subr.mxu0 0.0
        %1000 = vmatpush1.msra.mxu0 %v936
        %1001 = vmatprep.subr.mxu0 0.0
        %1002 = vmatpush1.msra.mxu0 %v937
        %1003 = vmatprep.subr.mxu0 0.0
        %1004 = vmatpush1.msra.mxu0 %v938
        %1005 = vmatprep.subr.mxu0 0.0
        %1006 = vmatpush1.msra.mxu0 %v939
        %1007 = vmatprep.subr.mxu0 0.0
        %1008 = vmatpush1.msra.mxu0 %v940
        %1009 = vmatprep.subr.mxu0 0.0
        %1010 = vmatpush1.msra.mxu0 %v941
        %1011 = vmatprep.subr.mxu0 0.0
        %1012 = vmatpush1.msra.mxu0 %v942
        %1013 = vmatprep.subr.mxu0 0.0
        %1014 = vmatpush1.msra.mxu0 %v943
        %1015 = vmatprep.subr.mxu0 0.0
        %1016 = vmatpush1.msra.mxu0 %v944
        %1017 = vmatprep.subr.mxu0 0.0
        %1018 = vmatpush1.msra.mxu0 %v945
        %1019 = vmatprep.subr.mxu0 0.0
        %1020 = vmatpush1.msra.mxu0 %v946
        %1021 = vmatprep.subr.mxu0 0.0
        %1022 = vmatpush1.msra.mxu0 %v947
        %1023 = vmatprep.subr.mxu0 0.0
        %1024 = vmatpush1.msra.mxu0 %v948
        %1025 = vmatprep.subr.mxu0 0.0
        %1026 = vmatpush1.msra.mxu0 %v949
        %1027 = vmatprep.subr.mxu0 0.0
        %1028 = vmatpush1.msra.mxu0 %v950
        %1029 = vmatprep.subr.mxu0 0.0
        %1030 = vmatpush1.msra.mxu0 %v951
        %1031 = vmatprep.subr.mxu0 0.0
        %1032 = vmatpush1.msra.mxu0 %v952
        %1033 = vmatprep.subr.mxu0 0.0
        %1034 = vmatpush1.msra.mxu0 %v953
        %1035 = vmatprep.subr.mxu0 0.0
        %1036 = vmatpush1.msra.mxu0 %v954
        %1037 = vmatprep.subr.mxu0 0.0
        %1038 = vmatpush1.msra.mxu0 %v955
        %1039 = vmatprep.subr.mxu0 0.0
        %1040 = vmatpush1.msra.mxu0 %v956
        %1041 = vmatprep.subr.mxu0 0.0
        %1042 = vmatpush1.msra.mxu0 %v957
        %1043 = vmatprep.subr.mxu0 0.0
        %1044 = vmatpush1.msra.mxu0 %v958
        %1045 = vmatprep.subr.mxu0 0.0
        %1046 = vmatpush1.msra.mxu0 %v959
        %1047 = vmatprep.subr.mxu0 0.0
        %1048 = vmatpush1.msra.mxu0 %v960
        %1049 = vmatprep.mubr.f32.mxu0 %v845
        %1050 = vmatmul.mubr.f32.gmra.mrb[0].mxu0 %v770
        %v1051 = vpop.f32.mrb[0].mxu0
        %v1052 = vadd.f32 %v983, %v1051
        %v1053 = vpop.f32.mrb[0].mxu0
        %1054 = vmatprep.mubr.f32.mxu0 %v850
        %1055 = vmatmul.mubr.f32.gmra.mrb[0].mxu0 %v775
        %v1056 = vpop.f32.mrb[0].mxu0
        %v1057 = vadd.f32 %v983, %v1056
        %v1058 = vpop.f32.mrb[0].mxu0
        %1059 = vdwg.mxu0
        %1060 = vmatprep.subr.mxu0 0.0
        %1061 = vmatpush1.msra.mxu0 %v961
        %1062 = vmatprep.subr.mxu0 0.0
        %1063 = vmatpush1.msra.mxu0 %v962
        %1064 = vmatprep.subr.mxu0 0.0
        %1065 = vmatpush1.msra.mxu0 %v963
        %1066 = vmatprep.subr.mxu0 0.0
        %1067 = vmatpush1.msra.mxu0 %v964
        %1068 = vmatprep.subr.mxu0 0.0
        %1069 = vmatpush1.msra.mxu0 %v965
        %1070 = vmatprep.subr.mxu0 0.0
        %1071 = vmatpush1.msra.mxu0 %v966
        %1072 = vmatprep.subr.mxu0 0.0
        %1073 = vmatpush1.msra.mxu0 %v967
        %1074 = vmatprep.subr.mxu0 0.0
        %1075 = vmatpush1.msra.mxu0 %v968
        %1076 = vmatprep.subr.mxu0 0.0
        %1077 = vmatpush1.msra.mxu0 %v969
        %1078 = vmatprep.subr.mxu0 0.0
        %1079 = vmatpush1.msra.mxu0 %v970
        %1080 = vmatprep.subr.mxu0 0.0
        %1081 = vmatpush1.msra.mxu0 %v971
        %1082 = vmatprep.subr.mxu0 0.0
        %1083 = vmatpush1.msra.mxu0 %v972
        %1084 = vmatprep.subr.mxu0 0.0
        %1085 = vmatpush1.msra.mxu0 %v973
        %1086 = vmatprep.subr.mxu0 0.0
        %1087 = vmatpush1.msra.mxu0 %v974
        %1088 = vmatprep.subr.mxu0 0.0
        %1089 = vmatpush1.msra.mxu0 %v975
        %1090 = vmatprep.subr.mxu0 0.0
        %1091 = vmatpush1.msra.mxu0 %v976
        %1092 = vmatprep.subr.mxu0 0.0
        %1093 = vmatpush1.msra.mxu0 0.0
        %1094 = vmatprep.subr.mxu0 0.0
        %1095 = vmatpush1.msra.mxu0 0.0
        %1096 = vmatprep.subr.mxu0 0.0
        %1097 = vmatpush1.msra.mxu0 0.0
        %1098 = vmatprep.subr.mxu0 0.0
        %1099 = vmatpush1.msra.mxu0 0.0
        %1100 = vmatprep.subr.mxu0 0.0
        %1101 = vmatpush1.msra.mxu0 0.0
        %1102 = vmatprep.subr.mxu0 0.0
        %1103 = vmatpush1.msra.mxu0 0.0
        %1104 = vmatprep.subr.mxu0 0.0
        %1105 = vmatpush1.msra.mxu0 0.0
        %1106 = vmatprep.subr.mxu0 0.0
        %1107 = vmatpush1.msra.mxu0 0.0
        %1108 = vmatprep.subr.mxu0 0.0
        %1109 = vmatpush1.msra.mxu0 0.0
        %1110 = vmatprep.subr.mxu0 0.0
        %1111 = vmatpush1.msra.mxu0 0.0
        %1112 = vmatprep.subr.mxu0 0.0
        %1113 = vmatpush1.msra.mxu0 0.0
        %1114 = vmatprep.subr.mxu0 0.0
        %1115 = vmatpush1.msra.mxu0 0.0
        %1116 = vmatprep.subr.mxu0 0.0
        %1117 = vmatpush1.msra.mxu0 0.0
        %1118 = vmatprep.subr.mxu0 0.0
        %1119 = vmatpush1.msra.mxu0 0.0
        %1120 = vmatprep.subr.mxu0 0.0
        %1121 = vmatpush1.msra.mxu0 0.0
        %1122 = vmatprep.subr.mxu0 0.0
        %1123 = vmatpush1.msra.mxu0 0.0
        %1124 = vmatprep.mubr.f32.mxu0 0.0
        %1125 = vmatmul.mubr.f32.gmra.mrb[0].mxu0 %v920
        %v1126 = vpop.f32.mrb[0].mxu0
        %v1127 = vadd.f32 %v1052, %v1126
        %v1128 = vpop.f32.mrb[0].mxu0
        %1129 = vmatprep.mubr.f32.mxu0 0.0
        %1130 = vmatmul.mubr.f32.gmra.mrb[0].mxu0 %v925
        %v1131 = vpop.f32.mrb[0].mxu0
        %v1132 = vadd.f32 %v1057, %v1131
        %v1133 = vpop.f32.mrb[0].mxu0
        %1134 = vdwg.mxu0
        %v1135 = vmax.f32 %v1127, 0.0
        %v1136 = vmax.f32 %v1132, 0.0
        %1137 = vmatprep.subr.mxu0 0.0
        %1138 = vmatpush1.msra.mxu0 %v1135
        %1139 = vmatprep.subr.mxu0 0.0
        %1140 = vmatpush1.msra.mxu0 %v1136
        %1141 = vmatprep.subr.mxu0 0.0
        %1142 = vmatpush1.msra.mxu0 0.0
        %1143 = vmatprep.subr.mxu0 0.0
        %1144 = vmatpush1.msra.mxu0 0.0
        %1145 = vmatprep.subr.mxu0 0.0
        %1146 = vmatpush1.msra.mxu0 0.0
        %1147 = vmatprep.subr.mxu0 0.0
        %1148 = vmatpush1.msra.mxu0 0.0
        %1149 = vmatprep.subr.mxu0 0.0
        %1150 = vmatpush1.msra.mxu0 0.0
        %1151 = vmatprep.subr.mxu0 0.0
        %1152 = vmatpush1.msra.mxu0 0.0
        %1153 = vmatprep.subr.mxu0 0.0
        %1154 = vmatpush1.msra.mxu0 0.0
        %1155 = vmatprep.subr.mxu0 0.0
        %1156 = vmatpush1.msra.mxu0 0.0
        %1157 = vmatprep.subr.mxu0 0.0
        %1158 = vmatpush1.msra.mxu0 0.0
        %1159 = vmatprep.subr.mxu0 0.0
        %1160 = vmatpush1.msra.mxu0 0.0
        %1161 = vmatprep.subr.mxu0 0.0
        %1162 = vmatpush1.msra.mxu0 0.0
        %1163 = vmatprep.subr.mxu0 0.0
        %1164 = vmatpush1.msra.mxu0 0.0
        %1165 = vmatprep.subr.mxu0 0.0
        %1166 = vmatpush1.msra.mxu0 0.0
        %1167 = vmatprep.subr.mxu0 0.0
        %1168 = vmatpush1.msra.mxu0 0.0
        %1169 = vmatprep.subr.mxu0 0.0
        %1170 = vmatpush1.msra.mxu0 0.0
        %1171 = vmatprep.subr.mxu0 0.0
        %1172 = vmatpush1.msra.mxu0 0.0
        %1173 = vmatprep.subr.mxu0 0.0
        %1174 = vmatpush1.msra.mxu0 0.0
        %1175 = vmatprep.subr.mxu0 0.0
        %1176 = vmatpush1.msra.mxu0 0.0
        %1177 = vmatprep.subr.mxu0 0.0
        %1178 = vmatpush1.msra.mxu0 0.0
        %1179 = vmatprep.subr.mxu0 0.0
        %1180 = vmatpush1.msra.mxu0 0.0
        %1181 = vmatprep.subr.mxu0 0.0
        %1182 = vmatpush1.msra.mxu0 0.0
        %1183 = vmatprep.subr.mxu0 0.0
        %1184 = vmatpush1.msra.mxu0 0.0
        %1185 = vmatprep.subr.mxu0 0.0
        %1186 = vmatpush1.msra.mxu0 0.0
        %1187 = vmatprep.subr.mxu0 0.0
        %1188 = vmatpush1.msra.mxu0 0.0
        %1189 = vmatprep.subr.mxu0 0.0
        %1190 = vmatpush1.msra.mxu0 0.0
        %1191 = vmatprep.subr.mxu0 0.0
        %1192 = vmatpush1.msra.mxu0 0.0
        %1193 = vmatprep.subr.mxu0 0.0
        %1194 = vmatpush1.msra.mxu0 0.0
        %1195 = vmatprep.subr.mxu0 0.0
        %1196 = vmatpush1.msra.mxu0 0.0
        %1197 = vmatprep.subr.mxu0 0.0
        %1198 = vmatpush1.msra.mxu0 0.0
        %1199 = vmatprep.subr.mxu0 0.0
        %1200 = vmatpush1.msra.mxu0 0.0
        %1201 = vmatprep.mubr.f32.mxu0 0.0
        %1202 = vmatmul.mubr.f32.gmra.mrb[0].mxu0 %v248
        %v1203 = vpop.f32.mrb[0].mxu0
        %v1204 = vadd.f32 0.0, %v1203
        %v1205 = vpop.f32.mrb[0].mxu0
        %1206 = vmatprep.mubr.f32.mxu0 0.0
        %1207 = vmatmul.mubr.f32.gmra.mrb[0].mxu0 %v251
        %v1208 = vpop.f32.mrb[0].mxu0
        %v1209 = vadd.f32 0.0, %v1208
        %v1210 = vpop.f32.mrb[0].mxu0
        %1211 = vdwg.mxu0
        %1212 = vmatprep.subr.mxu0 0.0
        %1213 = vmatpush1.msra.mxu0 %v1135
        %1214 = vmatprep.subr.mxu0 0.0
        %1215 = vmatpush1.msra.mxu0 %v1136
        %1216 = vmatprep.subr.mxu0 0.0
        %1217 = vmatpush1.msra.mxu0 0.0
        %1218 = vmatprep.subr.mxu0 0.0
        %1219 = vmatpush1.msra.mxu0 0.0
        %1220 = vmatprep.subr.mxu0 0.0
        %1221 = vmatpush1.msra.mxu0 0.0
        %1222 = vmatprep.subr.mxu0 0.0
        %1223 = vmatpush1.msra.mxu0 0.0
        %1224 = vmatprep.subr.mxu0 0.0
        %1225 = vmatpush1.msra.mxu0 0.0
        %1226 = vmatprep.subr.mxu0 0.0
        %1227 = vmatpush1.msra.mxu0 0.0
        %1228 = vmatprep.subr.mxu0 0.0
        %1229 = vmatpush1.msra.mxu0 0.0
        %1230 = vmatprep.subr.mxu0 0.0
        %1231 = vmatpush1.msra.mxu0 0.0
        %1232 = vmatprep.subr.mxu0 0.0
        %1233 = vmatpush1.msra.mxu0 0.0
        %1234 = vmatprep.subr.mxu0 0.0
        %1235 = vmatpush1.msra.mxu0 0.0
        %1236 = vmatprep.subr.mxu0 0.0
        %1237 = vmatpush1.msra.mxu0 0.0
        %1238 = vmatprep.subr.mxu0 0.0
        %1239 = vmatpush1.msra.mxu0 0.0
        %1240 = vmatprep.subr.mxu0 0.0
        %1241 = vmatpush1.msra.mxu0 0.0
        %1242 = vmatprep.subr.mxu0 0.0
        %1243 = vmatpush1.msra.mxu0 0.0
        %1244 = vmatprep.subr.mxu0 0.0
        %1245 = vmatpush1.msra.mxu0 0.0
        %1246 = vmatprep.subr.mxu0 0.0
        %1247 = vmatpush1.msra.mxu0 0.0
        %1248 = vmatprep.subr.mxu0 0.0
        %1249 = vmatpush1.msra.mxu0 0.0
        %1250 = vmatprep.subr.mxu0 0.0
        %1251 = vmatpush1.msra.mxu0 0.0
        %1252 = vmatprep.subr.mxu0 0.0
        %1253 = vmatpush1.msra.mxu0 0.0
        %1254 = vmatprep.subr.mxu0 0.0
        %1255 = vmatpush1.msra.mxu0 0.0
        %1256 = vmatprep.subr.mxu0 0.0
        %1257 = vmatpush1.msra.mxu0 0.0
        %1258 = vmatprep.subr.mxu0 0.0
        %1259 = vmatpush1.msra.mxu0 0.0
        %1260 = vmatprep.subr.mxu0 0.0
        %1261 = vmatpush1.msra.mxu0 0.0
        %1262 = vmatprep.subr.mxu0 0.0
        %1263 = vmatpush1.msra.mxu0 0.0
        %1264 = vmatprep.subr.mxu0 0.0
        %1265 = vmatpush1.msra.mxu0 0.0
        %1266 = vmatprep.subr.mxu0 0.0
        %1267 = vmatpush1.msra.mxu0 0.0
        %1268 = vmatprep.subr.mxu0 0.0
        %1269 = vmatpush1.msra.mxu0 0.0
        %1270 = vmatprep.subr.mxu0 0.0
        %1271 = vmatpush1.msra.mxu0 0.0
        %1272 = vmatprep.subr.mxu0 0.0
        %1273 = vmatpush1.msra.mxu0 0.0
        %1274 = vmatprep.subr.mxu0 0.0
        %1275 = vmatpush1.msra.mxu0 0.0
        %1276 = vmatprep.mubr.f32.mxu0 0.0
        %1277 = vmatmul.mubr.f32.gmra.mrb[0].mxu0 %v332
        %v1278 = vpop.f32.mrb[0].mxu0
        %v1279 = vadd.f32 0.0, %v1278
        %v1280 = vpop.f32.mrb[0].mxu0
        %1281 = vmatprep.mubr.f32.mxu0 0.0
        %1282 = vmatmul.mubr.f32.gmra.mrb[0].mxu0 %v335
        %v1283 = vpop.f32.mrb[0].mxu0
        %v1284 = vadd.f32 0.0, %v1283
        %v1285 = vpop.f32.mrb[0].mxu0
        %1286 = vdwg.mxu0
        %1287 = vmatprep.subr.mxu0 0.0
        %1288 = vmatpush1.msra.mxu0 %v1135
        %1289 = vmatprep.subr.mxu0 0.0
        %1290 = vmatpush1.msra.mxu0 %v1136
        %1291 = vmatprep.subr.mxu0 0.0
        %1292 = vmatpush1.msra.mxu0 0.0
        %1293 = vmatprep.subr.mxu0 0.0
        %1294 = vmatpush1.msra.mxu0 0.0
        %1295 = vmatprep.subr.mxu0 0.0
        %1296 = vmatpush1.msra.mxu0 0.0
        %1297 = vmatprep.subr.mxu0 0.0
        %1298 = vmatpush1.msra.mxu0 0.0
        %1299 = vmatprep.subr.mxu0 0.0
        %1300 = vmatpush1.msra.mxu0 0.0
        %1301 = vmatprep.subr.mxu0 0.0
        %1302 = vmatpush1.msra.mxu0 0.0
        %1303 = vmatprep.subr.mxu0 0.0
        %1304 = vmatpush1.msra.mxu0 0.0
        %1305 = vmatprep.subr.mxu0 0.0
        %1306 = vmatpush1.msra.mxu0 0.0
        %1307 = vmatprep.subr.mxu0 0.0
        %1308 = vmatpush1.msra.mxu0 0.0
        %1309 = vmatprep.subr.mxu0 0.0
        %1310 = vmatpush1.msra.mxu0 0.0
        %1311 = vmatprep.subr.mxu0 0.0
        %1312 = vmatpush1.msra.mxu0 0.0
        %1313 = vmatprep.subr.mxu0 0.0
        %1314 = vmatpush1.msra.mxu0 0.0
        %1315 = vmatprep.subr.mxu0 0.0
        %1316 = vmatpush1.msra.mxu0 0.0
        %1317 = vmatprep.subr.mxu0 0.0
        %1318 = vmatpush1.msra.mxu0 0.0
        %1319 = vmatprep.subr.mxu0 0.0
        %1320 = vmatpush1.msra.mxu0 0.0
        %1321 = vmatprep.subr.mxu0 0.0
        %1322 = vmatpush1.msra.mxu0 0.0
        %1323 = vmatprep.subr.mxu0 0.0
        %1324 = vmatpush1.msra.mxu0 0.0
        %1325 = vmatprep.subr.mxu0 0.0
        %1326 = vmatpush1.msra.mxu0 0.0
        %1327 = vmatprep.subr.mxu0 0.0
        %1328 = vmatpush1.msra.mxu0 0.0
        %1329 = vmatprep.subr.mxu0 0.0
        %1330 = vmatpush1.msra.mxu0 0.0
        %1331 = vmatprep.subr.mxu0 0.0
        %1332 = vmatpush1.msra.mxu0 0.0
        %1333 = vmatprep.subr.mxu0 0.0
        %1334 = vmatpush1.msra.mxu0 0.0
        %1335 = vmatprep.subr.mxu0 0.0
        %1336 = vmatpush1.msra.mxu0 0.0
        %1337 = vmatprep.subr.mxu0 0.0
        %1338 = vmatpush1.msra.mxu0 0.0
        %1339 = vmatprep.subr.mxu0 0.0
        %1340 = vmatpush1.msra.mxu0 0.0
        %1341 = vmatprep.subr.mxu0 0.0
        %1342 = vmatpush1.msra.mxu0 0.0
        %1343 = vmatprep.subr.mxu0 0.0
        %1344 = vmatpush1.msra.mxu0 0.0
        %1345 = vmatprep.subr.mxu0 0.0
        %1346 = vmatpush1.msra.mxu0 0.0
        %1347 = vmatprep.subr.mxu0 0.0
        %1348 = vmatpush1.msra.mxu0 0.0
        %1349 = vmatprep.subr.mxu0 0.0
        %1350 = vmatpush1.msra.mxu0 0.0
        %1351 = vmatprep.mubr.f32.mxu0 0.0
        %1352 = vmatmul.mubr.f32.gmra.mrb[0].mxu0 %v416
        %v1353 = vpop.f32.mrb[0].mxu0
        %v1354 = vadd.f32 0.0, %v1353
        %v1355 = vpop.f32.mrb[0].mxu0
        %1356 = vmatprep.mubr.f32.mxu0 0.0
        %1357 = vmatmul.mubr.f32.gmra.mrb[0].mxu0 %v419
        %v1358 = vpop.f32.mrb[0].mxu0
        %v1359 = vadd.f32 0.0, %v1358
        %v1360 = vpop.f32.mrb[0].mxu0
        %1361 = vdwg.mxu0
        %s1362 = scalar_lea.vmem [#allocation4], 768
        %v1363 = vld [vmem:[%s1362] sm:$0xff]
        %v1364 = vld [vmem:[%s1362 + $0x8] sm:$0xff]
        %v1365 = vld [vmem:[%s1362 + $0x10] sm:$0xff]
        %v1366 = vld [vmem:[%s1362 + $0x18] sm:$0xff]
        %v1367 = vld [vmem:[%s1362 + $0x20] sm:$0xff]
        %v1368 = vld [vmem:[%s1362 + $0x28] sm:$0xff]
        %v1369 = vld [vmem:[%s1362 + $0x30] sm:$0xff]
        %v1370 = vld [vmem:[%s1362 + $0x38] sm:$0xff]
        %v1371 = vld [vmem:[%s1362 + $0x40] sm:$0xff]
        %v1372 = vld [vmem:[%s1362 + $0x48] sm:$0xff]
        %v1373 = vld [vmem:[%s1362 + $0x50] sm:$0xff]
        %v1374 = vld [vmem:[%s1362 + $0x58] sm:$0xff]
        %v1375 = vld [vmem:[%s1362 + $0x60] sm:$0xff]
        %v1376 = vld [vmem:[%s1362 + $0x68] sm:$0xff]
        %v1377 = vld [vmem:[%s1362 + $0x70] sm:$0xff]
        %v1378 = vld [vmem:[%s1362 + $0x78] sm:$0xff]
        %v1379 = vld [vmem:[%s1362 + $0x80] sm:$0xff]
        %v1380 = vld [vmem:[%s1362 + $0x88] sm:$0xff]
        %v1381 = vld [vmem:[%s1362 + $0x90] sm:$0xff]
        %v1382 = vld [vmem:[%s1362 + $0x98] sm:$0xff]
        %v1383 = vld [vmem:[%s1362 + $0xa0] sm:$0xff]
        %v1384 = vld [vmem:[%s1362 + $0xa8] sm:$0xff]
        %v1385 = vld [vmem:[%s1362 + $0xb0] sm:$0xff]
        %v1386 = vld [vmem:[%s1362 + $0xb8] sm:$0xff]
        %v1387 = vld [vmem:[%s1362 + $0xc0] sm:$0xff]
        %v1388 = vld [vmem:[%s1362 + $0xc8] sm:$0xff]
        %v1389 = vld [vmem:[%s1362 + $0xd0] sm:$0xff]
        %v1390 = vld [vmem:[%s1362 + $0xd8] sm:$0xff]
        %v1391 = vld [vmem:[%s1362 + $0xe0] sm:$0xff]
        %v1392 = vld [vmem:[%s1362 + $0xe8] sm:$0xff]
        %v1393 = vld [vmem:[%s1362 + $0xf0] sm:$0xff]
        %v1394 = vld [vmem:[%s1362 + $0xf8] sm:$0xff]
        %v1395 = vld [vmem:[%s1362 + $0x100] sm:$0xff]
        %v1396 = vld [vmem:[%s1362 + $0x108] sm:$0xff]
        %v1397 = vld [vmem:[%s1362 + $0x110] sm:$0xff]
        %v1398 = vld [vmem:[%s1362 + $0x118] sm:$0xff]
        %v1399 = vld [vmem:[%s1362 + $0x120] sm:$0xff]
        %v1400 = vld [vmem:[%s1362 + $0x128] sm:$0xff]
        %v1401 = vld [vmem:[%s1362 + $0x130] sm:$0xff]
        %v1402 = vld [vmem:[%s1362 + $0x138] sm:$0xff]
        %v1403 = vld [vmem:[%s1362 + $0x140] sm:$0xff]
        %v1404 = vld [vmem:[%s1362 + $0x148] sm:$0xff]
        %v1405 = vld [vmem:[%s1362 + $0x150] sm:$0xff]
        %v1406 = vld [vmem:[%s1362 + $0x158] sm:$0xff]
        %v1407 = vld [vmem:[%s1362 + $0x160] sm:$0xff]
        %v1408 = vld [vmem:[%s1362 + $0x168] sm:$0xff]
        %v1409 = vld [vmem:[%s1362 + $0x170] sm:$0xff]
        %v1410 = vld [vmem:[%s1362 + $0x178] sm:$0xff]
        %s1411 = scalar_lea.vmem [#allocation6], 2
        %v1412 = vld [vmem:[%s1411] sm:$0x1]
        %v1414 = vlaneseq
        %v1415 = vshrl.u32 %v1414, 7
        %v1416 = vsub.s32 0, %v1415
        %v1417 = vrot.slane %v1412, %v1416
        %1419 = vmatprep.subr.mxu0 0.0
        %1420 = vmatpush1.msra.mxu0 %v1363
        %1421 = vmatprep.subr.mxu0 0.0
        %1422 = vmatpush1.msra.mxu0 %v1364
        %1423 = vmatprep.subr.mxu0 0.0
        %1424 = vmatpush1.msra.mxu0 %v1365
        %1425 = vmatprep.subr.mxu0 0.0
        %1426 = vmatpush1.msra.mxu0 %v1366
        %1427 = vmatprep.subr.mxu0 0.0
        %1428 = vmatpush1.msra.mxu0 %v1367
        %1429 = vmatprep.subr.mxu0 0.0
        %1430 = vmatpush1.msra.mxu0 %v1368
        %1431 = vmatprep.subr.mxu0 0.0
        %1432 = vmatpush1.msra.mxu0 %v1369
        %1433 = vmatprep.subr.mxu0 0.0
        %1434 = vmatpush1.msra.mxu0 %v1370
        %1435 = vmatprep.subr.mxu0 0.0
        %1436 = vmatpush1.msra.mxu0 %v1371
        %1437 = vmatprep.subr.mxu0 0.0
        %1438 = vmatpush1.msra.mxu0 %v1372
        %1439 = vmatprep.subr.mxu0 0.0
        %1440 = vmatpush1.msra.mxu0 %v1373
        %1441 = vmatprep.subr.mxu0 0.0
        %1442 = vmatpush1.msra.mxu0 %v1374
        %1443 = vmatprep.subr.mxu0 0.0
        %1444 = vmatpush1.msra.mxu0 %v1375
        %1445 = vmatprep.subr.mxu0 0.0
        %1446 = vmatpush1.msra.mxu0 %v1376
        %1447 = vmatprep.subr.mxu0 0.0
        %1448 = vmatpush1.msra.mxu0 %v1377
        %1449 = vmatprep.subr.mxu0 0.0
        %1450 = vmatpush1.msra.mxu0 %v1378
        %1451 = vmatprep.subr.mxu0 0.0
        %1452 = vmatpush1.msra.mxu0 %v1379
        %1453 = vmatprep.subr.mxu0 0.0
        %1454 = vmatpush1.msra.mxu0 %v1380
        %1455 = vmatprep.subr.mxu0 0.0
        %1456 = vmatpush1.msra.mxu0 %v1381
        %1457 = vmatprep.subr.mxu0 0.0
        %1458 = vmatpush1.msra.mxu0 %v1382
        %1459 = vmatprep.subr.mxu0 0.0
        %1460 = vmatpush1.msra.mxu0 %v1383
        %1461 = vmatprep.subr.mxu0 0.0
        %1462 = vmatpush1.msra.mxu0 %v1384
        %1463 = vmatprep.subr.mxu0 0.0
        %1464 = vmatpush1.msra.mxu0 %v1385
        %1465 = vmatprep.subr.mxu0 0.0
        %1466 = vmatpush1.msra.mxu0 %v1386
        %1467 = vmatprep.subr.mxu0 0.0
        %1468 = vmatpush1.msra.mxu0 %v1387
        %1469 = vmatprep.subr.mxu0 0.0
        %1470 = vmatpush1.msra.mxu0 %v1388
        %1471 = vmatprep.subr.mxu0 0.0
        %1472 = vmatpush1.msra.mxu0 %v1389
        %1473 = vmatprep.subr.mxu0 0.0
        %1474 = vmatpush1.msra.mxu0 %v1390
        %1475 = vmatprep.subr.mxu0 0.0
        %1476 = vmatpush1.msra.mxu0 %v1391
        %1477 = vmatprep.subr.mxu0 0.0
        %1478 = vmatpush1.msra.mxu0 %v1392
        %1479 = vmatprep.subr.mxu0 0.0
        %1480 = vmatpush1.msra.mxu0 %v1393
        %1481 = vmatprep.subr.mxu0 0.0
        %1482 = vmatpush1.msra.mxu0 %v1394
        %1483 = vmatprep.mubr.f32.mxu0 %v1279
        %1484 = vmatmul.mubr.f32.gmra.mrb[0].mxu0 %v1204
        %v1485 = vpop.f32.mrb[0].mxu0
        %v1486 = vadd.f32 %v1417, %v1485
        %v1487 = vpop.f32.mrb[0].mxu0
        %1488 = vmatprep.mubr.f32.mxu0 %v1284
        %1489 = vmatmul.mubr.f32.gmra.mrb[0].mxu0 %v1209
        %v1490 = vpop.f32.mrb[0].mxu0
        %v1491 = vadd.f32 %v1417, %v1490
        %v1492 = vpop.f32.mrb[0].mxu0
        %1493 = vdwg.mxu0
        %1494 = vmatprep.subr.mxu0 0.0
        %1495 = vmatpush1.msra.mxu0 %v1395
        %1496 = vmatprep.subr.mxu0 0.0
        %1497 = vmatpush1.msra.mxu0 %v1396
        %1498 = vmatprep.subr.mxu0 0.0
        %1499 = vmatpush1.msra.mxu0 %v1397
        %1500 = vmatprep.subr.mxu0 0.0
        %1501 = vmatpush1.msra.mxu0 %v1398
        %1502 = vmatprep.subr.mxu0 0.0
        %1503 = vmatpush1.msra.mxu0 %v1399
        %1504 = vmatprep.subr.mxu0 0.0
        %1505 = vmatpush1.msra.mxu0 %v1400
        %1506 = vmatprep.subr.mxu0 0.0
        %1507 = vmatpush1.msra.mxu0 %v1401
        %1508 = vmatprep.subr.mxu0 0.0
        %1509 = vmatpush1.msra.mxu0 %v1402
        %1510 = vmatprep.subr.mxu0 0.0
        %1511 = vmatpush1.msra.mxu0 %v1403
        %1512 = vmatprep.subr.mxu0 0.0
        %1513 = vmatpush1.msra.mxu0 %v1404
        %1514 = vmatprep.subr.mxu0 0.0
        %1515 = vmatpush1.msra.mxu0 %v1405
        %1516 = vmatprep.subr.mxu0 0.0
        %1517 = vmatpush1.msra.mxu0 %v1406
        %1518 = vmatprep.subr.mxu0 0.0
        %1519 = vmatpush1.msra.mxu0 %v1407
        %1520 = vmatprep.subr.mxu0 0.0
        %1521 = vmatpush1.msra.mxu0 %v1408
        %1522 = vmatprep.subr.mxu0 0.0
        %1523 = vmatpush1.msra.mxu0 %v1409
        %1524 = vmatprep.subr.mxu0 0.0
        %1525 = vmatpush1.msra.mxu0 %v1410
        %1526 = vmatprep.subr.mxu0 0.0
        %1527 = vmatpush1.msra.mxu0 0.0
        %1528 = vmatprep.subr.mxu0 0.0
        %1529 = vmatpush1.msra.mxu0 0.0
        %1530 = vmatprep.subr.mxu0 0.0
        %1531 = vmatpush1.msra.mxu0 0.0
        %1532 = vmatprep.subr.mxu0 0.0
        %1533 = vmatpush1.msra.mxu0 0.0
        %1534 = vmatprep.subr.mxu0 0.0
        %1535 = vmatpush1.msra.mxu0 0.0
        %1536 = vmatprep.subr.mxu0 0.0
        %1537 = vmatpush1.msra.mxu0 0.0
        %1538 = vmatprep.subr.mxu0 0.0
        %1539 = vmatpush1.msra.mxu0 0.0
        %1540 = vmatprep.subr.mxu0 0.0
        %1541 = vmatpush1.msra.mxu0 0.0
        %1542 = vmatprep.subr.mxu0 0.0
        %1543 = vmatpush1.msra.mxu0 0.0
        %1544 = vmatprep.subr.mxu0 0.0
        %1545 = vmatpush1.msra.mxu0 0.0
        %1546 = vmatprep.subr.mxu0 0.0
        %1547 = vmatpush1.msra.mxu0 0.0
        %1548 = vmatprep.subr.mxu0 0.0
        %1549 = vmatpush1.msra.mxu0 0.0
        %1550 = vmatprep.subr.mxu0 0.0
        %1551 = vmatpush1.msra.mxu0 0.0
        %1552 = vmatprep.subr.mxu0 0.0
        %1553 = vmatpush1.msra.mxu0 0.0
        %1554 = vmatprep.subr.mxu0 0.0
        %1555 = vmatpush1.msra.mxu0 0.0
        %1556 = vmatprep.subr.mxu0 0.0
        %1557 = vmatpush1.msra.mxu0 0.0
        %1558 = vmatprep.mubr.f32.mxu0 0.0
        %1559 = vmatmul.mubr.f32.gmra.mrb[0].mxu0 %v1354
        %v1560 = vpop.f32.mrb[0].mxu0
        %v1561 = vadd.f32 %v1486, %v1560
        %v1562 = vpop.f32.mrb[0].mxu0
        %1563 = vmatprep.mubr.f32.mxu0 0.0
        %1564 = vmatmul.mubr.f32.gmra.mrb[0].mxu0 %v1359
        %v1565 = vpop.f32.mrb[0].mxu0
        %v1566 = vadd.f32 %v1491, %v1565
        %v1567 = vpop.f32.mrb[0].mxu0
        %1568 = vdwg.mxu0
        %v1569 = vmax.f32 %v1561, 0.0
        %v1570 = vmax.f32 %v1566, 0.0
        %1571 = vmatprep.subr.mxu0 0.0
        %1572 = vmatpush1.msra.mxu0 %v1569
        %1573 = vmatprep.subr.mxu0 0.0
        %1574 = vmatpush1.msra.mxu0 %v1570
        %1575 = vmatprep.subr.mxu0 0.0
        %1576 = vmatpush1.msra.mxu0 0.0
        %1577 = vmatprep.subr.mxu0 0.0
        %1578 = vmatpush1.msra.mxu0 0.0
        %1579 = vmatprep.subr.mxu0 0.0
        %1580 = vmatpush1.msra.mxu0 0.0
        %1581 = vmatprep.subr.mxu0 0.0
        %1582 = vmatpush1.msra.mxu0 0.0
        %1583 = vmatprep.subr.mxu0 0.0
        %1584 = vmatpush1.msra.mxu0 0.0
        %1585 = vmatprep.subr.mxu0 0.0
        %1586 = vmatpush1.msra.mxu0 0.0
        %1587 = vmatprep.subr.mxu0 0.0
        %1588 = vmatpush1.msra.mxu0 0.0
        %1589 = vmatprep.subr.mxu0 0.0
        %1590 = vmatpush1.msra.mxu0 0.0
        %1591 = vmatprep.subr.mxu0 0.0
        %1592 = vmatpush1.msra.mxu0 0.0
        %1593 = vmatprep.subr.mxu0 0.0
        %1594 = vmatpush1.msra.mxu0 0.0
        %1595 = vmatprep.subr.mxu0 0.0
        %1596 = vmatpush1.msra.mxu0 0.0
        %1597 = vmatprep.subr.mxu0 0.0
        %1598 = vmatpush1.msra.mxu0 0.0
        %1599 = vmatprep.subr.mxu0 0.0
        %1600 = vmatpush1.msra.mxu0 0.0
        %1601 = vmatprep.subr.mxu0 0.0
        %1602 = vmatpush1.msra.mxu0 0.0
        %1603 = vmatprep.subr.mxu0 0.0
        %1604 = vmatpush1.msra.mxu0 0.0
        %1605 = vmatprep.subr.mxu0 0.0
        %1606 = vmatpush1.msra.mxu0 0.0
        %1607 = vmatprep.subr.mxu0 0.0
        %1608 = vmatpush1.msra.mxu0 0.0
        %1609 = vmatprep.subr.mxu0 0.0
        %1610 = vmatpush1.msra.mxu0 0.0
        %1611 = vmatprep.subr.mxu0 0.0
        %1612 = vmatpush1.msra.mxu0 0.0
        %1613 = vmatprep.subr.mxu0 0.0
        %1614 = vmatpush1.msra.mxu0 0.0
        %1615 = vmatprep.subr.mxu0 0.0
        %1616 = vmatpush1.msra.mxu0 0.0
        %1617 = vmatprep.subr.mxu0 0.0
        %1618 = vmatpush1.msra.mxu0 0.0
        %1619 = vmatprep.subr.mxu0 0.0
        %1620 = vmatpush1.msra.mxu0 0.0
        %1621 = vmatprep.subr.mxu0 0.0
        %1622 = vmatpush1.msra.mxu0 0.0
        %1623 = vmatprep.subr.mxu0 0.0
        %1624 = vmatpush1.msra.mxu0 0.0
        %1625 = vmatprep.subr.mxu0 0.0
        %1626 = vmatpush1.msra.mxu0 0.0
        %1627 = vmatprep.subr.mxu0 0.0
        %1628 = vmatpush1.msra.mxu0 0.0
        %1629 = vmatprep.subr.mxu0 0.0
        %1630 = vmatpush1.msra.mxu0 0.0
        %1631 = vmatprep.subr.mxu0 0.0
        %1632 = vmatpush1.msra.mxu0 0.0
        %1633 = vmatprep.subr.mxu0 0.0
        %1634 = vmatpush1.msra.mxu0 0.0
        %1635 = vmatprep.mubr.f32.mxu0 0.0
        %1636 = vmatmul.mubr.f32.gmra.mrb[0].mxu0 %v248
        %v1637 = vpop.f32.mrb[0].mxu0
        %v1638 = vadd.f32 0.0, %v1637
        %v1639 = vpop.f32.mrb[0].mxu0
        %1640 = vmatprep.mubr.f32.mxu0 0.0
        %1641 = vmatmul.mubr.f32.gmra.mrb[0].mxu0 %v251
        %v1642 = vpop.f32.mrb[0].mxu0
        %v1643 = vadd.f32 0.0, %v1642
        %v1644 = vpop.f32.mrb[0].mxu0
        %1645 = vdwg.mxu0
        %1646 = vmatprep.subr.mxu0 0.0
        %1647 = vmatpush1.msra.mxu0 %v1569
        %1648 = vmatprep.subr.mxu0 0.0
        %1649 = vmatpush1.msra.mxu0 %v1570
        %1650 = vmatprep.subr.mxu0 0.0
        %1651 = vmatpush1.msra.mxu0 0.0
        %1652 = vmatprep.subr.mxu0 0.0
        %1653 = vmatpush1.msra.mxu0 0.0
        %1654 = vmatprep.subr.mxu0 0.0
        %1655 = vmatpush1.msra.mxu0 0.0
        %1656 = vmatprep.subr.mxu0 0.0
        %1657 = vmatpush1.msra.mxu0 0.0
        %1658 = vmatprep.subr.mxu0 0.0
        %1659 = vmatpush1.msra.mxu0 0.0
        %1660 = vmatprep.subr.mxu0 0.0
        %1661 = vmatpush1.msra.mxu0 0.0
        %1662 = vmatprep.subr.mxu0 0.0
        %1663 = vmatpush1.msra.mxu0 0.0
        %1664 = vmatprep.subr.mxu0 0.0
        %1665 = vmatpush1.msra.mxu0 0.0
        %1666 = vmatprep.subr.mxu0 0.0
        %1667 = vmatpush1.msra.mxu0 0.0
        %1668 = vmatprep.subr.mxu0 0.0
        %1669 = vmatpush1.msra.mxu0 0.0
        %1670 = vmatprep.subr.mxu0 0.0
        %1671 = vmatpush1.msra.mxu0 0.0
        %1672 = vmatprep.subr.mxu0 0.0
        %1673 = vmatpush1.msra.mxu0 0.0
        %1674 = vmatprep.subr.mxu0 0.0
        %1675 = vmatpush1.msra.mxu0 0.0
        %1676 = vmatprep.subr.mxu0 0.0
        %1677 = vmatpush1.msra.mxu0 0.0
        %1678 = vmatprep.subr.mxu0 0.0
        %1679 = vmatpush1.msra.mxu0 0.0
        %1680 = vmatprep.subr.mxu0 0.0
        %1681 = vmatpush1.msra.mxu0 0.0
        %1682 = vmatprep.subr.mxu0 0.0
        %1683 = vmatpush1.msra.mxu0 0.0
        %1684 = vmatprep.subr.mxu0 0.0
        %1685 = vmatpush1.msra.mxu0 0.0
        %1686 = vmatprep.subr.mxu0 0.0
        %1687 = vmatpush1.msra.mxu0 0.0
        %1688 = vmatprep.subr.mxu0 0.0
        %1689 = vmatpush1.msra.mxu0 0.0
        %1690 = vmatprep.subr.mxu0 0.0
        %1691 = vmatpush1.msra.mxu0 0.0
        %1692 = vmatprep.subr.mxu0 0.0
        %1693 = vmatpush1.msra.mxu0 0.0
        %1694 = vmatprep.subr.mxu0 0.0
        %1695 = vmatpush1.msra.mxu0 0.0
        %1696 = vmatprep.subr.mxu0 0.0
        %1697 = vmatpush1.msra.mxu0 0.0
        %1698 = vmatprep.subr.mxu0 0.0
        %1699 = vmatpush1.msra.mxu0 0.0
        %1700 = vmatprep.subr.mxu0 0.0
        %1701 = vmatpush1.msra.mxu0 0.0
        %1702 = vmatprep.subr.mxu0 0.0
        %1703 = vmatpush1.msra.mxu0 0.0
        %1704 = vmatprep.subr.mxu0 0.0
        %1705 = vmatpush1.msra.mxu0 0.0
        %1706 = vmatprep.subr.mxu0 0.0
        %1707 = vmatpush1.msra.mxu0 0.0
        %1708 = vmatprep.subr.mxu0 0.0
        %1709 = vmatpush1.msra.mxu0 0.0
        %1710 = vmatprep.mubr.f32.mxu0 0.0
        %1711 = vmatmul.mubr.f32.gmra.mrb[0].mxu0 %v332
        %v1712 = vpop.f32.mrb[0].mxu0
        %v1713 = vadd.f32 0.0, %v1712
        %v1714 = vpop.f32.mrb[0].mxu0
        %1715 = vmatprep.mubr.f32.mxu0 0.0
        %1716 = vmatmul.mubr.f32.gmra.mrb[0].mxu0 %v335
        %v1717 = vpop.f32.mrb[0].mxu0
        %v1718 = vadd.f32 0.0, %v1717
        %v1719 = vpop.f32.mrb[0].mxu0
        %1720 = vdwg.mxu0
        %1721 = vmatprep.subr.mxu0 0.0
        %1722 = vmatpush1.msra.mxu0 %v1569
        %1723 = vmatprep.subr.mxu0 0.0
        %1724 = vmatpush1.msra.mxu0 %v1570
        %1725 = vmatprep.subr.mxu0 0.0
        %1726 = vmatpush1.msra.mxu0 0.0
        %1727 = vmatprep.subr.mxu0 0.0
        %1728 = vmatpush1.msra.mxu0 0.0
        %1729 = vmatprep.subr.mxu0 0.0
        %1730 = vmatpush1.msra.mxu0 0.0
        %1731 = vmatprep.subr.mxu0 0.0
        %1732 = vmatpush1.msra.mxu0 0.0
        %1733 = vmatprep.subr.mxu0 0.0
        %1734 = vmatpush1.msra.mxu0 0.0
        %1735 = vmatprep.subr.mxu0 0.0
        %1736 = vmatpush1.msra.mxu0 0.0
        %1737 = vmatprep.subr.mxu0 0.0
        %1738 = vmatpush1.msra.mxu0 0.0
        %1739 = vmatprep.subr.mxu0 0.0
        %1740 = vmatpush1.msra.mxu0 0.0
        %1741 = vmatprep.subr.mxu0 0.0
        %1742 = vmatpush1.msra.mxu0 0.0
        %1743 = vmatprep.subr.mxu0 0.0
        %1744 = vmatpush1.msra.mxu0 0.0
        %1745 = vmatprep.subr.mxu0 0.0
        %1746 = vmatpush1.msra.mxu0 0.0
        %1747 = vmatprep.subr.mxu0 0.0
        %1748 = vmatpush1.msra.mxu0 0.0
        %1749 = vmatprep.subr.mxu0 0.0
        %1750 = vmatpush1.msra.mxu0 0.0
        %1751 = vmatprep.subr.mxu0 0.0
        %1752 = vmatpush1.msra.mxu0 0.0
        %1753 = vmatprep.subr.mxu0 0.0
        %1754 = vmatpush1.msra.mxu0 0.0
        %1755 = vmatprep.subr.mxu0 0.0
        %1756 = vmatpush1.msra.mxu0 0.0
        %1757 = vmatprep.subr.mxu0 0.0
        %1758 = vmatpush1.msra.mxu0 0.0
        %1759 = vmatprep.subr.mxu0 0.0
        %1760 = vmatpush1.msra.mxu0 0.0
        %1761 = vmatprep.subr.mxu0 0.0
        %1762 = vmatpush1.msra.mxu0 0.0
        %1763 = vmatprep.subr.mxu0 0.0
        %1764 = vmatpush1.msra.mxu0 0.0
        %1765 = vmatprep.subr.mxu0 0.0
        %1766 = vmatpush1.msra.mxu0 0.0
        %1767 = vmatprep.subr.mxu0 0.0
        %1768 = vmatpush1.msra.mxu0 0.0
        %1769 = vmatprep.subr.mxu0 0.0
        %1770 = vmatpush1.msra.mxu0 0.0
        %1771 = vmatprep.subr.mxu0 0.0
        %1772 = vmatpush1.msra.mxu0 0.0
        %1773 = vmatprep.subr.mxu0 0.0
        %1774 = vmatpush1.msra.mxu0 0.0
        %1775 = vmatprep.subr.mxu0 0.0
        %1776 = vmatpush1.msra.mxu0 0.0
        %1777 = vmatprep.subr.mxu0 0.0
        %1778 = vmatpush1.msra.mxu0 0.0
        %1779 = vmatprep.subr.mxu0 0.0
        %1780 = vmatpush1.msra.mxu0 0.0
        %1781 = vmatprep.subr.mxu0 0.0
        %1782 = vmatpush1.msra.mxu0 0.0
        %1783 = vmatprep.subr.mxu0 0.0
        %1784 = vmatpush1.msra.mxu0 0.0
        %1785 = vmatprep.mubr.f32.mxu0 0.0
        %1786 = vmatmul.mubr.f32.gmra.mrb[0].mxu0 %v416
        %v1787 = vpop.f32.mrb[0].mxu0
        %v1788 = vadd.f32 0.0, %v1787
        %v1789 = vpop.f32.mrb[0].mxu0
        %1790 = vmatprep.mubr.f32.mxu0 0.0
        %1791 = vmatmul.mubr.f32.gmra.mrb[0].mxu0 %v419
        %v1792 = vpop.f32.mrb[0].mxu0
        %v1793 = vadd.f32 0.0, %v1792
        %v1794 = vpop.f32.mrb[0].mxu0
        %1795 = vdwg.mxu0
        %s1796 = scalar_lea.vmem [#allocation4], 1152
        %v1797 = vld [vmem:[%s1796] sm:$0xff]
        %v1798 = vld [vmem:[%s1796 + $0x8] sm:$0xff]
        %v1799 = vld [vmem:[%s1796 + $0x10] sm:$0xff]
        %v1800 = vld [vmem:[%s1796 + $0x18] sm:$0xff]
        %v1801 = vld [vmem:[%s1796 + $0x20] sm:$0xff]
        %v1802 = vld [vmem:[%s1796 + $0x28] sm:$0xff]
        %v1803 = vld [vmem:[%s1796 + $0x30] sm:$0xff]
        %v1804 = vld [vmem:[%s1796 + $0x38] sm:$0xff]
        %v1805 = vld [vmem:[%s1796 + $0x40] sm:$0xff]
        %v1806 = vld [vmem:[%s1796 + $0x48] sm:$0xff]
        %v1807 = vld [vmem:[%s1796 + $0x50] sm:$0xff]
        %v1808 = vld [vmem:[%s1796 + $0x58] sm:$0xff]
        %v1809 = vld [vmem:[%s1796 + $0x60] sm:$0xff]
        %v1810 = vld [vmem:[%s1796 + $0x68] sm:$0xff]
        %v1811 = vld [vmem:[%s1796 + $0x70] sm:$0xff]
        %v1812 = vld [vmem:[%s1796 + $0x78] sm:$0xff]
        %v1813 = vld [vmem:[%s1796 + $0x80] sm:$0xff]
        %v1814 = vld [vmem:[%s1796 + $0x88] sm:$0xff]
        %v1815 = vld [vmem:[%s1796 + $0x90] sm:$0xff]
        %v1816 = vld [vmem:[%s1796 + $0x98] sm:$0xff]
        %v1817 = vld [vmem:[%s1796 + $0xa0] sm:$0xff]
        %v1818 = vld [vmem:[%s1796 + $0xa8] sm:$0xff]
        %v1819 = vld [vmem:[%s1796 + $0xb0] sm:$0xff]
        %v1820 = vld [vmem:[%s1796 + $0xb8] sm:$0xff]
        %v1821 = vld [vmem:[%s1796 + $0xc0] sm:$0xff]
        %v1822 = vld [vmem:[%s1796 + $0xc8] sm:$0xff]
        %v1823 = vld [vmem:[%s1796 + $0xd0] sm:$0xff]
        %v1824 = vld [vmem:[%s1796 + $0xd8] sm:$0xff]
        %v1825 = vld [vmem:[%s1796 + $0xe0] sm:$0xff]
        %v1826 = vld [vmem:[%s1796 + $0xe8] sm:$0xff]
        %v1827 = vld [vmem:[%s1796 + $0xf0] sm:$0xff]
        %v1828 = vld [vmem:[%s1796 + $0xf8] sm:$0xff]
        %v1829 = vld [vmem:[%s1796 + $0x100] sm:$0xff]
        %v1830 = vld [vmem:[%s1796 + $0x108] sm:$0xff]
        %v1831 = vld [vmem:[%s1796 + $0x110] sm:$0xff]
        %v1832 = vld [vmem:[%s1796 + $0x118] sm:$0xff]
        %v1833 = vld [vmem:[%s1796 + $0x120] sm:$0xff]
        %v1834 = vld [vmem:[%s1796 + $0x128] sm:$0xff]
        %v1835 = vld [vmem:[%s1796 + $0x130] sm:$0xff]
        %v1836 = vld [vmem:[%s1796 + $0x138] sm:$0xff]
        %v1837 = vld [vmem:[%s1796 + $0x140] sm:$0xff]
        %v1838 = vld [vmem:[%s1796 + $0x148] sm:$0xff]
        %v1839 = vld [vmem:[%s1796 + $0x150] sm:$0xff]
        %v1840 = vld [vmem:[%s1796 + $0x158] sm:$0xff]
        %v1841 = vld [vmem:[%s1796 + $0x160] sm:$0xff]
        %v1842 = vld [vmem:[%s1796 + $0x168] sm:$0xff]
        %v1843 = vld [vmem:[%s1796 + $0x170] sm:$0xff]
        %v1844 = vld [vmem:[%s1796 + $0x178] sm:$0xff]
        %s1845 = scalar_lea.vmem [#allocation6], 3
        %v1846 = vld [vmem:[%s1845] sm:$0x1]
        %v1848 = vlaneseq
        %v1849 = vshrl.u32 %v1848, 7
        %v1850 = vsub.s32 0, %v1849
        %v1851 = vrot.slane %v1846, %v1850
        %1853 = vmatprep.subr.mxu0 0.0
        %1854 = vmatpush1.msra.mxu0 %v1797
        %1855 = vmatprep.subr.mxu0 0.0
        %1856 = vmatpush1.msra.mxu0 %v1798
        %1857 = vmatprep.subr.mxu0 0.0
        %1858 = vmatpush1.msra.mxu0 %v1799
        %1859 = vmatprep.subr.mxu0 0.0
        %1860 = vmatpush1.msra.mxu0 %v1800
        %1861 = vmatprep.subr.mxu0 0.0
        %1862 = vmatpush1.msra.mxu0 %v1801
        %1863 = vmatprep.subr.mxu0 0.0
        %1864 = vmatpush1.msra.mxu0 %v1802
        %1865 = vmatprep.subr.mxu0 0.0
        %1866 = vmatpush1.msra.mxu0 %v1803
        %1867 = vmatprep.subr.mxu0 0.0
        %1868 = vmatpush1.msra.mxu0 %v1804
        %1869 = vmatprep.subr.mxu0 0.0
        %1870 = vmatpush1.msra.mxu0 %v1805
        %1871 = vmatprep.subr.mxu0 0.0
        %1872 = vmatpush1.msra.mxu0 %v1806
        %1873 = vmatprep.subr.mxu0 0.0
        %1874 = vmatpush1.msra.mxu0 %v1807
        %1875 = vmatprep.subr.mxu0 0.0
        %1876 = vmatpush1.msra.mxu0 %v1808
        %1877 = vmatprep.subr.mxu0 0.0
        %1878 = vmatpush1.msra.mxu0 %v1809
        %1879 = vmatprep.subr.mxu0 0.0
        %1880 = vmatpush1.msra.mxu0 %v1810
        %1881 = vmatprep.subr.mxu0 0.0
        %1882 = vmatpush1.msra.mxu0 %v1811
        %1883 = vmatprep.subr.mxu0 0.0
        %1884 = vmatpush1.msra.mxu0 %v1812
        %1885 = vmatprep.subr.mxu0 0.0
        %1886 = vmatpush1.msra.mxu0 %v1813
        %1887 = vmatprep.subr.mxu0 0.0
        %1888 = vmatpush1.msra.mxu0 %v1814
        %1889 = vmatprep.subr.mxu0 0.0
        %1890 = vmatpush1.msra.mxu0 %v1815
        %1891 = vmatprep.subr.mxu0 0.0
        %1892 = vmatpush1.msra.mxu0 %v1816
        %1893 = vmatprep.subr.mxu0 0.0
        %1894 = vmatpush1.msra.mxu0 %v1817
        %1895 = vmatprep.subr.mxu0 0.0
        %1896 = vmatpush1.msra.mxu0 %v1818
        %1897 = vmatprep.subr.mxu0 0.0
        %1898 = vmatpush1.msra.mxu0 %v1819
        %1899 = vmatprep.subr.mxu0 0.0
        %1900 = vmatpush1.msra.mxu0 %v1820
        %1901 = vmatprep.subr.mxu0 0.0
        %1902 = vmatpush1.msra.mxu0 %v1821
        %1903 = vmatprep.subr.mxu0 0.0
        %1904 = vmatpush1.msra.mxu0 %v1822
        %1905 = vmatprep.subr.mxu0 0.0
        %1906 = vmatpush1.msra.mxu0 %v1823
        %1907 = vmatprep.subr.mxu0 0.0
        %1908 = vmatpush1.msra.mxu0 %v1824
        %1909 = vmatprep.subr.mxu0 0.0
        %1910 = vmatpush1.msra.mxu0 %v1825
        %1911 = vmatprep.subr.mxu0 0.0
        %1912 = vmatpush1.msra.mxu0 %v1826
        %1913 = vmatprep.subr.mxu0 0.0
        %1914 = vmatpush1.msra.mxu0 %v1827
        %1915 = vmatprep.subr.mxu0 0.0
        %1916 = vmatpush1.msra.mxu0 %v1828
        %1917 = vmatprep.mubr.f32.mxu0 %v1713
        %1918 = vmatmul.mubr.f32.gmra.mrb[0].mxu0 %v1638
        %v1919 = vpop.f32.mrb[0].mxu0
        %v1920 = vadd.f32 %v1851, %v1919
        %v1921 = vpop.f32.mrb[0].mxu0
        %1922 = vmatprep.mubr.f32.mxu0 %v1718
        %1923 = vmatmul.mubr.f32.gmra.mrb[0].mxu0 %v1643
        %v1924 = vpop.f32.mrb[0].mxu0
        %v1925 = vadd.f32 %v1851, %v1924
        %v1926 = vpop.f32.mrb[0].mxu0
        %1927 = vdwg.mxu0
        %1928 = vmatprep.subr.mxu0 0.0
        %1929 = vmatpush1.msra.mxu0 %v1829
        %1930 = vmatprep.subr.mxu0 0.0
        %1931 = vmatpush1.msra.mxu0 %v1830
        %1932 = vmatprep.subr.mxu0 0.0
        %1933 = vmatpush1.msra.mxu0 %v1831
        %1934 = vmatprep.subr.mxu0 0.0
        %1935 = vmatpush1.msra.mxu0 %v1832
        %1936 = vmatprep.subr.mxu0 0.0
        %1937 = vmatpush1.msra.mxu0 %v1833
        %1938 = vmatprep.subr.mxu0 0.0
        %1939 = vmatpush1.msra.mxu0 %v1834
        %1940 = vmatprep.subr.mxu0 0.0
        %1941 = vmatpush1.msra.mxu0 %v1835
        %1942 = vmatprep.subr.mxu0 0.0
        %1943 = vmatpush1.msra.mxu0 %v1836
        %1944 = vmatprep.subr.mxu0 0.0
        %1945 = vmatpush1.msra.mxu0 %v1837
        %1946 = vmatprep.subr.mxu0 0.0
        %1947 = vmatpush1.msra.mxu0 %v1838
        %1948 = vmatprep.subr.mxu0 0.0
        %1949 = vmatpush1.msra.mxu0 %v1839
        %1950 = vmatprep.subr.mxu0 0.0
        %1951 = vmatpush1.msra.mxu0 %v1840
        %1952 = vmatprep.subr.mxu0 0.0
        %1953 = vmatpush1.msra.mxu0 %v1841
        %1954 = vmatprep.subr.mxu0 0.0
        %1955 = vmatpush1.msra.mxu0 %v1842
        %1956 = vmatprep.subr.mxu0 0.0
        %1957 = vmatpush1.msra.mxu0 %v1843
        %1958 = vmatprep.subr.mxu0 0.0
        %1959 = vmatpush1.msra.mxu0 %v1844
        %1960 = vmatprep.subr.mxu0 0.0
        %1961 = vmatpush1.msra.mxu0 0.0
        %1962 = vmatprep.subr.mxu0 0.0
        %1963 = vmatpush1.msra.mxu0 0.0
        %1964 = vmatprep.subr.mxu0 0.0
        %1965 = vmatpush1.msra.mxu0 0.0
        %1966 = vmatprep.subr.mxu0 0.0
        %1967 = vmatpush1.msra.mxu0 0.0
        %1968 = vmatprep.subr.mxu0 0.0
        %1969 = vmatpush1.msra.mxu0 0.0
        %1970 = vmatprep.subr.mxu0 0.0
        %1971 = vmatpush1.msra.mxu0 0.0
        %1972 = vmatprep.subr.mxu0 0.0
        %1973 = vmatpush1.msra.mxu0 0.0
        %1974 = vmatprep.subr.mxu0 0.0
        %1975 = vmatpush1.msra.mxu0 0.0
        %1976 = vmatprep.subr.mxu0 0.0
        %1977 = vmatpush1.msra.mxu0 0.0
        %1978 = vmatprep.subr.mxu0 0.0
        %1979 = vmatpush1.msra.mxu0 0.0
        %1980 = vmatprep.subr.mxu0 0.0
        %1981 = vmatpush1.msra.mxu0 0.0
        %1982 = vmatprep.subr.mxu0 0.0
        %1983 = vmatpush1.msra.mxu0 0.0
        %1984 = vmatprep.subr.mxu0 0.0
        %1985 = vmatpush1.msra.mxu0 0.0
        %1986 = vmatprep.subr.mxu0 0.0
        %1987 = vmatpush1.msra.mxu0 0.0
        %1988 = vmatprep.subr.mxu0 0.0
        %1989 = vmatpush1.msra.mxu0 0.0
        %1990 = vmatprep.subr.mxu0 0.0
        %1991 = vmatpush1.msra.mxu0 0.0
        %1992 = vmatprep.mubr.f32.mxu0 0.0
        %1993 = vmatmul.mubr.f32.gmra.mrb[0].mxu0 %v1788
        %v1994 = vpop.f32.mrb[0].mxu0
        %v1995 = vadd.f32 %v1920, %v1994
        %v1996 = vpop.f32.mrb[0].mxu0
        %1997 = vmatprep.mubr.f32.mxu0 0.0
        %1998 = vmatmul.mubr.f32.gmra.mrb[0].mxu0 %v1793
        %v1999 = vpop.f32.mrb[0].mxu0
        %v2000 = vadd.f32 %v1925, %v1999
        %v2001 = vpop.f32.mrb[0].mxu0
        %2002 = vdwg.mxu0
        %v2003 = vmax.f32 %v1995, 0.0
        %v2004 = vmax.f32 %v2000, 0.0
        %2005 = vmatprep.subr.mxu0 0.0
        %2006 = vmatpush1.msra.mxu0 %v2003
        %2007 = vmatprep.subr.mxu0 0.0
        %2008 = vmatpush1.msra.mxu0 %v2004
        %2009 = vmatprep.subr.mxu0 0.0
        %2010 = vmatpush1.msra.mxu0 0.0
        %2011 = vmatprep.subr.mxu0 0.0
        %2012 = vmatpush1.msra.mxu0 0.0
        %2013 = vmatprep.subr.mxu0 0.0
        %2014 = vmatpush1.msra.mxu0 0.0
        %2015 = vmatprep.subr.mxu0 0.0
        %2016 = vmatpush1.msra.mxu0 0.0
        %2017 = vmatprep.subr.mxu0 0.0
        %2018 = vmatpush1.msra.mxu0 0.0
        %2019 = vmatprep.subr.mxu0 0.0
        %2020 = vmatpush1.msra.mxu0 0.0
        %2021 = vmatprep.subr.mxu0 0.0
        %2022 = vmatpush1.msra.mxu0 0.0
        %2023 = vmatprep.subr.mxu0 0.0
        %2024 = vmatpush1.msra.mxu0 0.0
        %2025 = vmatprep.subr.mxu0 0.0
        %2026 = vmatpush1.msra.mxu0 0.0
        %2027 = vmatprep.subr.mxu0 0.0
        %2028 = vmatpush1.msra.mxu0 0.0
        %2029 = vmatprep.subr.mxu0 0.0
        %2030 = vmatpush1.msra.mxu0 0.0
        %2031 = vmatprep.subr.mxu0 0.0
        %2032 = vmatpush1.msra.mxu0 0.0
        %2033 = vmatprep.subr.mxu0 0.0
        %2034 = vmatpush1.msra.mxu0 0.0
        %2035 = vmatprep.subr.mxu0 0.0
        %2036 = vmatpush1.msra.mxu0 0.0
        %2037 = vmatprep.subr.mxu0 0.0
        %2038 = vmatpush1.msra.mxu0 0.0
        %2039 = vmatprep.subr.mxu0 0.0
        %2040 = vmatpush1.msra.mxu0 0.0
        %2041 = vmatprep.subr.mxu0 0.0
        %2042 = vmatpush1.msra.mxu0 0.0
        %2043 = vmatprep.subr.mxu0 0.0
        %2044 = vmatpush1.msra.mxu0 0.0
        %2045 = vmatprep.subr.mxu0 0.0
        %2046 = vmatpush1.msra.mxu0 0.0
        %2047 = vmatprep.subr.mxu0 0.0
        %2048 = vmatpush1.msra.mxu0 0.0
        %2049 = vmatprep.subr.mxu0 0.0
        %2050 = vmatpush1.msra.mxu0 0.0
        %2051 = vmatprep.subr.mxu0 0.0
        %2052 = vmatpush1.msra.mxu0 0.0
        %2053 = vmatprep.subr.mxu0 0.0
        %2054 = vmatpush1.msra.mxu0 0.0
        %2055 = vmatprep.subr.mxu0 0.0
        %2056 = vmatpush1.msra.mxu0 0.0
        %2057 = vmatprep.subr.mxu0 0.0
        %2058 = vmatpush1.msra.mxu0 0.0
        %2059 = vmatprep.subr.mxu0 0.0
        %2060 = vmatpush1.msra.mxu0 0.0
        %2061 = vmatprep.subr.mxu0 0.0
        %2062 = vmatpush1.msra.mxu0 0.0
        %2063 = vmatprep.subr.mxu0 0.0
        %2064 = vmatpush1.msra.mxu0 0.0
        %2065 = vmatprep.subr.mxu0 0.0
        %2066 = vmatpush1.msra.mxu0 0.0
        %2067 = vmatprep.subr.mxu0 0.0
        %2068 = vmatpush1.msra.mxu0 0.0
        %2069 = vmatprep.mubr.f32.mxu0 0.0
        %2070 = vmatmul.mubr.f32.gmra.mrb[0].mxu0 %v248
        %v2071 = vpop.f32.mrb[0].mxu0
        %v2072 = vadd.f32 0.0, %v2071
        %v2073 = vpop.f32.mrb[0].mxu0
        %2074 = vmatprep.mubr.f32.mxu0 0.0
        %2075 = vmatmul.mubr.f32.gmra.mrb[0].mxu0 %v251
        %v2076 = vpop.f32.mrb[0].mxu0
        %v2077 = vadd.f32 0.0, %v2076
        %v2078 = vpop.f32.mrb[0].mxu0
        %2079 = vdwg.mxu0
        %2080 = vmatprep.subr.mxu0 0.0
        %2081 = vmatpush1.msra.mxu0 %v2003
        %2082 = vmatprep.subr.mxu0 0.0
        %2083 = vmatpush1.msra.mxu0 %v2004
        %2084 = vmatprep.subr.mxu0 0.0
        %2085 = vmatpush1.msra.mxu0 0.0
        %2086 = vmatprep.subr.mxu0 0.0
        %2087 = vmatpush1.msra.mxu0 0.0
        %2088 = vmatprep.subr.mxu0 0.0
        %2089 = vmatpush1.msra.mxu0 0.0
        %2090 = vmatprep.subr.mxu0 0.0
        %2091 = vmatpush1.msra.mxu0 0.0
        %2092 = vmatprep.subr.mxu0 0.0
        %2093 = vmatpush1.msra.mxu0 0.0
        %2094 = vmatprep.subr.mxu0 0.0
        %2095 = vmatpush1.msra.mxu0 0.0
        %2096 = vmatprep.subr.mxu0 0.0
        %2097 = vmatpush1.msra.mxu0 0.0
        %2098 = vmatprep.subr.mxu0 0.0
        %2099 = vmatpush1.msra.mxu0 0.0
        %2100 = vmatprep.subr.mxu0 0.0
        %2101 = vmatpush1.msra.mxu0 0.0
        %2102 = vmatprep.subr.mxu0 0.0
        %2103 = vmatpush1.msra.mxu0 0.0
        %2104 = vmatprep.subr.mxu0 0.0
        %2105 = vmatpush1.msra.mxu0 0.0
        %2106 = vmatprep.subr.mxu0 0.0
        %2107 = vmatpush1.msra.mxu0 0.0
        %2108 = vmatprep.subr.mxu0 0.0
        %2109 = vmatpush1.msra.mxu0 0.0
        %2110 = vmatprep.subr.mxu0 0.0
        %2111 = vmatpush1.msra.mxu0 0.0
        %2112 = vmatprep.subr.mxu0 0.0
        %2113 = vmatpush1.msra.mxu0 0.0
        %2114 = vmatprep.subr.mxu0 0.0
        %2115 = vmatpush1.msra.mxu0 0.0
        %2116 = vmatprep.subr.mxu0 0.0
        %2117 = vmatpush1.msra.mxu0 0.0
        %2118 = vmatprep.subr.mxu0 0.0
        %2119 = vmatpush1.msra.mxu0 0.0
        %2120 = vmatprep.subr.mxu0 0.0
        %2121 = vmatpush1.msra.mxu0 0.0
        %2122 = vmatprep.subr.mxu0 0.0
        %2123 = vmatpush1.msra.mxu0 0.0
        %2124 = vmatprep.subr.mxu0 0.0
        %2125 = vmatpush1.msra.mxu0 0.0
        %2126 = vmatprep.subr.mxu0 0.0
        %2127 = vmatpush1.msra.mxu0 0.0
        %2128 = vmatprep.subr.mxu0 0.0
        %2129 = vmatpush1.msra.mxu0 0.0
        %2130 = vmatprep.subr.mxu0 0.0
        %2131 = vmatpush1.msra.mxu0 0.0
        %2132 = vmatprep.subr.mxu0 0.0
        %2133 = vmatpush1.msra.mxu0 0.0
        %2134 = vmatprep.subr.mxu0 0.0
        %2135 = vmatpush1.msra.mxu0 0.0
        %2136 = vmatprep.subr.mxu0 0.0
        %2137 = vmatpush1.msra.mxu0 0.0
        %2138 = vmatprep.subr.mxu0 0.0
        %2139 = vmatpush1.msra.mxu0 0.0
        %2140 = vmatprep.subr.mxu0 0.0
        %2141 = vmatpush1.msra.mxu0 0.0
        %2142 = vmatprep.subr.mxu0 0.0
        %2143 = vmatpush1.msra.mxu0 0.0
        %2144 = vmatprep.mubr.f32.mxu0 0.0
        %2145 = vmatmul.mubr.f32.gmra.mrb[0].mxu0 %v332
        %v2146 = vpop.f32.mrb[0].mxu0
        %v2147 = vadd.f32 0.0, %v2146
        %v2148 = vpop.f32.mrb[0].mxu0
        %2149 = vmatprep.mubr.f32.mxu0 0.0
        %2150 = vmatmul.mubr.f32.gmra.mrb[0].mxu0 %v335
        %v2151 = vpop.f32.mrb[0].mxu0
        %v2152 = vadd.f32 0.0, %v2151
        %v2153 = vpop.f32.mrb[0].mxu0
        %2154 = vdwg.mxu0
        %2155 = vmatprep.subr.mxu0 0.0
        %2156 = vmatpush1.msra.mxu0 %v2003
        %2157 = vmatprep.subr.mxu0 0.0
        %2158 = vmatpush1.msra.mxu0 %v2004
        %2159 = vmatprep.subr.mxu0 0.0
        %2160 = vmatpush1.msra.mxu0 0.0
        %2161 = vmatprep.subr.mxu0 0.0
        %2162 = vmatpush1.msra.mxu0 0.0
        %2163 = vmatprep.subr.mxu0 0.0
        %2164 = vmatpush1.msra.mxu0 0.0
        %2165 = vmatprep.subr.mxu0 0.0
        %2166 = vmatpush1.msra.mxu0 0.0
        %2167 = vmatprep.subr.mxu0 0.0
        %2168 = vmatpush1.msra.mxu0 0.0
        %2169 = vmatprep.subr.mxu0 0.0
        %2170 = vmatpush1.msra.mxu0 0.0
        %2171 = vmatprep.subr.mxu0 0.0
        %2172 = vmatpush1.msra.mxu0 0.0
        %2173 = vmatprep.subr.mxu0 0.0
        %2174 = vmatpush1.msra.mxu0 0.0
        %2175 = vmatprep.subr.mxu0 0.0
        %2176 = vmatpush1.msra.mxu0 0.0
        %2177 = vmatprep.subr.mxu0 0.0
        %2178 = vmatpush1.msra.mxu0 0.0
        %2179 = vmatprep.subr.mxu0 0.0
        %2180 = vmatpush1.msra.mxu0 0.0
        %2181 = vmatprep.subr.mxu0 0.0
        %2182 = vmatpush1.msra.mxu0 0.0
        %2183 = vmatprep.subr.mxu0 0.0
        %2184 = vmatpush1.msra.mxu0 0.0
        %2185 = vmatprep.subr.mxu0 0.0
        %2186 = vmatpush1.msra.mxu0 0.0
        %2187 = vmatprep.subr.mxu0 0.0
        %2188 = vmatpush1.msra.mxu0 0.0
        %2189 = vmatprep.subr.mxu0 0.0
        %2190 = vmatpush1.msra.mxu0 0.0
        %2191 = vmatprep.subr.mxu0 0.0
        %2192 = vmatpush1.msra.mxu0 0.0
        %2193 = vmatprep.subr.mxu0 0.0
        %2194 = vmatpush1.msra.mxu0 0.0
        %2195 = vmatprep.subr.mxu0 0.0
        %2196 = vmatpush1.msra.mxu0 0.0
        %2197 = vmatprep.subr.mxu0 0.0
        %2198 = vmatpush1.msra.mxu0 0.0
        %2199 = vmatprep.subr.mxu0 0.0
        %2200 = vmatpush1.msra.mxu0 0.0
        %2201 = vmatprep.subr.mxu0 0.0
        %2202 = vmatpush1.msra.mxu0 0.0
        %2203 = vmatprep.subr.mxu0 0.0
        %2204 = vmatpush1.msra.mxu0 0.0
        %2205 = vmatprep.subr.mxu0 0.0
        %2206 = vmatpush1.msra.mxu0 0.0
        %2207 = vmatprep.subr.mxu0 0.0
        %2208 = vmatpush1.msra.mxu0 0.0
        %2209 = vmatprep.subr.mxu0 0.0
        %2210 = vmatpush1.msra.mxu0 0.0
        %2211 = vmatprep.subr.mxu0 0.0
        %2212 = vmatpush1.msra.mxu0 0.0
        %2213 = vmatprep.subr.mxu0 0.0
        %2214 = vmatpush1.msra.mxu0 0.0
        %2215 = vmatprep.subr.mxu0 0.0
        %2216 = vmatpush1.msra.mxu0 0.0
        %2217 = vmatprep.subr.mxu0 0.0
        %2218 = vmatpush1.msra.mxu0 0.0
        %2219 = vmatprep.mubr.f32.mxu0 0.0
        %2220 = vmatmul.mubr.f32.gmra.mrb[0].mxu0 %v416
        %v2221 = vpop.f32.mrb[0].mxu0
        %v2222 = vadd.f32 0.0, %v2221
        %v2223 = vpop.f32.mrb[0].mxu0
        %2224 = vmatprep.mubr.f32.mxu0 0.0
        %2225 = vmatmul.mubr.f32.gmra.mrb[0].mxu0 %v419
        %v2226 = vpop.f32.mrb[0].mxu0
        %v2227 = vadd.f32 0.0, %v2226
        %v2228 = vpop.f32.mrb[0].mxu0
        %2229 = vdwg.mxu0
        %s2230 = scalar_lea.vmem [#allocation4], 1536
        %v2231 = vld [vmem:[%s2230] sm:$0xff]
        %v2232 = vld [vmem:[%s2230 + $0x8] sm:$0xff]
        %v2233 = vld [vmem:[%s2230 + $0x10] sm:$0xff]
        %v2234 = vld [vmem:[%s2230 + $0x18] sm:$0xff]
        %v2235 = vld [vmem:[%s2230 + $0x20] sm:$0xff]
        %v2236 = vld [vmem:[%s2230 + $0x28] sm:$0xff]
        %v2237 = vld [vmem:[%s2230 + $0x30] sm:$0xff]
        %v2238 = vld [vmem:[%s2230 + $0x38] sm:$0xff]
        %v2239 = vld [vmem:[%s2230 + $0x40] sm:$0xff]
        %v2240 = vld [vmem:[%s2230 + $0x48] sm:$0xff]
        %v2241 = vld [vmem:[%s2230 + $0x50] sm:$0xff]
        %v2242 = vld [vmem:[%s2230 + $0x58] sm:$0xff]
        %v2243 = vld [vmem:[%s2230 + $0x60] sm:$0xff]
        %v2244 = vld [vmem:[%s2230 + $0x68] sm:$0xff]
        %v2245 = vld [vmem:[%s2230 + $0x70] sm:$0xff]
        %v2246 = vld [vmem:[%s2230 + $0x78] sm:$0xff]
        %v2247 = vld [vmem:[%s2230 + $0x80] sm:$0xff]
        %v2248 = vld [vmem:[%s2230 + $0x88] sm:$0xff]
        %v2249 = vld [vmem:[%s2230 + $0x90] sm:$0xff]
        %v2250 = vld [vmem:[%s2230 + $0x98] sm:$0xff]
        %v2251 = vld [vmem:[%s2230 + $0xa0] sm:$0xff]
        %v2252 = vld [vmem:[%s2230 + $0xa8] sm:$0xff]
        %v2253 = vld [vmem:[%s2230 + $0xb0] sm:$0xff]
        %v2254 = vld [vmem:[%s2230 + $0xb8] sm:$0xff]
        %v2255 = vld [vmem:[%s2230 + $0xc0] sm:$0xff]
        %v2256 = vld [vmem:[%s2230 + $0xc8] sm:$0xff]
        %v2257 = vld [vmem:[%s2230 + $0xd0] sm:$0xff]
        %v2258 = vld [vmem:[%s2230 + $0xd8] sm:$0xff]
        %v2259 = vld [vmem:[%s2230 + $0xe0] sm:$0xff]
        %v2260 = vld [vmem:[%s2230 + $0xe8] sm:$0xff]
        %v2261 = vld [vmem:[%s2230 + $0xf0] sm:$0xff]
        %v2262 = vld [vmem:[%s2230 + $0xf8] sm:$0xff]
        %v2263 = vld [vmem:[%s2230 + $0x100] sm:$0xff]
        %v2264 = vld [vmem:[%s2230 + $0x108] sm:$0xff]
        %v2265 = vld [vmem:[%s2230 + $0x110] sm:$0xff]
        %v2266 = vld [vmem:[%s2230 + $0x118] sm:$0xff]
        %v2267 = vld [vmem:[%s2230 + $0x120] sm:$0xff]
        %v2268 = vld [vmem:[%s2230 + $0x128] sm:$0xff]
        %v2269 = vld [vmem:[%s2230 + $0x130] sm:$0xff]
        %v2270 = vld [vmem:[%s2230 + $0x138] sm:$0xff]
        %v2271 = vld [vmem:[%s2230 + $0x140] sm:$0xff]
        %v2272 = vld [vmem:[%s2230 + $0x148] sm:$0xff]
        %v2273 = vld [vmem:[%s2230 + $0x150] sm:$0xff]
        %v2274 = vld [vmem:[%s2230 + $0x158] sm:$0xff]
        %v2275 = vld [vmem:[%s2230 + $0x160] sm:$0xff]
        %v2276 = vld [vmem:[%s2230 + $0x168] sm:$0xff]
        %v2277 = vld [vmem:[%s2230 + $0x170] sm:$0xff]
        %v2278 = vld [vmem:[%s2230 + $0x178] sm:$0xff]
        %s2279 = scalar_lea.vmem [#allocation6], 4
        %v2280 = vld [vmem:[%s2279] sm:$0x1]
        %v2282 = vlaneseq
        %v2283 = vshrl.u32 %v2282, 7
        %v2284 = vsub.s32 0, %v2283
        %v2285 = vrot.slane %v2280, %v2284
        %2287 = vmatprep.subr.mxu0 0.0
        %2288 = vmatpush1.msra.mxu0 %v2231
        %2289 = vmatprep.subr.mxu0 0.0
        %2290 = vmatpush1.msra.mxu0 %v2232
        %2291 = vmatprep.subr.mxu0 0.0
        %2292 = vmatpush1.msra.mxu0 %v2233
        %2293 = vmatprep.subr.mxu0 0.0
        %2294 = vmatpush1.msra.mxu0 %v2234
        %2295 = vmatprep.subr.mxu0 0.0
        %2296 = vmatpush1.msra.mxu0 %v2235
        %2297 = vmatprep.subr.mxu0 0.0
        %2298 = vmatpush1.msra.mxu0 %v2236
        %2299 = vmatprep.subr.mxu0 0.0
        %2300 = vmatpush1.msra.mxu0 %v2237
        %2301 = vmatprep.subr.mxu0 0.0
        %2302 = vmatpush1.msra.mxu0 %v2238
        %2303 = vmatprep.subr.mxu0 0.0
        %2304 = vmatpush1.msra.mxu0 %v2239
        %2305 = vmatprep.subr.mxu0 0.0
        %2306 = vmatpush1.msra.mxu0 %v2240
        %2307 = vmatprep.subr.mxu0 0.0
        %2308 = vmatpush1.msra.mxu0 %v2241
        %2309 = vmatprep.subr.mxu0 0.0
        %2310 = vmatpush1.msra.mxu0 %v2242
        %2311 = vmatprep.subr.mxu0 0.0
        %2312 = vmatpush1.msra.mxu0 %v2243
        %2313 = vmatprep.subr.mxu0 0.0
        %2314 = vmatpush1.msra.mxu0 %v2244
        %2315 = vmatprep.subr.mxu0 0.0
        %2316 = vmatpush1.msra.mxu0 %v2245
        %2317 = vmatprep.subr.mxu0 0.0
        %2318 = vmatpush1.msra.mxu0 %v2246
        %2319 = vmatprep.subr.mxu0 0.0
        %2320 = vmatpush1.msra.mxu0 %v2247
        %2321 = vmatprep.subr.mxu0 0.0
        %2322 = vmatpush1.msra.mxu0 %v2248
        %2323 = vmatprep.subr.mxu0 0.0
        %2324 = vmatpush1.msra.mxu0 %v2249
        %2325 = vmatprep.subr.mxu0 0.0
        %2326 = vmatpush1.msra.mxu0 %v2250
        %2327 = vmatprep.subr.mxu0 0.0
        %2328 = vmatpush1.msra.mxu0 %v2251
        %2329 = vmatprep.subr.mxu0 0.0
        %2330 = vmatpush1.msra.mxu0 %v2252
        %2331 = vmatprep.subr.mxu0 0.0
        %2332 = vmatpush1.msra.mxu0 %v2253
        %2333 = vmatprep.subr.mxu0 0.0
        %2334 = vmatpush1.msra.mxu0 %v2254
        %2335 = vmatprep.subr.mxu0 0.0
        %2336 = vmatpush1.msra.mxu0 %v2255
        %2337 = vmatprep.subr.mxu0 0.0
        %2338 = vmatpush1.msra.mxu0 %v2256
        %2339 = vmatprep.subr.mxu0 0.0
        %2340 = vmatpush1.msra.mxu0 %v2257
        %2341 = vmatprep.subr.mxu0 0.0
        %2342 = vmatpush1.msra.mxu0 %v2258
        %2343 = vmatprep.subr.mxu0 0.0
        %2344 = vmatpush1.msra.mxu0 %v2259
        %2345 = vmatprep.subr.mxu0 0.0
        %2346 = vmatpush1.msra.mxu0 %v2260
        %2347 = vmatprep.subr.mxu0 0.0
        %2348 = vmatpush1.msra.mxu0 %v2261
        %2349 = vmatprep.subr.mxu0 0.0
        %2350 = vmatpush1.msra.mxu0 %v2262
        %2351 = vmatprep.mubr.f32.mxu0 %v2147
        %2352 = vmatmul.mubr.f32.gmra.mrb[0].mxu0 %v2072
        %v2353 = vpop.f32.mrb[0].mxu0
        %v2354 = vadd.f32 %v2285, %v2353
        %v2355 = vpop.f32.mrb[0].mxu0
        %2356 = vmatprep.mubr.f32.mxu0 %v2152
        %2357 = vmatmul.mubr.f32.gmra.mrb[0].mxu0 %v2077
        %v2358 = vpop.f32.mrb[0].mxu0
        %v2359 = vadd.f32 %v2285, %v2358
        %v2360 = vpop.f32.mrb[0].mxu0
        %2361 = vdwg.mxu0
        %2362 = vmatprep.subr.mxu0 0.0
        %2363 = vmatpush1.msra.mxu0 %v2263
        %2364 = vmatprep.subr.mxu0 0.0
        %2365 = vmatpush1.msra.mxu0 %v2264
        %2366 = vmatprep.subr.mxu0 0.0
        %2367 = vmatpush1.msra.mxu0 %v2265
        %2368 = vmatprep.subr.mxu0 0.0
        %2369 = vmatpush1.msra.mxu0 %v2266
        %2370 = vmatprep.subr.mxu0 0.0
        %2371 = vmatpush1.msra.mxu0 %v2267
        %2372 = vmatprep.subr.mxu0 0.0
        %2373 = vmatpush1.msra.mxu0 %v2268
        %2374 = vmatprep.subr.mxu0 0.0
        %2375 = vmatpush1.msra.mxu0 %v2269
        %2376 = vmatprep.subr.mxu0 0.0
        %2377 = vmatpush1.msra.mxu0 %v2270
        %2378 = vmatprep.subr.mxu0 0.0
        %2379 = vmatpush1.msra.mxu0 %v2271
        %2380 = vmatprep.subr.mxu0 0.0
        %2381 = vmatpush1.msra.mxu0 %v2272
        %2382 = vmatprep.subr.mxu0 0.0
        %2383 = vmatpush1.msra.mxu0 %v2273
        %2384 = vmatprep.subr.mxu0 0.0
        %2385 = vmatpush1.msra.mxu0 %v2274
        %2386 = vmatprep.subr.mxu0 0.0
        %2387 = vmatpush1.msra.mxu0 %v2275
        %2388 = vmatprep.subr.mxu0 0.0
        %2389 = vmatpush1.msra.mxu0 %v2276
        %2390 = vmatprep.subr.mxu0 0.0
        %2391 = vmatpush1.msra.mxu0 %v2277
        %2392 = vmatprep.subr.mxu0 0.0
        %2393 = vmatpush1.msra.mxu0 %v2278
        %2394 = vmatprep.subr.mxu0 0.0
        %2395 = vmatpush1.msra.mxu0 0.0
        %2396 = vmatprep.subr.mxu0 0.0
        %2397 = vmatpush1.msra.mxu0 0.0
        %2398 = vmatprep.subr.mxu0 0.0
        %2399 = vmatpush1.msra.mxu0 0.0
        %2400 = vmatprep.subr.mxu0 0.0
        %2401 = vmatpush1.msra.mxu0 0.0
        %2402 = vmatprep.subr.mxu0 0.0
        %2403 = vmatpush1.msra.mxu0 0.0
        %2404 = vmatprep.subr.mxu0 0.0
        %2405 = vmatpush1.msra.mxu0 0.0
        %2406 = vmatprep.subr.mxu0 0.0
        %2407 = vmatpush1.msra.mxu0 0.0
        %2408 = vmatprep.subr.mxu0 0.0
        %2409 = vmatpush1.msra.mxu0 0.0
        %2410 = vmatprep.subr.mxu0 0.0
        %2411 = vmatpush1.msra.mxu0 0.0
        %2412 = vmatprep.subr.mxu0 0.0
        %2413 = vmatpush1.msra.mxu0 0.0
        %2414 = vmatprep.subr.mxu0 0.0
        %2415 = vmatpush1.msra.mxu0 0.0
        %2416 = vmatprep.subr.mxu0 0.0
        %2417 = vmatpush1.msra.mxu0 0.0
        %2418 = vmatprep.subr.mxu0 0.0
        %2419 = vmatpush1.msra.mxu0 0.0
        %2420 = vmatprep.subr.mxu0 0.0
        %2421 = vmatpush1.msra.mxu0 0.0
        %2422 = vmatprep.subr.mxu0 0.0
        %2423 = vmatpush1.msra.mxu0 0.0
        %2424 = vmatprep.subr.mxu0 0.0
        %2425 = vmatpush1.msra.mxu0 0.0
        %2426 = vmatprep.mubr.f32.mxu0 0.0
        %2427 = vmatmul.mubr.f32.gmra.mrb[0].mxu0 %v2222
        %v2428 = vpop.f32.mrb[0].mxu0
        %v2429 = vadd.f32 %v2354, %v2428
        %v2430 = vpop.f32.mrb[0].mxu0
        %2431 = vmatprep.mubr.f32.mxu0 0.0
        %2432 = vmatmul.mubr.f32.gmra.mrb[0].mxu0 %v2227
        %v2433 = vpop.f32.mrb[0].mxu0
        %v2434 = vadd.f32 %v2359, %v2433
        %v2435 = vpop.f32.mrb[0].mxu0
        %2436 = vdwg.mxu0
        %v2437 = vmax.f32 %v2429, 0.0
        %v2438 = vmax.f32 %v2434, 0.0
        %2439 = vmatprep.subr.mxu0 0.0
        %2440 = vmatpush1.msra.mxu0 %v2437
        %2441 = vmatprep.subr.mxu0 0.0
        %2442 = vmatpush1.msra.mxu0 %v2438
        %2443 = vmatprep.subr.mxu0 0.0
        %2444 = vmatpush1.msra.mxu0 0.0
        %2445 = vmatprep.subr.mxu0 0.0
        %2446 = vmatpush1.msra.mxu0 0.0
        %2447 = vmatprep.subr.mxu0 0.0
        %2448 = vmatpush1.msra.mxu0 0.0
        %2449 = vmatprep.subr.mxu0 0.0
        %2450 = vmatpush1.msra.mxu0 0.0
        %2451 = vmatprep.subr.mxu0 0.0
        %2452 = vmatpush1.msra.mxu0 0.0
        %2453 = vmatprep.subr.mxu0 0.0
        %2454 = vmatpush1.msra.mxu0 0.0
        %2455 = vmatprep.subr.mxu0 0.0
        %2456 = vmatpush1.msra.mxu0 0.0
        %2457 = vmatprep.subr.mxu0 0.0
        %2458 = vmatpush1.msra.mxu0 0.0
        %2459 = vmatprep.subr.mxu0 0.0
        %2460 = vmatpush1.msra.mxu0 0.0
        %2461 = vmatprep.subr.mxu0 0.0
        %2462 = vmatpush1.msra.mxu0 0.0
        %2463 = vmatprep.subr.mxu0 0.0
        %2464 = vmatpush1.msra.mxu0 0.0
        %2465 = vmatprep.subr.mxu0 0.0
        %2466 = vmatpush1.msra.mxu0 0.0
        %2467 = vmatprep.subr.mxu0 0.0
        %2468 = vmatpush1.msra.mxu0 0.0
        %2469 = vmatprep.subr.mxu0 0.0
        %2470 = vmatpush1.msra.mxu0 0.0
        %2471 = vmatprep.subr.mxu0 0.0
        %2472 = vmatpush1.msra.mxu0 0.0
        %2473 = vmatprep.subr.mxu0 0.0
        %2474 = vmatpush1.msra.mxu0 0.0
        %2475 = vmatprep.subr.mxu0 0.0
        %2476 = vmatpush1.msra.mxu0 0.0
        %2477 = vmatprep.subr.mxu0 0.0
        %2478 = vmatpush1.msra.mxu0 0.0
        %2479 = vmatprep.subr.mxu0 0.0
        %2480 = vmatpush1.msra.mxu0 0.0
        %2481 = vmatprep.subr.mxu0 0.0
        %2482 = vmatpush1.msra.mxu0 0.0
        %2483 = vmatprep.subr.mxu0 0.0
        %2484 = vmatpush1.msra.mxu0 0.0
        %2485 = vmatprep.subr.mxu0 0.0
        %2486 = vmatpush1.msra.mxu0 0.0
        %2487 = vmatprep.subr.mxu0 0.0
        %2488 = vmatpush1.msra.mxu0 0.0
        %2489 = vmatprep.subr.mxu0 0.0
        %2490 = vmatpush1.msra.mxu0 0.0
        %2491 = vmatprep.subr.mxu0 0.0
        %2492 = vmatpush1.msra.mxu0 0.0
        %2493 = vmatprep.subr.mxu0 0.0
        %2494 = vmatpush1.msra.mxu0 0.0
        %2495 = vmatprep.subr.mxu0 0.0
        %2496 = vmatpush1.msra.mxu0 0.0
        %2497 = vmatprep.subr.mxu0 0.0
        %2498 = vmatpush1.msra.mxu0 0.0
        %2499 = vmatprep.subr.mxu0 0.0
        %2500 = vmatpush1.msra.mxu0 0.0
        %2501 = vmatprep.subr.mxu0 0.0
        %2502 = vmatpush1.msra.mxu0 0.0
        %2503 = vmatprep.mubr.f32.mxu0 0.0
        %2504 = vmatmul.mubr.f32.gmra.mrb[0].mxu0 %v248
        %v2505 = vpop.f32.mrb[0].mxu0
        %v2506 = vadd.f32 0.0, %v2505
        %v2507 = vpop.f32.mrb[0].mxu0
        %2508 = vmatprep.mubr.f32.mxu0 0.0
        %2509 = vmatmul.mubr.f32.gmra.mrb[0].mxu0 %v251
        %v2510 = vpop.f32.mrb[0].mxu0
        %v2511 = vadd.f32 0.0, %v2510
        %v2512 = vpop.f32.mrb[0].mxu0
        %2513 = vdwg.mxu0
        %2514 = vmatprep.subr.mxu0 0.0
        %2515 = vmatpush1.msra.mxu0 %v2437
        %2516 = vmatprep.subr.mxu0 0.0
        %2517 = vmatpush1.msra.mxu0 %v2438
        %2518 = vmatprep.subr.mxu0 0.0
        %2519 = vmatpush1.msra.mxu0 0.0
        %2520 = vmatprep.subr.mxu0 0.0
        %2521 = vmatpush1.msra.mxu0 0.0
        %2522 = vmatprep.subr.mxu0 0.0
        %2523 = vmatpush1.msra.mxu0 0.0
        %2524 = vmatprep.subr.mxu0 0.0
        %2525 = vmatpush1.msra.mxu0 0.0
        %2526 = vmatprep.subr.mxu0 0.0
        %2527 = vmatpush1.msra.mxu0 0.0
        %2528 = vmatprep.subr.mxu0 0.0
        %2529 = vmatpush1.msra.mxu0 0.0
        %2530 = vmatprep.subr.mxu0 0.0
        %2531 = vmatpush1.msra.mxu0 0.0
        %2532 = vmatprep.subr.mxu0 0.0
        %2533 = vmatpush1.msra.mxu0 0.0
        %2534 = vmatprep.subr.mxu0 0.0
        %2535 = vmatpush1.msra.mxu0 0.0
        %2536 = vmatprep.subr.mxu0 0.0
        %2537 = vmatpush1.msra.mxu0 0.0
        %2538 = vmatprep.subr.mxu0 0.0
        %2539 = vmatpush1.msra.mxu0 0.0
        %2540 = vmatprep.subr.mxu0 0.0
        %2541 = vmatpush1.msra.mxu0 0.0
        %2542 = vmatprep.subr.mxu0 0.0
        %2543 = vmatpush1.msra.mxu0 0.0
        %2544 = vmatprep.subr.mxu0 0.0
        %2545 = vmatpush1.msra.mxu0 0.0
        %2546 = vmatprep.subr.mxu0 0.0
        %2547 = vmatpush1.msra.mxu0 0.0
        %2548 = vmatprep.subr.mxu0 0.0
        %2549 = vmatpush1.msra.mxu0 0.0
        %2550 = vmatprep.subr.mxu0 0.0
        %2551 = vmatpush1.msra.mxu0 0.0
        %2552 = vmatprep.subr.mxu0 0.0
        %2553 = vmatpush1.msra.mxu0 0.0
        %2554 = vmatprep.subr.mxu0 0.0
        %2555 = vmatpush1.msra.mxu0 0.0
        %2556 = vmatprep.subr.mxu0 0.0
        %2557 = vmatpush1.msra.mxu0 0.0
        %2558 = vmatprep.subr.mxu0 0.0
        %2559 = vmatpush1.msra.mxu0 0.0
        %2560 = vmatprep.subr.mxu0 0.0
        %2561 = vmatpush1.msra.mxu0 0.0
        %2562 = vmatprep.subr.mxu0 0.0
        %2563 = vmatpush1.msra.mxu0 0.0
        %2564 = vmatprep.subr.mxu0 0.0
        %2565 = vmatpush1.msra.mxu0 0.0
        %2566 = vmatprep.subr.mxu0 0.0
        %2567 = vmatpush1.msra.mxu0 0.0
        %2568 = vmatprep.subr.mxu0 0.0
        %2569 = vmatpush1.msra.mxu0 0.0
        %2570 = vmatprep.subr.mxu0 0.0
        %2571 = vmatpush1.msra.mxu0 0.0
        %2572 = vmatprep.subr.mxu0 0.0
        %2573 = vmatpush1.msra.mxu0 0.0
        %2574 = vmatprep.subr.mxu0 0.0
        %2575 = vmatpush1.msra.mxu0 0.0
        %2576 = vmatprep.subr.mxu0 0.0
        %2577 = vmatpush1.msra.mxu0 0.0
        %2578 = vmatprep.mubr.f32.mxu0 0.0
        %2579 = vmatmul.mubr.f32.gmra.mrb[0].mxu0 %v332
        %v2580 = vpop.f32.mrb[0].mxu0
        %v2581 = vadd.f32 0.0, %v2580
        %v2582 = vpop.f32.mrb[0].mxu0
        %2583 = vmatprep.mubr.f32.mxu0 0.0
        %2584 = vmatmul.mubr.f32.gmra.mrb[0].mxu0 %v335
        %v2585 = vpop.f32.mrb[0].mxu0
        %v2586 = vadd.f32 0.0, %v2585
        %v2587 = vpop.f32.mrb[0].mxu0
        %2588 = vdwg.mxu0
        %2589 = vmatprep.subr.mxu0 0.0
        %2590 = vmatpush1.msra.mxu0 %v2437
        %2591 = vmatprep.subr.mxu0 0.0
        %2592 = vmatpush1.msra.mxu0 %v2438
        %2593 = vmatprep.subr.mxu0 0.0
        %2594 = vmatpush1.msra.mxu0 0.0
        %2595 = vmatprep.subr.mxu0 0.0
        %2596 = vmatpush1.msra.mxu0 0.0
        %2597 = vmatprep.subr.mxu0 0.0
        %2598 = vmatpush1.msra.mxu0 0.0
        %2599 = vmatprep.subr.mxu0 0.0
        %2600 = vmatpush1.msra.mxu0 0.0
        %2601 = vmatprep.subr.mxu0 0.0
        %2602 = vmatpush1.msra.mxu0 0.0
        %2603 = vmatprep.subr.mxu0 0.0
        %2604 = vmatpush1.msra.mxu0 0.0
        %2605 = vmatprep.subr.mxu0 0.0
        %2606 = vmatpush1.msra.mxu0 0.0
        %2607 = vmatprep.subr.mxu0 0.0
        %2608 = vmatpush1.msra.mxu0 0.0
        %2609 = vmatprep.subr.mxu0 0.0
        %2610 = vmatpush1.msra.mxu0 0.0
        %2611 = vmatprep.subr.mxu0 0.0
        %2612 = vmatpush1.msra.mxu0 0.0
        %2613 = vmatprep.subr.mxu0 0.0
        %2614 = vmatpush1.msra.mxu0 0.0
        %2615 = vmatprep.subr.mxu0 0.0
        %2616 = vmatpush1.msra.mxu0 0.0
        %2617 = vmatprep.subr.mxu0 0.0
        %2618 = vmatpush1.msra.mxu0 0.0
        %2619 = vmatprep.subr.mxu0 0.0
        %2620 = vmatpush1.msra.mxu0 0.0
        %2621 = vmatprep.subr.mxu0 0.0
        %2622 = vmatpush1.msra.mxu0 0.0
        %2623 = vmatprep.subr.mxu0 0.0
        %2624 = vmatpush1.msra.mxu0 0.0
        %2625 = vmatprep.subr.mxu0 0.0
        %2626 = vmatpush1.msra.mxu0 0.0
        %2627 = vmatprep.subr.mxu0 0.0
        %2628 = vmatpush1.msra.mxu0 0.0
        %2629 = vmatprep.subr.mxu0 0.0
        %2630 = vmatpush1.msra.mxu0 0.0
        %2631 = vmatprep.subr.mxu0 0.0
        %2632 = vmatpush1.msra.mxu0 0.0
        %2633 = vmatprep.subr.mxu0 0.0
        %2634 = vmatpush1.msra.mxu0 0.0
        %2635 = vmatprep.subr.mxu0 0.0
        %2636 = vmatpush1.msra.mxu0 0.0
        %2637 = vmatprep.subr.mxu0 0.0
        %2638 = vmatpush1.msra.mxu0 0.0
        %2639 = vmatprep.subr.mxu0 0.0
        %2640 = vmatpush1.msra.mxu0 0.0
        %2641 = vmatprep.subr.mxu0 0.0
        %2642 = vmatpush1.msra.mxu0 0.0
        %2643 = vmatprep.subr.mxu0 0.0
        %2644 = vmatpush1.msra.mxu0 0.0
        %2645 = vmatprep.subr.mxu0 0.0
        %2646 = vmatpush1.msra.mxu0 0.0
        %2647 = vmatprep.subr.mxu0 0.0
        %2648 = vmatpush1.msra.mxu0 0.0
        %2649 = vmatprep.subr.mxu0 0.0
        %2650 = vmatpush1.msra.mxu0 0.0
        %2651 = vmatprep.subr.mxu0 0.0
        %2652 = vmatpush1.msra.mxu0 0.0
        %2653 = vmatprep.mubr.f32.mxu0 0.0
        %2654 = vmatmul.mubr.f32.gmra.mrb[0].mxu0 %v416
        %v2655 = vpop.f32.mrb[0].mxu0
        %v2656 = vadd.f32 0.0, %v2655
        %v2657 = vpop.f32.mrb[0].mxu0
        %2658 = vmatprep.mubr.f32.mxu0 0.0
        %2659 = vmatmul.mubr.f32.gmra.mrb[0].mxu0 %v419
        %v2660 = vpop.f32.mrb[0].mxu0
        %v2661 = vadd.f32 0.0, %v2660
        %v2662 = vpop.f32.mrb[0].mxu0
        %2663 = vdwg.mxu0
        %s2664 = scalar_lea.vmem [#allocation4], 1920
        %v2665 = vld [vmem:[%s2664] sm:$0xff]
        %v2666 = vld [vmem:[%s2664 + $0x8] sm:$0xff]
        %v2667 = vld [vmem:[%s2664 + $0x10] sm:$0xff]
        %v2668 = vld [vmem:[%s2664 + $0x18] sm:$0xff]
        %v2669 = vld [vmem:[%s2664 + $0x20] sm:$0xff]
        %v2670 = vld [vmem:[%s2664 + $0x28] sm:$0xff]
        %v2671 = vld [vmem:[%s2664 + $0x30] sm:$0xff]
        %v2672 = vld [vmem:[%s2664 + $0x38] sm:$0xff]
        %v2673 = vld [vmem:[%s2664 + $0x40] sm:$0xff]
        %v2674 = vld [vmem:[%s2664 + $0x48] sm:$0xff]
        %v2675 = vld [vmem:[%s2664 + $0x50] sm:$0xff]
        %v2676 = vld [vmem:[%s2664 + $0x58] sm:$0xff]
        %v2677 = vld [vmem:[%s2664 + $0x60] sm:$0xff]
        %v2678 = vld [vmem:[%s2664 + $0x68] sm:$0xff]
        %v2679 = vld [vmem:[%s2664 + $0x70] sm:$0xff]
        %v2680 = vld [vmem:[%s2664 + $0x78] sm:$0xff]
        %v2681 = vld [vmem:[%s2664 + $0x80] sm:$0xff]
        %v2682 = vld [vmem:[%s2664 + $0x88] sm:$0xff]
        %v2683 = vld [vmem:[%s2664 + $0x90] sm:$0xff]
        %v2684 = vld [vmem:[%s2664 + $0x98] sm:$0xff]
        %v2685 = vld [vmem:[%s2664 + $0xa0] sm:$0xff]
        %v2686 = vld [vmem:[%s2664 + $0xa8] sm:$0xff]
        %v2687 = vld [vmem:[%s2664 + $0xb0] sm:$0xff]
        %v2688 = vld [vmem:[%s2664 + $0xb8] sm:$0xff]
        %v2689 = vld [vmem:[%s2664 + $0xc0] sm:$0xff]
        %v2690 = vld [vmem:[%s2664 + $0xc8] sm:$0xff]
        %v2691 = vld [vmem:[%s2664 + $0xd0] sm:$0xff]
        %v2692 = vld [vmem:[%s2664 + $0xd8] sm:$0xff]
        %v2693 = vld [vmem:[%s2664 + $0xe0] sm:$0xff]
        %v2694 = vld [vmem:[%s2664 + $0xe8] sm:$0xff]
        %v2695 = vld [vmem:[%s2664 + $0xf0] sm:$0xff]
        %v2696 = vld [vmem:[%s2664 + $0xf8] sm:$0xff]
        %v2697 = vld [vmem:[%s2664 + $0x100] sm:$0xff]
        %v2698 = vld [vmem:[%s2664 + $0x108] sm:$0xff]
        %v2699 = vld [vmem:[%s2664 + $0x110] sm:$0xff]
        %v2700 = vld [vmem:[%s2664 + $0x118] sm:$0xff]
        %v2701 = vld [vmem:[%s2664 + $0x120] sm:$0xff]
        %v2702 = vld [vmem:[%s2664 + $0x128] sm:$0xff]
        %v2703 = vld [vmem:[%s2664 + $0x130] sm:$0xff]
        %v2704 = vld [vmem:[%s2664 + $0x138] sm:$0xff]
        %v2705 = vld [vmem:[%s2664 + $0x140] sm:$0xff]
        %v2706 = vld [vmem:[%s2664 + $0x148] sm:$0xff]
        %v2707 = vld [vmem:[%s2664 + $0x150] sm:$0xff]
        %v2708 = vld [vmem:[%s2664 + $0x158] sm:$0xff]
        %v2709 = vld [vmem:[%s2664 + $0x160] sm:$0xff]
        %v2710 = vld [vmem:[%s2664 + $0x168] sm:$0xff]
        %v2711 = vld [vmem:[%s2664 + $0x170] sm:$0xff]
        %v2712 = vld [vmem:[%s2664 + $0x178] sm:$0xff]
        %s2713 = scalar_lea.vmem [#allocation6], 5
        %v2714 = vld [vmem:[%s2713] sm:$0x1]
        %v2716 = vlaneseq
        %v2717 = vshrl.u32 %v2716, 7
        %v2718 = vsub.s32 0, %v2717
        %v2719 = vrot.slane %v2714, %v2718
        %2721 = vmatprep.subr.mxu0 0.0
        %2722 = vmatpush1.msra.mxu0 %v2665
        %2723 = vmatprep.subr.mxu0 0.0
        %2724 = vmatpush1.msra.mxu0 %v2666
        %2725 = vmatprep.subr.mxu0 0.0
        %2726 = vmatpush1.msra.mxu0 %v2667
        %2727 = vmatprep.subr.mxu0 0.0
        %2728 = vmatpush1.msra.mxu0 %v2668
        %2729 = vmatprep.subr.mxu0 0.0
        %2730 = vmatpush1.msra.mxu0 %v2669
        %2731 = vmatprep.subr.mxu0 0.0
        %2732 = vmatpush1.msra.mxu0 %v2670
        %2733 = vmatprep.subr.mxu0 0.0
        %2734 = vmatpush1.msra.mxu0 %v2671
        %2735 = vmatprep.subr.mxu0 0.0
        %2736 = vmatpush1.msra.mxu0 %v2672
        %2737 = vmatprep.subr.mxu0 0.0
        %2738 = vmatpush1.msra.mxu0 %v2673
        %2739 = vmatprep.subr.mxu0 0.0
        %2740 = vmatpush1.msra.mxu0 %v2674
        %2741 = vmatprep.subr.mxu0 0.0
        %2742 = vmatpush1.msra.mxu0 %v2675
        %2743 = vmatprep.subr.mxu0 0.0
        %2744 = vmatpush1.msra.mxu0 %v2676
        %2745 = vmatprep.subr.mxu0 0.0
        %2746 = vmatpush1.msra.mxu0 %v2677
        %2747 = vmatprep.subr.mxu0 0.0
        %2748 = vmatpush1.msra.mxu0 %v2678
        %2749 = vmatprep.subr.mxu0 0.0
        %2750 = vmatpush1.msra.mxu0 %v2679
        %2751 = vmatprep.subr.mxu0 0.0
        %2752 = vmatpush1.msra.mxu0 %v2680
        %2753 = vmatprep.subr.mxu0 0.0
        %2754 = vmatpush1.msra.mxu0 %v2681
        %2755 = vmatprep.subr.mxu0 0.0
        %2756 = vmatpush1.msra.mxu0 %v2682
        %2757 = vmatprep.subr.mxu0 0.0
        %2758 = vmatpush1.msra.mxu0 %v2683
        %2759 = vmatprep.subr.mxu0 0.0
        %2760 = vmatpush1.msra.mxu0 %v2684
        %2761 = vmatprep.subr.mxu0 0.0
        %2762 = vmatpush1.msra.mxu0 %v2685
        %2763 = vmatprep.subr.mxu0 0.0
        %2764 = vmatpush1.msra.mxu0 %v2686
        %2765 = vmatprep.subr.mxu0 0.0
        %2766 = vmatpush1.msra.mxu0 %v2687
        %2767 = vmatprep.subr.mxu0 0.0
        %2768 = vmatpush1.msra.mxu0 %v2688
        %2769 = vmatprep.subr.mxu0 0.0
        %2770 = vmatpush1.msra.mxu0 %v2689
        %2771 = vmatprep.subr.mxu0 0.0
        %2772 = vmatpush1.msra.mxu0 %v2690
        %2773 = vmatprep.subr.mxu0 0.0
        %2774 = vmatpush1.msra.mxu0 %v2691
        %2775 = vmatprep.subr.mxu0 0.0
        %2776 = vmatpush1.msra.mxu0 %v2692
        %2777 = vmatprep.subr.mxu0 0.0
        %2778 = vmatpush1.msra.mxu0 %v2693
        %2779 = vmatprep.subr.mxu0 0.0
        %2780 = vmatpush1.msra.mxu0 %v2694
        %2781 = vmatprep.subr.mxu0 0.0
        %2782 = vmatpush1.msra.mxu0 %v2695
        %2783 = vmatprep.subr.mxu0 0.0
        %2784 = vmatpush1.msra.mxu0 %v2696
        %2785 = vmatprep.mubr.f32.mxu0 %v2581
        %2786 = vmatmul.mubr.f32.gmra.mrb[0].mxu0 %v2506
        %v2787 = vpop.f32.mrb[0].mxu0
        %v2788 = vadd.f32 %v2719, %v2787
        %v2789 = vpop.f32.mrb[0].mxu0
        %2790 = vmatprep.mubr.f32.mxu0 %v2586
        %2791 = vmatmul.mubr.f32.gmra.mrb[0].mxu0 %v2511
        %v2792 = vpop.f32.mrb[0].mxu0
        %v2793 = vadd.f32 %v2719, %v2792
        %v2794 = vpop.f32.mrb[0].mxu0
        %2795 = vdwg.mxu0
        %2796 = vmatprep.subr.mxu0 0.0
        %2797 = vmatpush1.msra.mxu0 %v2697
        %2798 = vmatprep.subr.mxu0 0.0
        %2799 = vmatpush1.msra.mxu0 %v2698
        %2800 = vmatprep.subr.mxu0 0.0
        %2801 = vmatpush1.msra.mxu0 %v2699
        %2802 = vmatprep.subr.mxu0 0.0
        %2803 = vmatpush1.msra.mxu0 %v2700
        %2804 = vmatprep.subr.mxu0 0.0
        %2805 = vmatpush1.msra.mxu0 %v2701
        %2806 = vmatprep.subr.mxu0 0.0
        %2807 = vmatpush1.msra.mxu0 %v2702
        %2808 = vmatprep.subr.mxu0 0.0
        %2809 = vmatpush1.msra.mxu0 %v2703
        %2810 = vmatprep.subr.mxu0 0.0
        %2811 = vmatpush1.msra.mxu0 %v2704
        %2812 = vmatprep.subr.mxu0 0.0
        %2813 = vmatpush1.msra.mxu0 %v2705
        %2814 = vmatprep.subr.mxu0 0.0
        %2815 = vmatpush1.msra.mxu0 %v2706
        %2816 = vmatprep.subr.mxu0 0.0
        %2817 = vmatpush1.msra.mxu0 %v2707
        %2818 = vmatprep.subr.mxu0 0.0
        %2819 = vmatpush1.msra.mxu0 %v2708
        %2820 = vmatprep.subr.mxu0 0.0
        %2821 = vmatpush1.msra.mxu0 %v2709
        %2822 = vmatprep.subr.mxu0 0.0
        %2823 = vmatpush1.msra.mxu0 %v2710
        %2824 = vmatprep.subr.mxu0 0.0
        %2825 = vmatpush1.msra.mxu0 %v2711
        %2826 = vmatprep.subr.mxu0 0.0
        %2827 = vmatpush1.msra.mxu0 %v2712
        %2828 = vmatprep.subr.mxu0 0.0
        %2829 = vmatpush1.msra.mxu0 0.0
        %2830 = vmatprep.subr.mxu0 0.0
        %2831 = vmatpush1.msra.mxu0 0.0
        %2832 = vmatprep.subr.mxu0 0.0
        %2833 = vmatpush1.msra.mxu0 0.0
        %2834 = vmatprep.subr.mxu0 0.0
        %2835 = vmatpush1.msra.mxu0 0.0
        %2836 = vmatprep.subr.mxu0 0.0
        %2837 = vmatpush1.msra.mxu0 0.0
        %2838 = vmatprep.subr.mxu0 0.0
        %2839 = vmatpush1.msra.mxu0 0.0
        %2840 = vmatprep.subr.mxu0 0.0
        %2841 = vmatpush1.msra.mxu0 0.0
        %2842 = vmatprep.subr.mxu0 0.0
        %2843 = vmatpush1.msra.mxu0 0.0
        %2844 = vmatprep.subr.mxu0 0.0
        %2845 = vmatpush1.msra.mxu0 0.0
        %2846 = vmatprep.subr.mxu0 0.0
        %2847 = vmatpush1.msra.mxu0 0.0
        %2848 = vmatprep.subr.mxu0 0.0
        %2849 = vmatpush1.msra.mxu0 0.0
        %2850 = vmatprep.subr.mxu0 0.0
        %2851 = vmatpush1.msra.mxu0 0.0
        %2852 = vmatprep.subr.mxu0 0.0
        %2853 = vmatpush1.msra.mxu0 0.0
        %2854 = vmatprep.subr.mxu0 0.0
        %2855 = vmatpush1.msra.mxu0 0.0
        %2856 = vmatprep.subr.mxu0 0.0
        %2857 = vmatpush1.msra.mxu0 0.0
        %2858 = vmatprep.subr.mxu0 0.0
        %2859 = vmatpush1.msra.mxu0 0.0
        %2860 = vmatprep.mubr.f32.mxu0 0.0
        %2861 = vmatmul.mubr.f32.gmra.mrb[0].mxu0 %v2656
        %v2862 = vpop.f32.mrb[0].mxu0
        %v2863 = vadd.f32 %v2788, %v2862
        %v2864 = vpop.f32.mrb[0].mxu0
        %2865 = vmatprep.mubr.f32.mxu0 0.0
        %2866 = vmatmul.mubr.f32.gmra.mrb[0].mxu0 %v2661
        %v2867 = vpop.f32.mrb[0].mxu0
        %v2868 = vadd.f32 %v2793, %v2867
        %v2869 = vpop.f32.mrb[0].mxu0
        %2870 = vdwg.mxu0
        %v2871 = vmax.f32 %v2863, 0.0
        %v2872 = vmax.f32 %v2868, 0.0
        %2873 = vmatprep.subr.mxu0 0.0
        %2874 = vmatpush1.msra.mxu0 %v2871
        %2875 = vmatprep.subr.mxu0 0.0
        %2876 = vmatpush1.msra.mxu0 %v2872
        %2877 = vmatprep.subr.mxu0 0.0
        %2878 = vmatpush1.msra.mxu0 0.0
        %2879 = vmatprep.subr.mxu0 0.0
        %2880 = vmatpush1.msra.mxu0 0.0
        %2881 = vmatprep.subr.mxu0 0.0
        %2882 = vmatpush1.msra.mxu0 0.0
        %2883 = vmatprep.subr.mxu0 0.0
        %2884 = vmatpush1.msra.mxu0 0.0
        %2885 = vmatprep.subr.mxu0 0.0
        %2886 = vmatpush1.msra.mxu0 0.0
        %2887 = vmatprep.subr.mxu0 0.0
        %2888 = vmatpush1.msra.mxu0 0.0
        %2889 = vmatprep.subr.mxu0 0.0
        %2890 = vmatpush1.msra.mxu0 0.0
        %2891 = vmatprep.subr.mxu0 0.0
        %2892 = vmatpush1.msra.mxu0 0.0
        %2893 = vmatprep.subr.mxu0 0.0
        %2894 = vmatpush1.msra.mxu0 0.0
        %2895 = vmatprep.subr.mxu0 0.0
        %2896 = vmatpush1.msra.mxu0 0.0
        %2897 = vmatprep.subr.mxu0 0.0
        %2898 = vmatpush1.msra.mxu0 0.0
        %2899 = vmatprep.subr.mxu0 0.0
        %2900 = vmatpush1.msra.mxu0 0.0
        %2901 = vmatprep.subr.mxu0 0.0
        %2902 = vmatpush1.msra.mxu0 0.0
        %2903 = vmatprep.subr.mxu0 0.0
        %2904 = vmatpush1.msra.mxu0 0.0
        %2905 = vmatprep.subr.mxu0 0.0
        %2906 = vmatpush1.msra.mxu0 0.0
        %2907 = vmatprep.subr.mxu0 0.0
        %2908 = vmatpush1.msra.mxu0 0.0
        %2909 = vmatprep.subr.mxu0 0.0
        %2910 = vmatpush1.msra.mxu0 0.0
        %2911 = vmatprep.subr.mxu0 0.0
        %2912 = vmatpush1.msra.mxu0 0.0
        %2913 = vmatprep.subr.mxu0 0.0
        %2914 = vmatpush1.msra.mxu0 0.0
        %2915 = vmatprep.subr.mxu0 0.0
        %2916 = vmatpush1.msra.mxu0 0.0
        %2917 = vmatprep.subr.mxu0 0.0
        %2918 = vmatpush1.msra.mxu0 0.0
        %2919 = vmatprep.subr.mxu0 0.0
        %2920 = vmatpush1.msra.mxu0 0.0
        %2921 = vmatprep.subr.mxu0 0.0
        %2922 = vmatpush1.msra.mxu0 0.0
        %2923 = vmatprep.subr.mxu0 0.0
        %2924 = vmatpush1.msra.mxu0 0.0
        %2925 = vmatprep.subr.mxu0 0.0
        %2926 = vmatpush1.msra.mxu0 0.0
        %2927 = vmatprep.subr.mxu0 0.0
        %2928 = vmatpush1.msra.mxu0 0.0
        %2929 = vmatprep.subr.mxu0 0.0
        %2930 = vmatpush1.msra.mxu0 0.0
        %2931 = vmatprep.subr.mxu0 0.0
        %2932 = vmatpush1.msra.mxu0 0.0
        %2933 = vmatprep.subr.mxu0 0.0
        %2934 = vmatpush1.msra.mxu0 0.0
        %2935 = vmatprep.subr.mxu0 0.0
        %2936 = vmatpush1.msra.mxu0 0.0
        %2937 = vmatprep.mubr.f32.mxu0 0.0
        %2938 = vmatmul.mubr.f32.gmra.mrb[0].mxu0 %v248
        %v2939 = vpop.f32.mrb[0].mxu0
        %v2940 = vadd.f32 0.0, %v2939
        %v2941 = vpop.f32.mrb[0].mxu0
        %2942 = vmatprep.mubr.f32.mxu0 0.0
        %2943 = vmatmul.mubr.f32.gmra.mrb[0].mxu0 %v251
        %v2944 = vpop.f32.mrb[0].mxu0
        %v2945 = vadd.f32 0.0, %v2944
        %v2946 = vpop.f32.mrb[0].mxu0
        %2947 = vdwg.mxu0
        %2948 = vmatprep.subr.mxu0 0.0
        %2949 = vmatpush1.msra.mxu0 %v2871
        %2950 = vmatprep.subr.mxu0 0.0
        %2951 = vmatpush1.msra.mxu0 %v2872
        %2952 = vmatprep.subr.mxu0 0.0
        %2953 = vmatpush1.msra.mxu0 0.0
        %2954 = vmatprep.subr.mxu0 0.0
        %2955 = vmatpush1.msra.mxu0 0.0
        %2956 = vmatprep.subr.mxu0 0.0
        %2957 = vmatpush1.msra.mxu0 0.0
        %2958 = vmatprep.subr.mxu0 0.0
        %2959 = vmatpush1.msra.mxu0 0.0
        %2960 = vmatprep.subr.mxu0 0.0
        %2961 = vmatpush1.msra.mxu0 0.0
        %2962 = vmatprep.subr.mxu0 0.0
        %2963 = vmatpush1.msra.mxu0 0.0
        %2964 = vmatprep.subr.mxu0 0.0
        %2965 = vmatpush1.msra.mxu0 0.0
        %2966 = vmatprep.subr.mxu0 0.0
        %2967 = vmatpush1.msra.mxu0 0.0
        %2968 = vmatprep.subr.mxu0 0.0
        %2969 = vmatpush1.msra.mxu0 0.0
        %2970 = vmatprep.subr.mxu0 0.0
        %2971 = vmatpush1.msra.mxu0 0.0
        %2972 = vmatprep.subr.mxu0 0.0
        %2973 = vmatpush1.msra.mxu0 0.0
        %2974 = vmatprep.subr.mxu0 0.0
        %2975 = vmatpush1.msra.mxu0 0.0
        %2976 = vmatprep.subr.mxu0 0.0
        %2977 = vmatpush1.msra.mxu0 0.0
        %2978 = vmatprep.subr.mxu0 0.0
        %2979 = vmatpush1.msra.mxu0 0.0
        %2980 = vmatprep.subr.mxu0 0.0
        %2981 = vmatpush1.msra.mxu0 0.0
        %2982 = vmatprep.subr.mxu0 0.0
        %2983 = vmatpush1.msra.mxu0 0.0
        %2984 = vmatprep.subr.mxu0 0.0
        %2985 = vmatpush1.msra.mxu0 0.0
        %2986 = vmatprep.subr.mxu0 0.0
        %2987 = vmatpush1.msra.mxu0 0.0
        %2988 = vmatprep.subr.mxu0 0.0
        %2989 = vmatpush1.msra.mxu0 0.0
        %2990 = vmatprep.subr.mxu0 0.0
        %2991 = vmatpush1.msra.mxu0 0.0
        %2992 = vmatprep.subr.mxu0 0.0
        %2993 = vmatpush1.msra.mxu0 0.0
        %2994 = vmatprep.subr.mxu0 0.0
        %2995 = vmatpush1.msra.mxu0 0.0
        %2996 = vmatprep.subr.mxu0 0.0
        %2997 = vmatpush1.msra.mxu0 0.0
        %2998 = vmatprep.subr.mxu0 0.0
        %2999 = vmatpush1.msra.mxu0 0.0
        %3000 = vmatprep.subr.mxu0 0.0
        %3001 = vmatpush1.msra.mxu0 0.0
        %3002 = vmatprep.subr.mxu0 0.0
        %3003 = vmatpush1.msra.mxu0 0.0
        %3004 = vmatprep.subr.mxu0 0.0
        %3005 = vmatpush1.msra.mxu0 0.0
        %3006 = vmatprep.subr.mxu0 0.0
        %3007 = vmatpush1.msra.mxu0 0.0
        %3008 = vmatprep.subr.mxu0 0.0
        %3009 = vmatpush1.msra.mxu0 0.0
        %3010 = vmatprep.subr.mxu0 0.0
        %3011 = vmatpush1.msra.mxu0 0.0
        %3012 = vmatprep.mubr.f32.mxu0 0.0
        %3013 = vmatmul.mubr.f32.gmra.mrb[0].mxu0 %v332
        %v3014 = vpop.f32.mrb[0].mxu0
        %v3015 = vadd.f32 0.0, %v3014
        %v3016 = vpop.f32.mrb[0].mxu0
        %3017 = vmatprep.mubr.f32.mxu0 0.0
        %3018 = vmatmul.mubr.f32.gmra.mrb[0].mxu0 %v335
        %v3019 = vpop.f32.mrb[0].mxu0
        %v3020 = vadd.f32 0.0, %v3019
        %v3021 = vpop.f32.mrb[0].mxu0
        %3022 = vdwg.mxu0
        %3023 = vmatprep.subr.mxu0 0.0
        %3024 = vmatpush1.msra.mxu0 %v2871
        %3025 = vmatprep.subr.mxu0 0.0
        %3026 = vmatpush1.msra.mxu0 %v2872
        %3027 = vmatprep.subr.mxu0 0.0
        %3028 = vmatpush1.msra.mxu0 0.0
        %3029 = vmatprep.subr.mxu0 0.0
        %3030 = vmatpush1.msra.mxu0 0.0
        %3031 = vmatprep.subr.mxu0 0.0
        %3032 = vmatpush1.msra.mxu0 0.0
        %3033 = vmatprep.subr.mxu0 0.0
        %3034 = vmatpush1.msra.mxu0 0.0
        %3035 = vmatprep.subr.mxu0 0.0
        %3036 = vmatpush1.msra.mxu0 0.0
        %3037 = vmatprep.subr.mxu0 0.0
        %3038 = vmatpush1.msra.mxu0 0.0
        %3039 = vmatprep.subr.mxu0 0.0
        %3040 = vmatpush1.msra.mxu0 0.0
        %3041 = vmatprep.subr.mxu0 0.0
        %3042 = vmatpush1.msra.mxu0 0.0
        %3043 = vmatprep.subr.mxu0 0.0
        %3044 = vmatpush1.msra.mxu0 0.0
        %3045 = vmatprep.subr.mxu0 0.0
        %3046 = vmatpush1.msra.mxu0 0.0
        %3047 = vmatprep.subr.mxu0 0.0
        %3048 = vmatpush1.msra.mxu0 0.0
        %3049 = vmatprep.subr.mxu0 0.0
        %3050 = vmatpush1.msra.mxu0 0.0
        %3051 = vmatprep.subr.mxu0 0.0
        %3052 = vmatpush1.msra.mxu0 0.0
        %3053 = vmatprep.subr.mxu0 0.0
        %3054 = vmatpush1.msra.mxu0 0.0
        %3055 = vmatprep.subr.mxu0 0.0
        %3056 = vmatpush1.msra.mxu0 0.0
        %3057 = vmatprep.subr.mxu0 0.0
        %3058 = vmatpush1.msra.mxu0 0.0
        %3059 = vmatprep.subr.mxu0 0.0
        %3060 = vmatpush1.msra.mxu0 0.0
        %3061 = vmatprep.subr.mxu0 0.0
        %3062 = vmatpush1.msra.mxu0 0.0
        %3063 = vmatprep.subr.mxu0 0.0
        %3064 = vmatpush1.msra.mxu0 0.0
        %3065 = vmatprep.subr.mxu0 0.0
        %3066 = vmatpush1.msra.mxu0 0.0
        %3067 = vmatprep.subr.mxu0 0.0
        %3068 = vmatpush1.msra.mxu0 0.0
        %3069 = vmatprep.subr.mxu0 0.0
        %3070 = vmatpush1.msra.mxu0 0.0
        %3071 = vmatprep.subr.mxu0 0.0
        %3072 = vmatpush1.msra.mxu0 0.0
        %3073 = vmatprep.subr.mxu0 0.0
        %3074 = vmatpush1.msra.mxu0 0.0
        %3075 = vmatprep.subr.mxu0 0.0
        %3076 = vmatpush1.msra.mxu0 0.0
        %3077 = vmatprep.subr.mxu0 0.0
        %3078 = vmatpush1.msra.mxu0 0.0
        %3079 = vmatprep.subr.mxu0 0.0
        %3080 = vmatpush1.msra.mxu0 0.0
        %3081 = vmatprep.subr.mxu0 0.0
        %3082 = vmatpush1.msra.mxu0 0.0
        %3083 = vmatprep.subr.mxu0 0.0
        %3084 = vmatpush1.msra.mxu0 0.0
        %3085 = vmatprep.subr.mxu0 0.0
        %3086 = vmatpush1.msra.mxu0 0.0
        %3087 = vmatprep.mubr.f32.mxu0 0.0
        %3088 = vmatmul.mubr.f32.gmra.mrb[0].mxu0 %v416
        %v3089 = vpop.f32.mrb[0].mxu0
        %v3090 = vadd.f32 0.0, %v3089
        %v3091 = vpop.f32.mrb[0].mxu0
        %3092 = vmatprep.mubr.f32.mxu0 0.0
        %3093 = vmatmul.mubr.f32.gmra.mrb[0].mxu0 %v419
        %v3094 = vpop.f32.mrb[0].mxu0
        %v3095 = vadd.f32 0.0, %v3094
        %v3096 = vpop.f32.mrb[0].mxu0
        %3097 = vdwg.mxu0
        %s3098 = scalar_lea.vmem [#allocation4], 2304
        %v3099 = vld [vmem:[%s3098] sm:$0xff]
        %v3100 = vld [vmem:[%s3098 + $0x8] sm:$0xff]
        %v3101 = vld [vmem:[%s3098 + $0x10] sm:$0xff]
        %v3102 = vld [vmem:[%s3098 + $0x18] sm:$0xff]
        %v3103 = vld [vmem:[%s3098 + $0x20] sm:$0xff]
        %v3104 = vld [vmem:[%s3098 + $0x28] sm:$0xff]
        %v3105 = vld [vmem:[%s3098 + $0x30] sm:$0xff]
        %v3106 = vld [vmem:[%s3098 + $0x38] sm:$0xff]
        %v3107 = vld [vmem:[%s3098 + $0x40] sm:$0xff]
        %v3108 = vld [vmem:[%s3098 + $0x48] sm:$0xff]
        %v3109 = vld [vmem:[%s3098 + $0x50] sm:$0xff]
        %v3110 = vld [vmem:[%s3098 + $0x58] sm:$0xff]
        %v3111 = vld [vmem:[%s3098 + $0x60] sm:$0xff]
        %v3112 = vld [vmem:[%s3098 + $0x68] sm:$0xff]
        %v3113 = vld [vmem:[%s3098 + $0x70] sm:$0xff]
        %v3114 = vld [vmem:[%s3098 + $0x78] sm:$0xff]
        %v3115 = vld [vmem:[%s3098 + $0x80] sm:$0xff]
        %v3116 = vld [vmem:[%s3098 + $0x88] sm:$0xff]
        %v3117 = vld [vmem:[%s3098 + $0x90] sm:$0xff]
        %v3118 = vld [vmem:[%s3098 + $0x98] sm:$0xff]
        %v3119 = vld [vmem:[%s3098 + $0xa0] sm:$0xff]
        %v3120 = vld [vmem:[%s3098 + $0xa8] sm:$0xff]
        %v3121 = vld [vmem:[%s3098 + $0xb0] sm:$0xff]
        %v3122 = vld [vmem:[%s3098 + $0xb8] sm:$0xff]
        %v3123 = vld [vmem:[%s3098 + $0xc0] sm:$0xff]
        %v3124 = vld [vmem:[%s3098 + $0xc8] sm:$0xff]
        %v3125 = vld [vmem:[%s3098 + $0xd0] sm:$0xff]
        %v3126 = vld [vmem:[%s3098 + $0xd8] sm:$0xff]
        %v3127 = vld [vmem:[%s3098 + $0xe0] sm:$0xff]
        %v3128 = vld [vmem:[%s3098 + $0xe8] sm:$0xff]
        %v3129 = vld [vmem:[%s3098 + $0xf0] sm:$0xff]
        %v3130 = vld [vmem:[%s3098 + $0xf8] sm:$0xff]
        %v3131 = vld [vmem:[%s3098 + $0x100] sm:$0xff]
        %v3132 = vld [vmem:[%s3098 + $0x108] sm:$0xff]
        %v3133 = vld [vmem:[%s3098 + $0x110] sm:$0xff]
        %v3134 = vld [vmem:[%s3098 + $0x118] sm:$0xff]
        %v3135 = vld [vmem:[%s3098 + $0x120] sm:$0xff]
        %v3136 = vld [vmem:[%s3098 + $0x128] sm:$0xff]
        %v3137 = vld [vmem:[%s3098 + $0x130] sm:$0xff]
        %v3138 = vld [vmem:[%s3098 + $0x138] sm:$0xff]
        %v3139 = vld [vmem:[%s3098 + $0x140] sm:$0xff]
        %v3140 = vld [vmem:[%s3098 + $0x148] sm:$0xff]
        %v3141 = vld [vmem:[%s3098 + $0x150] sm:$0xff]
        %v3142 = vld [vmem:[%s3098 + $0x158] sm:$0xff]
        %v3143 = vld [vmem:[%s3098 + $0x160] sm:$0xff]
        %v3144 = vld [vmem:[%s3098 + $0x168] sm:$0xff]
        %v3145 = vld [vmem:[%s3098 + $0x170] sm:$0xff]
        %v3146 = vld [vmem:[%s3098 + $0x178] sm:$0xff]
        %s3147 = scalar_lea.vmem [#allocation6], 6
        %v3148 = vld [vmem:[%s3147] sm:$0x1]
        %v3150 = vlaneseq
        %v3151 = vshrl.u32 %v3150, 7
        %v3152 = vsub.s32 0, %v3151
        %v3153 = vrot.slane %v3148, %v3152
        %3155 = vmatprep.subr.mxu0 0.0
        %3156 = vmatpush1.msra.mxu0 %v3099
        %3157 = vmatprep.subr.mxu0 0.0
        %3158 = vmatpush1.msra.mxu0 %v3100
        %3159 = vmatprep.subr.mxu0 0.0
        %3160 = vmatpush1.msra.mxu0 %v3101
        %3161 = vmatprep.subr.mxu0 0.0
        %3162 = vmatpush1.msra.mxu0 %v3102
        %3163 = vmatprep.subr.mxu0 0.0
        %3164 = vmatpush1.msra.mxu0 %v3103
        %3165 = vmatprep.subr.mxu0 0.0
        %3166 = vmatpush1.msra.mxu0 %v3104
        %3167 = vmatprep.subr.mxu0 0.0
        %3168 = vmatpush1.msra.mxu0 %v3105
        %3169 = vmatprep.subr.mxu0 0.0
        %3170 = vmatpush1.msra.mxu0 %v3106
        %3171 = vmatprep.subr.mxu0 0.0
        %3172 = vmatpush1.msra.mxu0 %v3107
        %3173 = vmatprep.subr.mxu0 0.0
        %3174 = vmatpush1.msra.mxu0 %v3108
        %3175 = vmatprep.subr.mxu0 0.0
        %3176 = vmatpush1.msra.mxu0 %v3109
        %3177 = vmatprep.subr.mxu0 0.0
        %3178 = vmatpush1.msra.mxu0 %v3110
        %3179 = vmatprep.subr.mxu0 0.0
        %3180 = vmatpush1.msra.mxu0 %v3111
        %3181 = vmatprep.subr.mxu0 0.0
        %3182 = vmatpush1.msra.mxu0 %v3112
        %3183 = vmatprep.subr.mxu0 0.0
        %3184 = vmatpush1.msra.mxu0 %v3113
        %3185 = vmatprep.subr.mxu0 0.0
        %3186 = vmatpush1.msra.mxu0 %v3114
        %3187 = vmatprep.subr.mxu0 0.0
        %3188 = vmatpush1.msra.mxu0 %v3115
        %3189 = vmatprep.subr.mxu0 0.0
        %3190 = vmatpush1.msra.mxu0 %v3116
        %3191 = vmatprep.subr.mxu0 0.0
        %3192 = vmatpush1.msra.mxu0 %v3117
        %3193 = vmatprep.subr.mxu0 0.0
        %3194 = vmatpush1.msra.mxu0 %v3118
        %3195 = vmatprep.subr.mxu0 0.0
        %3196 = vmatpush1.msra.mxu0 %v3119
        %3197 = vmatprep.subr.mxu0 0.0
        %3198 = vmatpush1.msra.mxu0 %v3120
        %3199 = vmatprep.subr.mxu0 0.0
        %3200 = vmatpush1.msra.mxu0 %v3121
        %3201 = vmatprep.subr.mxu0 0.0
        %3202 = vmatpush1.msra.mxu0 %v3122
        %3203 = vmatprep.subr.mxu0 0.0
        %3204 = vmatpush1.msra.mxu0 %v3123
        %3205 = vmatprep.subr.mxu0 0.0
        %3206 = vmatpush1.msra.mxu0 %v3124
        %3207 = vmatprep.subr.mxu0 0.0
        %3208 = vmatpush1.msra.mxu0 %v3125
        %3209 = vmatprep.subr.mxu0 0.0
        %3210 = vmatpush1.msra.mxu0 %v3126
        %3211 = vmatprep.subr.mxu0 0.0
        %3212 = vmatpush1.msra.mxu0 %v3127
        %3213 = vmatprep.subr.mxu0 0.0
        %3214 = vmatpush1.msra.mxu0 %v3128
        %3215 = vmatprep.subr.mxu0 0.0
        %3216 = vmatpush1.msra.mxu0 %v3129
        %3217 = vmatprep.subr.mxu0 0.0
        %3218 = vmatpush1.msra.mxu0 %v3130
        %3219 = vmatprep.mubr.f32.mxu0 %v3015
        %3220 = vmatmul.mubr.f32.gmra.mrb[0].mxu0 %v2940
        %v3221 = vpop.f32.mrb[0].mxu0
        %v3222 = vadd.f32 %v3153, %v3221
        %v3223 = vpop.f32.mrb[0].mxu0
        %3224 = vmatprep.mubr.f32.mxu0 %v3020
        %3225 = vmatmul.mubr.f32.gmra.mrb[0].mxu0 %v2945
        %v3226 = vpop.f32.mrb[0].mxu0
        %v3227 = vadd.f32 %v3153, %v3226
        %v3228 = vpop.f32.mrb[0].mxu0
        %3229 = vdwg.mxu0
        %3230 = vmatprep.subr.mxu0 0.0
        %3231 = vmatpush1.msra.mxu0 %v3131
        %3232 = vmatprep.subr.mxu0 0.0
        %3233 = vmatpush1.msra.mxu0 %v3132
        %3234 = vmatprep.subr.mxu0 0.0
        %3235 = vmatpush1.msra.mxu0 %v3133
        %3236 = vmatprep.subr.mxu0 0.0
        %3237 = vmatpush1.msra.mxu0 %v3134
        %3238 = vmatprep.subr.mxu0 0.0
        %3239 = vmatpush1.msra.mxu0 %v3135
        %3240 = vmatprep.subr.mxu0 0.0
        %3241 = vmatpush1.msra.mxu0 %v3136
        %3242 = vmatprep.subr.mxu0 0.0
        %3243 = vmatpush1.msra.mxu0 %v3137
        %3244 = vmatprep.subr.mxu0 0.0
        %3245 = vmatpush1.msra.mxu0 %v3138
        %3246 = vmatprep.subr.mxu0 0.0
        %3247 = vmatpush1.msra.mxu0 %v3139
        %3248 = vmatprep.subr.mxu0 0.0
        %3249 = vmatpush1.msra.mxu0 %v3140
        %3250 = vmatprep.subr.mxu0 0.0
        %3251 = vmatpush1.msra.mxu0 %v3141
        %3252 = vmatprep.subr.mxu0 0.0
        %3253 = vmatpush1.msra.mxu0 %v3142
        %3254 = vmatprep.subr.mxu0 0.0
        %3255 = vmatpush1.msra.mxu0 %v3143
        %3256 = vmatprep.subr.mxu0 0.0
        %3257 = vmatpush1.msra.mxu0 %v3144
        %3258 = vmatprep.subr.mxu0 0.0
        %3259 = vmatpush1.msra.mxu0 %v3145
        %3260 = vmatprep.subr.mxu0 0.0
        %3261 = vmatpush1.msra.mxu0 %v3146
        %3262 = vmatprep.subr.mxu0 0.0
        %3263 = vmatpush1.msra.mxu0 0.0
        %3264 = vmatprep.subr.mxu0 0.0
        %3265 = vmatpush1.msra.mxu0 0.0
        %3266 = vmatprep.subr.mxu0 0.0
        %3267 = vmatpush1.msra.mxu0 0.0
        %3268 = vmatprep.subr.mxu0 0.0
        %3269 = vmatpush1.msra.mxu0 0.0
        %3270 = vmatprep.subr.mxu0 0.0
        %3271 = vmatpush1.msra.mxu0 0.0
        %3272 = vmatprep.subr.mxu0 0.0
        %3273 = vmatpush1.msra.mxu0 0.0
        %3274 = vmatprep.subr.mxu0 0.0
        %3275 = vmatpush1.msra.mxu0 0.0
        %3276 = vmatprep.subr.mxu0 0.0
        %3277 = vmatpush1.msra.mxu0 0.0
        %3278 = vmatprep.subr.mxu0 0.0
        %3279 = vmatpush1.msra.mxu0 0.0
        %3280 = vmatprep.subr.mxu0 0.0
        %3281 = vmatpush1.msra.mxu0 0.0
        %3282 = vmatprep.subr.mxu0 0.0
        %3283 = vmatpush1.msra.mxu0 0.0
        %3284 = vmatprep.subr.mxu0 0.0
        %3285 = vmatpush1.msra.mxu0 0.0
        %3286 = vmatprep.subr.mxu0 0.0
        %3287 = vmatpush1.msra.mxu0 0.0
        %3288 = vmatprep.subr.mxu0 0.0
        %3289 = vmatpush1.msra.mxu0 0.0
        %3290 = vmatprep.subr.mxu0 0.0
        %3291 = vmatpush1.msra.mxu0 0.0
        %3292 = vmatprep.subr.mxu0 0.0
        %3293 = vmatpush1.msra.mxu0 0.0
        %3294 = vmatprep.mubr.f32.mxu0 0.0
        %3295 = vmatmul.mubr.f32.gmra.mrb[0].mxu0 %v3090
        %v3296 = vpop.f32.mrb[0].mxu0
        %v3297 = vadd.f32 %v3222, %v3296
        %v3298 = vpop.f32.mrb[0].mxu0
        %3299 = vmatprep.mubr.f32.mxu0 0.0
        %3300 = vmatmul.mubr.f32.gmra.mrb[0].mxu0 %v3095
        %v3301 = vpop.f32.mrb[0].mxu0
        %v3302 = vadd.f32 %v3227, %v3301
        %v3303 = vpop.f32.mrb[0].mxu0
        %3304 = vdwg.mxu0
        %v3305 = vmax.f32 %v3297, 0.0
        %v3306 = vmax.f32 %v3302, 0.0
        %3307 = vmatprep.subr.mxu0 0.0
        %3308 = vmatpush1.msra.mxu0 %v3305
        %3309 = vmatprep.subr.mxu0 0.0
        %3310 = vmatpush1.msra.mxu0 %v3306
        %3311 = vmatprep.subr.mxu0 0.0
        %3312 = vmatpush1.msra.mxu0 0.0
        %3313 = vmatprep.subr.mxu0 0.0
        %3314 = vmatpush1.msra.mxu0 0.0
        %3315 = vmatprep.subr.mxu0 0.0
        %3316 = vmatpush1.msra.mxu0 0.0
        %3317 = vmatprep.subr.mxu0 0.0
        %3318 = vmatpush1.msra.mxu0 0.0
        %3319 = vmatprep.subr.mxu0 0.0
        %3320 = vmatpush1.msra.mxu0 0.0
        %3321 = vmatprep.subr.mxu0 0.0
        %3322 = vmatpush1.msra.mxu0 0.0
        %3323 = vmatprep.subr.mxu0 0.0
        %3324 = vmatpush1.msra.mxu0 0.0
        %3325 = vmatprep.subr.mxu0 0.0
        %3326 = vmatpush1.msra.mxu0 0.0
        %3327 = vmatprep.subr.mxu0 0.0
        %3328 = vmatpush1.msra.mxu0 0.0
        %3329 = vmatprep.subr.mxu0 0.0
        %3330 = vmatpush1.msra.mxu0 0.0
        %3331 = vmatprep.subr.mxu0 0.0
        %3332 = vmatpush1.msra.mxu0 0.0
        %3333 = vmatprep.subr.mxu0 0.0
        %3334 = vmatpush1.msra.mxu0 0.0
        %3335 = vmatprep.subr.mxu0 0.0
        %3336 = vmatpush1.msra.mxu0 0.0
        %3337 = vmatprep.subr.mxu0 0.0
        %3338 = vmatpush1.msra.mxu0 0.0
        %3339 = vmatprep.subr.mxu0 0.0
        %3340 = vmatpush1.msra.mxu0 0.0
        %3341 = vmatprep.subr.mxu0 0.0
        %3342 = vmatpush1.msra.mxu0 0.0
        %3343 = vmatprep.subr.mxu0 0.0
        %3344 = vmatpush1.msra.mxu0 0.0
        %3345 = vmatprep.subr.mxu0 0.0
        %3346 = vmatpush1.msra.mxu0 0.0
        %3347 = vmatprep.subr.mxu0 0.0
        %3348 = vmatpush1.msra.mxu0 0.0
        %3349 = vmatprep.subr.mxu0 0.0
        %3350 = vmatpush1.msra.mxu0 0.0
        %3351 = vmatprep.subr.mxu0 0.0
        %3352 = vmatpush1.msra.mxu0 0.0
        %3353 = vmatprep.subr.mxu0 0.0
        %3354 = vmatpush1.msra.mxu0 0.0
        %3355 = vmatprep.subr.mxu0 0.0
        %3356 = vmatpush1.msra.mxu0 0.0
        %3357 = vmatprep.subr.mxu0 0.0
        %3358 = vmatpush1.msra.mxu0 0.0
        %3359 = vmatprep.subr.mxu0 0.0
        %3360 = vmatpush1.msra.mxu0 0.0
        %3361 = vmatprep.subr.mxu0 0.0
        %3362 = vmatpush1.msra.mxu0 0.0
        %3363 = vmatprep.subr.mxu0 0.0
        %3364 = vmatpush1.msra.mxu0 0.0
        %3365 = vmatprep.subr.mxu0 0.0
        %3366 = vmatpush1.msra.mxu0 0.0
        %3367 = vmatprep.subr.mxu0 0.0
        %3368 = vmatpush1.msra.mxu0 0.0
        %3369 = vmatprep.subr.mxu0 0.0
        %3370 = vmatpush1.msra.mxu0 0.0
        %3371 = vmatprep.mubr.f32.mxu0 0.0
        %3372 = vmatmul.mubr.f32.gmra.mrb[0].mxu0 %v248
        %v3373 = vpop.f32.mrb[0].mxu0
        %v3374 = vadd.f32 0.0, %v3373
        %v3375 = vpop.f32.mrb[0].mxu0
        %3376 = vmatprep.mubr.f32.mxu0 0.0
        %3377 = vmatmul.mubr.f32.gmra.mrb[0].mxu0 %v251
        %v3378 = vpop.f32.mrb[0].mxu0
        %v3379 = vadd.f32 0.0, %v3378
        %v3380 = vpop.f32.mrb[0].mxu0
        %3381 = vdwg.mxu0
        %3382 = vmatprep.subr.mxu0 0.0
        %3383 = vmatpush1.msra.mxu0 %v3305
        %3384 = vmatprep.subr.mxu0 0.0
        %3385 = vmatpush1.msra.mxu0 %v3306
        %3386 = vmatprep.subr.mxu0 0.0
        %3387 = vmatpush1.msra.mxu0 0.0
        %3388 = vmatprep.subr.mxu0 0.0
        %3389 = vmatpush1.msra.mxu0 0.0
        %3390 = vmatprep.subr.mxu0 0.0
        %3391 = vmatpush1.msra.mxu0 0.0
        %3392 = vmatprep.subr.mxu0 0.0
        %3393 = vmatpush1.msra.mxu0 0.0
        %3394 = vmatprep.subr.mxu0 0.0
        %3395 = vmatpush1.msra.mxu0 0.0
        %3396 = vmatprep.subr.mxu0 0.0
        %3397 = vmatpush1.msra.mxu0 0.0
        %3398 = vmatprep.subr.mxu0 0.0
        %3399 = vmatpush1.msra.mxu0 0.0
        %3400 = vmatprep.subr.mxu0 0.0
        %3401 = vmatpush1.msra.mxu0 0.0
        %3402 = vmatprep.subr.mxu0 0.0
        %3403 = vmatpush1.msra.mxu0 0.0
        %3404 = vmatprep.subr.mxu0 0.0
        %3405 = vmatpush1.msra.mxu0 0.0
        %3406 = vmatprep.subr.mxu0 0.0
        %3407 = vmatpush1.msra.mxu0 0.0
        %3408 = vmatprep.subr.mxu0 0.0
        %3409 = vmatpush1.msra.mxu0 0.0
        %3410 = vmatprep.subr.mxu0 0.0
        %3411 = vmatpush1.msra.mxu0 0.0
        %3412 = vmatprep.subr.mxu0 0.0
        %3413 = vmatpush1.msra.mxu0 0.0
        %3414 = vmatprep.subr.mxu0 0.0
        %3415 = vmatpush1.msra.mxu0 0.0
        %3416 = vmatprep.subr.mxu0 0.0
        %3417 = vmatpush1.msra.mxu0 0.0
        %3418 = vmatprep.subr.mxu0 0.0
        %3419 = vmatpush1.msra.mxu0 0.0
        %3420 = vmatprep.subr.mxu0 0.0
        %3421 = vmatpush1.msra.mxu0 0.0
        %3422 = vmatprep.subr.mxu0 0.0
        %3423 = vmatpush1.msra.mxu0 0.0
        %3424 = vmatprep.subr.mxu0 0.0
        %3425 = vmatpush1.msra.mxu0 0.0
        %3426 = vmatprep.subr.mxu0 0.0
        %3427 = vmatpush1.msra.mxu0 0.0
        %3428 = vmatprep.subr.mxu0 0.0
        %3429 = vmatpush1.msra.mxu0 0.0
        %3430 = vmatprep.subr.mxu0 0.0
        %3431 = vmatpush1.msra.mxu0 0.0
        %3432 = vmatprep.subr.mxu0 0.0
        %3433 = vmatpush1.msra.mxu0 0.0
        %3434 = vmatprep.subr.mxu0 0.0
        %3435 = vmatpush1.msra.mxu0 0.0
        %3436 = vmatprep.subr.mxu0 0.0
        %3437 = vmatpush1.msra.mxu0 0.0
        %3438 = vmatprep.subr.mxu0 0.0
        %3439 = vmatpush1.msra.mxu0 0.0
        %3440 = vmatprep.subr.mxu0 0.0
        %3441 = vmatpush1.msra.mxu0 0.0
        %3442 = vmatprep.subr.mxu0 0.0
        %3443 = vmatpush1.msra.mxu0 0.0
        %3444 = vmatprep.subr.mxu0 0.0
        %3445 = vmatpush1.msra.mxu0 0.0
        %3446 = vmatprep.mubr.f32.mxu0 0.0
        %3447 = vmatmul.mubr.f32.gmra.mrb[0].mxu0 %v332
        %v3448 = vpop.f32.mrb[0].mxu0
        %v3449 = vadd.f32 0.0, %v3448
        %v3450 = vpop.f32.mrb[0].mxu0
        %3451 = vmatprep.mubr.f32.mxu0 0.0
        %3452 = vmatmul.mubr.f32.gmra.mrb[0].mxu0 %v335
        %v3453 = vpop.f32.mrb[0].mxu0
        %v3454 = vadd.f32 0.0, %v3453
        %v3455 = vpop.f32.mrb[0].mxu0
        %3456 = vdwg.mxu0
        %3457 = vmatprep.subr.mxu0 0.0
        %3458 = vmatpush1.msra.mxu0 %v3305
        %3459 = vmatprep.subr.mxu0 0.0
        %3460 = vmatpush1.msra.mxu0 %v3306
        %3461 = vmatprep.subr.mxu0 0.0
        %3462 = vmatpush1.msra.mxu0 0.0
        %3463 = vmatprep.subr.mxu0 0.0
        %3464 = vmatpush1.msra.mxu0 0.0
        %3465 = vmatprep.subr.mxu0 0.0
        %3466 = vmatpush1.msra.mxu0 0.0
        %3467 = vmatprep.subr.mxu0 0.0
        %3468 = vmatpush1.msra.mxu0 0.0
        %3469 = vmatprep.subr.mxu0 0.0
        %3470 = vmatpush1.msra.mxu0 0.0
        %3471 = vmatprep.subr.mxu0 0.0
        %3472 = vmatpush1.msra.mxu0 0.0
        %3473 = vmatprep.subr.mxu0 0.0
        %3474 = vmatpush1.msra.mxu0 0.0
        %3475 = vmatprep.subr.mxu0 0.0
        %3476 = vmatpush1.msra.mxu0 0.0
        %3477 = vmatprep.subr.mxu0 0.0
        %3478 = vmatpush1.msra.mxu0 0.0
        %3479 = vmatprep.subr.mxu0 0.0
        %3480 = vmatpush1.msra.mxu0 0.0
        %3481 = vmatprep.subr.mxu0 0.0
        %3482 = vmatpush1.msra.mxu0 0.0
        %3483 = vmatprep.subr.mxu0 0.0
        %3484 = vmatpush1.msra.mxu0 0.0
        %3485 = vmatprep.subr.mxu0 0.0
        %3486 = vmatpush1.msra.mxu0 0.0
        %3487 = vmatprep.subr.mxu0 0.0
        %3488 = vmatpush1.msra.mxu0 0.0
        %3489 = vmatprep.subr.mxu0 0.0
        %3490 = vmatpush1.msra.mxu0 0.0
        %3491 = vmatprep.subr.mxu0 0.0
        %3492 = vmatpush1.msra.mxu0 0.0
        %3493 = vmatprep.subr.mxu0 0.0
        %3494 = vmatpush1.msra.mxu0 0.0
        %3495 = vmatprep.subr.mxu0 0.0
        %3496 = vmatpush1.msra.mxu0 0.0
        %3497 = vmatprep.subr.mxu0 0.0
        %3498 = vmatpush1.msra.mxu0 0.0
        %3499 = vmatprep.subr.mxu0 0.0
        %3500 = vmatpush1.msra.mxu0 0.0
        %3501 = vmatprep.subr.mxu0 0.0
        %3502 = vmatpush1.msra.mxu0 0.0
        %3503 = vmatprep.subr.mxu0 0.0
        %3504 = vmatpush1.msra.mxu0 0.0
        %3505 = vmatprep.subr.mxu0 0.0
        %3506 = vmatpush1.msra.mxu0 0.0
        %3507 = vmatprep.subr.mxu0 0.0
        %3508 = vmatpush1.msra.mxu0 0.0
        %3509 = vmatprep.subr.mxu0 0.0
        %3510 = vmatpush1.msra.mxu0 0.0
        %3511 = vmatprep.subr.mxu0 0.0
        %3512 = vmatpush1.msra.mxu0 0.0
        %3513 = vmatprep.subr.mxu0 0.0
        %3514 = vmatpush1.msra.mxu0 0.0
        %3515 = vmatprep.subr.mxu0 0.0
        %3516 = vmatpush1.msra.mxu0 0.0
        %3517 = vmatprep.subr.mxu0 0.0
        %3518 = vmatpush1.msra.mxu0 0.0
        %3519 = vmatprep.subr.mxu0 0.0
        %3520 = vmatpush1.msra.mxu0 0.0
        %3521 = vmatprep.mubr.f32.mxu0 0.0
        %3522 = vmatmul.mubr.f32.gmra.mrb[0].mxu0 %v416
        %v3523 = vpop.f32.mrb[0].mxu0
        %v3524 = vadd.f32 0.0, %v3523
        %v3525 = vpop.f32.mrb[0].mxu0
        %3526 = vmatprep.mubr.f32.mxu0 0.0
        %3527 = vmatmul.mubr.f32.gmra.mrb[0].mxu0 %v419
        %v3528 = vpop.f32.mrb[0].mxu0
        %v3529 = vadd.f32 0.0, %v3528
        %v3530 = vpop.f32.mrb[0].mxu0
        %3531 = vdwg.mxu0
        %s3532 = scalar_lea.vmem [#allocation4], 2688
        %v3533 = vld [vmem:[%s3532] sm:$0xff]
        %v3534 = vld [vmem:[%s3532 + $0x8] sm:$0xff]
        %v3535 = vld [vmem:[%s3532 + $0x10] sm:$0xff]
        %v3536 = vld [vmem:[%s3532 + $0x18] sm:$0xff]
        %v3537 = vld [vmem:[%s3532 + $0x20] sm:$0xff]
        %v3538 = vld [vmem:[%s3532 + $0x28] sm:$0xff]
        %v3539 = vld [vmem:[%s3532 + $0x30] sm:$0xff]
        %v3540 = vld [vmem:[%s3532 + $0x38] sm:$0xff]
        %v3541 = vld [vmem:[%s3532 + $0x40] sm:$0xff]
        %v3542 = vld [vmem:[%s3532 + $0x48] sm:$0xff]
        %v3543 = vld [vmem:[%s3532 + $0x50] sm:$0xff]
        %v3544 = vld [vmem:[%s3532 + $0x58] sm:$0xff]
        %v3545 = vld [vmem:[%s3532 + $0x60] sm:$0xff]
        %v3546 = vld [vmem:[%s3532 + $0x68] sm:$0xff]
        %v3547 = vld [vmem:[%s3532 + $0x70] sm:$0xff]
        %v3548 = vld [vmem:[%s3532 + $0x78] sm:$0xff]
        %v3549 = vld [vmem:[%s3532 + $0x80] sm:$0xff]
        %v3550 = vld [vmem:[%s3532 + $0x88] sm:$0xff]
        %v3551 = vld [vmem:[%s3532 + $0x90] sm:$0xff]
        %v3552 = vld [vmem:[%s3532 + $0x98] sm:$0xff]
        %v3553 = vld [vmem:[%s3532 + $0xa0] sm:$0xff]
        %v3554 = vld [vmem:[%s3532 + $0xa8] sm:$0xff]
        %v3555 = vld [vmem:[%s3532 + $0xb0] sm:$0xff]
        %v3556 = vld [vmem:[%s3532 + $0xb8] sm:$0xff]
        %v3557 = vld [vmem:[%s3532 + $0xc0] sm:$0xff]
        %v3558 = vld [vmem:[%s3532 + $0xc8] sm:$0xff]
        %v3559 = vld [vmem:[%s3532 + $0xd0] sm:$0xff]
        %v3560 = vld [vmem:[%s3532 + $0xd8] sm:$0xff]
        %v3561 = vld [vmem:[%s3532 + $0xe0] sm:$0xff]
        %v3562 = vld [vmem:[%s3532 + $0xe8] sm:$0xff]
        %v3563 = vld [vmem:[%s3532 + $0xf0] sm:$0xff]
        %v3564 = vld [vmem:[%s3532 + $0xf8] sm:$0xff]
        %v3565 = vld [vmem:[%s3532 + $0x100] sm:$0xff]
        %v3566 = vld [vmem:[%s3532 + $0x108] sm:$0xff]
        %v3567 = vld [vmem:[%s3532 + $0x110] sm:$0xff]
        %v3568 = vld [vmem:[%s3532 + $0x118] sm:$0xff]
        %v3569 = vld [vmem:[%s3532 + $0x120] sm:$0xff]
        %v3570 = vld [vmem:[%s3532 + $0x128] sm:$0xff]
        %v3571 = vld [vmem:[%s3532 + $0x130] sm:$0xff]
        %v3572 = vld [vmem:[%s3532 + $0x138] sm:$0xff]
        %v3573 = vld [vmem:[%s3532 + $0x140] sm:$0xff]
        %v3574 = vld [vmem:[%s3532 + $0x148] sm:$0xff]
        %v3575 = vld [vmem:[%s3532 + $0x150] sm:$0xff]
        %v3576 = vld [vmem:[%s3532 + $0x158] sm:$0xff]
        %v3577 = vld [vmem:[%s3532 + $0x160] sm:$0xff]
        %v3578 = vld [vmem:[%s3532 + $0x168] sm:$0xff]
        %v3579 = vld [vmem:[%s3532 + $0x170] sm:$0xff]
        %v3580 = vld [vmem:[%s3532 + $0x178] sm:$0xff]
        %s3581 = scalar_lea.vmem [#allocation6], 7
        %v3582 = vld [vmem:[%s3581] sm:$0x1]
        %v3584 = vlaneseq
        %v3585 = vshrl.u32 %v3584, 7
        %v3586 = vsub.s32 0, %v3585
        %v3587 = vrot.slane %v3582, %v3586
        %3589 = vmatprep.subr.mxu0 0.0
        %3590 = vmatpush1.msra.mxu0 %v3533
        %3591 = vmatprep.subr.mxu0 0.0
        %3592 = vmatpush1.msra.mxu0 %v3534
        %3593 = vmatprep.subr.mxu0 0.0
        %3594 = vmatpush1.msra.mxu0 %v3535
        %3595 = vmatprep.subr.mxu0 0.0
        %3596 = vmatpush1.msra.mxu0 %v3536
        %3597 = vmatprep.subr.mxu0 0.0
        %3598 = vmatpush1.msra.mxu0 %v3537
        %3599 = vmatprep.subr.mxu0 0.0
        %3600 = vmatpush1.msra.mxu0 %v3538
        %3601 = vmatprep.subr.mxu0 0.0
        %3602 = vmatpush1.msra.mxu0 %v3539
        %3603 = vmatprep.subr.mxu0 0.0
        %3604 = vmatpush1.msra.mxu0 %v3540
        %3605 = vmatprep.subr.mxu0 0.0
        %3606 = vmatpush1.msra.mxu0 %v3541
        %3607 = vmatprep.subr.mxu0 0.0
        %3608 = vmatpush1.msra.mxu0 %v3542
        %3609 = vmatprep.subr.mxu0 0.0
        %3610 = vmatpush1.msra.mxu0 %v3543
        %3611 = vmatprep.subr.mxu0 0.0
        %3612 = vmatpush1.msra.mxu0 %v3544
        %3613 = vmatprep.subr.mxu0 0.0
        %3614 = vmatpush1.msra.mxu0 %v3545
        %3615 = vmatprep.subr.mxu0 0.0
        %3616 = vmatpush1.msra.mxu0 %v3546
        %3617 = vmatprep.subr.mxu0 0.0
        %3618 = vmatpush1.msra.mxu0 %v3547
        %3619 = vmatprep.subr.mxu0 0.0
        %3620 = vmatpush1.msra.mxu0 %v3548
        %3621 = vmatprep.subr.mxu0 0.0
        %3622 = vmatpush1.msra.mxu0 %v3549
        %3623 = vmatprep.subr.mxu0 0.0
        %3624 = vmatpush1.msra.mxu0 %v3550
        %3625 = vmatprep.subr.mxu0 0.0
        %3626 = vmatpush1.msra.mxu0 %v3551
        %3627 = vmatprep.subr.mxu0 0.0
        %3628 = vmatpush1.msra.mxu0 %v3552
        %3629 = vmatprep.subr.mxu0 0.0
        %3630 = vmatpush1.msra.mxu0 %v3553
        %3631 = vmatprep.subr.mxu0 0.0
        %3632 = vmatpush1.msra.mxu0 %v3554
        %3633 = vmatprep.subr.mxu0 0.0
        %3634 = vmatpush1.msra.mxu0 %v3555
        %3635 = vmatprep.subr.mxu0 0.0
        %3636 = vmatpush1.msra.mxu0 %v3556
        %3637 = vmatprep.subr.mxu0 0.0
        %3638 = vmatpush1.msra.mxu0 %v3557
        %3639 = vmatprep.subr.mxu0 0.0
        %3640 = vmatpush1.msra.mxu0 %v3558
        %3641 = vmatprep.subr.mxu0 0.0
        %3642 = vmatpush1.msra.mxu0 %v3559
        %3643 = vmatprep.subr.mxu0 0.0
        %3644 = vmatpush1.msra.mxu0 %v3560
        %3645 = vmatprep.subr.mxu0 0.0
        %3646 = vmatpush1.msra.mxu0 %v3561
        %3647 = vmatprep.subr.mxu0 0.0
        %3648 = vmatpush1.msra.mxu0 %v3562
        %3649 = vmatprep.subr.mxu0 0.0
        %3650 = vmatpush1.msra.mxu0 %v3563
        %3651 = vmatprep.subr.mxu0 0.0
        %3652 = vmatpush1.msra.mxu0 %v3564
        %3653 = vmatprep.mubr.f32.mxu0 %v3449
        %3654 = vmatmul.mubr.f32.gmra.mrb[0].mxu0 %v3374
        %v3655 = vpop.f32.mrb[0].mxu0
        %v3656 = vadd.f32 %v3587, %v3655
        %v3657 = vpop.f32.mrb[0].mxu0
        %3658 = vmatprep.mubr.f32.mxu0 %v3454
        %3659 = vmatmul.mubr.f32.gmra.mrb[0].mxu0 %v3379
        %v3660 = vpop.f32.mrb[0].mxu0
        %v3661 = vadd.f32 %v3587, %v3660
        %v3662 = vpop.f32.mrb[0].mxu0
        %3663 = vdwg.mxu0
        %3664 = vmatprep.subr.mxu0 0.0
        %3665 = vmatpush1.msra.mxu0 %v3565
        %3666 = vmatprep.subr.mxu0 0.0
        %3667 = vmatpush1.msra.mxu0 %v3566
        %3668 = vmatprep.subr.mxu0 0.0
        %3669 = vmatpush1.msra.mxu0 %v3567
        %3670 = vmatprep.subr.mxu0 0.0
        %3671 = vmatpush1.msra.mxu0 %v3568
        %3672 = vmatprep.subr.mxu0 0.0
        %3673 = vmatpush1.msra.mxu0 %v3569
        %3674 = vmatprep.subr.mxu0 0.0
        %3675 = vmatpush1.msra.mxu0 %v3570
        %3676 = vmatprep.subr.mxu0 0.0
        %3677 = vmatpush1.msra.mxu0 %v3571
        %3678 = vmatprep.subr.mxu0 0.0
        %3679 = vmatpush1.msra.mxu0 %v3572
        %3680 = vmatprep.subr.mxu0 0.0
        %3681 = vmatpush1.msra.mxu0 %v3573
        %3682 = vmatprep.subr.mxu0 0.0
        %3683 = vmatpush1.msra.mxu0 %v3574
        %3684 = vmatprep.subr.mxu0 0.0
        %3685 = vmatpush1.msra.mxu0 %v3575
        %3686 = vmatprep.subr.mxu0 0.0
        %3687 = vmatpush1.msra.mxu0 %v3576
        %3688 = vmatprep.subr.mxu0 0.0
        %3689 = vmatpush1.msra.mxu0 %v3577
        %3690 = vmatprep.subr.mxu0 0.0
        %3691 = vmatpush1.msra.mxu0 %v3578
        %3692 = vmatprep.subr.mxu0 0.0
        %3693 = vmatpush1.msra.mxu0 %v3579
        %3694 = vmatprep.subr.mxu0 0.0
        %3695 = vmatpush1.msra.mxu0 %v3580
        %3696 = vmatprep.subr.mxu0 0.0
        %3697 = vmatpush1.msra.mxu0 0.0
        %3698 = vmatprep.subr.mxu0 0.0
        %3699 = vmatpush1.msra.mxu0 0.0
        %3700 = vmatprep.subr.mxu0 0.0
        %3701 = vmatpush1.msra.mxu0 0.0
        %3702 = vmatprep.subr.mxu0 0.0
        %3703 = vmatpush1.msra.mxu0 0.0
        %3704 = vmatprep.subr.mxu0 0.0
        %3705 = vmatpush1.msra.mxu0 0.0
        %3706 = vmatprep.subr.mxu0 0.0
        %3707 = vmatpush1.msra.mxu0 0.0
        %3708 = vmatprep.subr.mxu0 0.0
        %3709 = vmatpush1.msra.mxu0 0.0
        %3710 = vmatprep.subr.mxu0 0.0
        %3711 = vmatpush1.msra.mxu0 0.0
        %3712 = vmatprep.subr.mxu0 0.0
        %3713 = vmatpush1.msra.mxu0 0.0
        %3714 = vmatprep.subr.mxu0 0.0
        %3715 = vmatpush1.msra.mxu0 0.0
        %3716 = vmatprep.subr.mxu0 0.0
        %3717 = vmatpush1.msra.mxu0 0.0
        %3718 = vmatprep.subr.mxu0 0.0
        %3719 = vmatpush1.msra.mxu0 0.0
        %3720 = vmatprep.subr.mxu0 0.0
        %3721 = vmatpush1.msra.mxu0 0.0
        %3722 = vmatprep.subr.mxu0 0.0
        %3723 = vmatpush1.msra.mxu0 0.0
        %3724 = vmatprep.subr.mxu0 0.0
        %3725 = vmatpush1.msra.mxu0 0.0
        %3726 = vmatprep.subr.mxu0 0.0
        %3727 = vmatpush1.msra.mxu0 0.0
        %3728 = vmatprep.mubr.f32.mxu0 0.0
        %3729 = vmatmul.mubr.f32.gmra.mrb[0].mxu0 %v3524
        %v3730 = vpop.f32.mrb[0].mxu0
        %v3731 = vadd.f32 %v3656, %v3730
        %v3732 = vpop.f32.mrb[0].mxu0
        %3733 = vmatprep.mubr.f32.mxu0 0.0
        %3734 = vmatmul.mubr.f32.gmra.mrb[0].mxu0 %v3529
        %v3735 = vpop.f32.mrb[0].mxu0
        %v3736 = vadd.f32 %v3661, %v3735
        %v3737 = vpop.f32.mrb[0].mxu0
        %3738 = vdwg.mxu0
        %v3739 = vmax.f32 %v3731, 0.0
        %v3740 = vmax.f32 %v3736, 0.0
        %3741 = vmatprep.subr.mxu0 0.0
        %3742 = vmatpush1.msra.mxu0 %v3739
        %3743 = vmatprep.subr.mxu0 0.0
        %3744 = vmatpush1.msra.mxu0 %v3740
        %3745 = vmatprep.subr.mxu0 0.0
        %3746 = vmatpush1.msra.mxu0 0.0
        %3747 = vmatprep.subr.mxu0 0.0
        %3748 = vmatpush1.msra.mxu0 0.0
        %3749 = vmatprep.subr.mxu0 0.0
        %3750 = vmatpush1.msra.mxu0 0.0
        %3751 = vmatprep.subr.mxu0 0.0
        %3752 = vmatpush1.msra.mxu0 0.0
        %3753 = vmatprep.subr.mxu0 0.0
        %3754 = vmatpush1.msra.mxu0 0.0
        %3755 = vmatprep.subr.mxu0 0.0
        %3756 = vmatpush1.msra.mxu0 0.0
        %3757 = vmatprep.subr.mxu0 0.0
        %3758 = vmatpush1.msra.mxu0 0.0
        %3759 = vmatprep.subr.mxu0 0.0
        %3760 = vmatpush1.msra.mxu0 0.0
        %3761 = vmatprep.subr.mxu0 0.0
        %3762 = vmatpush1.msra.mxu0 0.0
        %3763 = vmatprep.subr.mxu0 0.0
        %3764 = vmatpush1.msra.mxu0 0.0
        %3765 = vmatprep.subr.mxu0 0.0
        %3766 = vmatpush1.msra.mxu0 0.0
        %3767 = vmatprep.subr.mxu0 0.0
        %3768 = vmatpush1.msra.mxu0 0.0
        %3769 = vmatprep.subr.mxu0 0.0
        %3770 = vmatpush1.msra.mxu0 0.0
        %3771 = vmatprep.subr.mxu0 0.0
        %3772 = vmatpush1.msra.mxu0 0.0
        %3773 = vmatprep.subr.mxu0 0.0
        %3774 = vmatpush1.msra.mxu0 0.0
        %3775 = vmatprep.subr.mxu0 0.0
        %3776 = vmatpush1.msra.mxu0 0.0
        %3777 = vmatprep.subr.mxu0 0.0
        %3778 = vmatpush1.msra.mxu0 0.0
        %3779 = vmatprep.subr.mxu0 0.0
        %3780 = vmatpush1.msra.mxu0 0.0
        %3781 = vmatprep.subr.mxu0 0.0
        %3782 = vmatpush1.msra.mxu0 0.0
        %3783 = vmatprep.subr.mxu0 0.0
        %3784 = vmatpush1.msra.mxu0 0.0
        %3785 = vmatprep.subr.mxu0 0.0
        %3786 = vmatpush1.msra.mxu0 0.0
        %3787 = vmatprep.subr.mxu0 0.0
        %3788 = vmatpush1.msra.mxu0 0.0
        %3789 = vmatprep.subr.mxu0 0.0
        %3790 = vmatpush1.msra.mxu0 0.0
        %3791 = vmatprep.subr.mxu0 0.0
        %3792 = vmatpush1.msra.mxu0 0.0
        %3793 = vmatprep.subr.mxu0 0.0
        %3794 = vmatpush1.msra.mxu0 0.0
        %3795 = vmatprep.subr.mxu0 0.0
        %3796 = vmatpush1.msra.mxu0 0.0
        %3797 = vmatprep.subr.mxu0 0.0
        %3798 = vmatpush1.msra.mxu0 0.0
        %3799 = vmatprep.subr.mxu0 0.0
        %3800 = vmatpush1.msra.mxu0 0.0
        %3801 = vmatprep.subr.mxu0 0.0
        %3802 = vmatpush1.msra.mxu0 0.0
        %3803 = vmatprep.subr.mxu0 0.0
        %3804 = vmatpush1.msra.mxu0 0.0
        %3805 = vmatprep.mubr.f32.mxu0 0.0
        %3806 = vmatmul.mubr.f32.gmra.mrb[0].mxu0 %v248
        %v3807 = vpop.f32.mrb[0].mxu0
        %v3808 = vadd.f32 0.0, %v3807
        %v3809 = vpop.f32.mrb[0].mxu0
        %3810 = vmatprep.mubr.f32.mxu0 0.0
        %3811 = vmatmul.mubr.f32.gmra.mrb[0].mxu0 %v251
        %v3812 = vpop.f32.mrb[0].mxu0
        %v3813 = vadd.f32 0.0, %v3812
        %v3814 = vpop.f32.mrb[0].mxu0
        %3815 = vdwg.mxu0
        %3816 = vmatprep.subr.mxu0 0.0
        %3817 = vmatpush1.msra.mxu0 %v3739
        %3818 = vmatprep.subr.mxu0 0.0
        %3819 = vmatpush1.msra.mxu0 %v3740
        %3820 = vmatprep.subr.mxu0 0.0
        %3821 = vmatpush1.msra.mxu0 0.0
        %3822 = vmatprep.subr.mxu0 0.0
        %3823 = vmatpush1.msra.mxu0 0.0
        %3824 = vmatprep.subr.mxu0 0.0
        %3825 = vmatpush1.msra.mxu0 0.0
        %3826 = vmatprep.subr.mxu0 0.0
        %3827 = vmatpush1.msra.mxu0 0.0
        %3828 = vmatprep.subr.mxu0 0.0
        %3829 = vmatpush1.msra.mxu0 0.0
        %3830 = vmatprep.subr.mxu0 0.0
        %3831 = vmatpush1.msra.mxu0 0.0
        %3832 = vmatprep.subr.mxu0 0.0
        %3833 = vmatpush1.msra.mxu0 0.0
        %3834 = vmatprep.subr.mxu0 0.0
        %3835 = vmatpush1.msra.mxu0 0.0
        %3836 = vmatprep.subr.mxu0 0.0
        %3837 = vmatpush1.msra.mxu0 0.0
        %3838 = vmatprep.subr.mxu0 0.0
        %3839 = vmatpush1.msra.mxu0 0.0
        %3840 = vmatprep.subr.mxu0 0.0
        %3841 = vmatpush1.msra.mxu0 0.0
        %3842 = vmatprep.subr.mxu0 0.0
        %3843 = vmatpush1.msra.mxu0 0.0
        %3844 = vmatprep.subr.mxu0 0.0
        %3845 = vmatpush1.msra.mxu0 0.0
        %3846 = vmatprep.subr.mxu0 0.0
        %3847 = vmatpush1.msra.mxu0 0.0
        %3848 = vmatprep.subr.mxu0 0.0
        %3849 = vmatpush1.msra.mxu0 0.0
        %3850 = vmatprep.subr.mxu0 0.0
        %3851 = vmatpush1.msra.mxu0 0.0
        %3852 = vmatprep.subr.mxu0 0.0
        %3853 = vmatpush1.msra.mxu0 0.0
        %3854 = vmatprep.subr.mxu0 0.0
        %3855 = vmatpush1.msra.mxu0 0.0
        %3856 = vmatprep.subr.mxu0 0.0
        %3857 = vmatpush1.msra.mxu0 0.0
        %3858 = vmatprep.subr.mxu0 0.0
        %3859 = vmatpush1.msra.mxu0 0.0
        %3860 = vmatprep.subr.mxu0 0.0
        %3861 = vmatpush1.msra.mxu0 0.0
        %3862 = vmatprep.subr.mxu0 0.0
        %3863 = vmatpush1.msra.mxu0 0.0
        %3864 = vmatprep.subr.mxu0 0.0
        %3865 = vmatpush1.msra.mxu0 0.0
        %3866 = vmatprep.subr.mxu0 0.0
        %3867 = vmatpush1.msra.mxu0 0.0
        %3868 = vmatprep.subr.mxu0 0.0
        %3869 = vmatpush1.msra.mxu0 0.0
        %3870 = vmatprep.subr.mxu0 0.0
        %3871 = vmatpush1.msra.mxu0 0.0
        %3872 = vmatprep.subr.mxu0 0.0
        %3873 = vmatpush1.msra.mxu0 0.0
        %3874 = vmatprep.subr.mxu0 0.0
        %3875 = vmatpush1.msra.mxu0 0.0
        %3876 = vmatprep.subr.mxu0 0.0
        %3877 = vmatpush1.msra.mxu0 0.0
        %3878 = vmatprep.subr.mxu0 0.0
        %3879 = vmatpush1.msra.mxu0 0.0
        %3880 = vmatprep.mubr.f32.mxu0 0.0
        %3881 = vmatmul.mubr.f32.gmra.mrb[0].mxu0 %v332
        %v3882 = vpop.f32.mrb[0].mxu0
        %v3883 = vadd.f32 0.0, %v3882
        %v3884 = vpop.f32.mrb[0].mxu0
        %3885 = vmatprep.mubr.f32.mxu0 0.0
        %3886 = vmatmul.mubr.f32.gmra.mrb[0].mxu0 %v335
        %v3887 = vpop.f32.mrb[0].mxu0
        %v3888 = vadd.f32 0.0, %v3887
        %v3889 = vpop.f32.mrb[0].mxu0
        %3890 = vdwg.mxu0
        %3891 = vmatprep.subr.mxu0 0.0
        %3892 = vmatpush1.msra.mxu0 %v3739
        %3893 = vmatprep.subr.mxu0 0.0
        %3894 = vmatpush1.msra.mxu0 %v3740
        %3895 = vmatprep.subr.mxu0 0.0
        %3896 = vmatpush1.msra.mxu0 0.0
        %3897 = vmatprep.subr.mxu0 0.0
        %3898 = vmatpush1.msra.mxu0 0.0
        %3899 = vmatprep.subr.mxu0 0.0
        %3900 = vmatpush1.msra.mxu0 0.0
        %3901 = vmatprep.subr.mxu0 0.0
        %3902 = vmatpush1.msra.mxu0 0.0
        %3903 = vmatprep.subr.mxu0 0.0
        %3904 = vmatpush1.msra.mxu0 0.0
        %3905 = vmatprep.subr.mxu0 0.0
        %3906 = vmatpush1.msra.mxu0 0.0
        %3907 = vmatprep.subr.mxu0 0.0
        %3908 = vmatpush1.msra.mxu0 0.0
        %3909 = vmatprep.subr.mxu0 0.0
        %3910 = vmatpush1.msra.mxu0 0.0
        %3911 = vmatprep.subr.mxu0 0.0
        %3912 = vmatpush1.msra.mxu0 0.0
        %3913 = vmatprep.subr.mxu0 0.0
        %3914 = vmatpush1.msra.mxu0 0.0
        %3915 = vmatprep.subr.mxu0 0.0
        %3916 = vmatpush1.msra.mxu0 0.0
        %3917 = vmatprep.subr.mxu0 0.0
        %3918 = vmatpush1.msra.mxu0 0.0
        %3919 = vmatprep.subr.mxu0 0.0
        %3920 = vmatpush1.msra.mxu0 0.0
        %3921 = vmatprep.subr.mxu0 0.0
        %3922 = vmatpush1.msra.mxu0 0.0
        %3923 = vmatprep.subr.mxu0 0.0
        %3924 = vmatpush1.msra.mxu0 0.0
        %3925 = vmatprep.subr.mxu0 0.0
        %3926 = vmatpush1.msra.mxu0 0.0
        %3927 = vmatprep.subr.mxu0 0.0
        %3928 = vmatpush1.msra.mxu0 0.0
        %3929 = vmatprep.subr.mxu0 0.0
        %3930 = vmatpush1.msra.mxu0 0.0
        %3931 = vmatprep.subr.mxu0 0.0
        %3932 = vmatpush1.msra.mxu0 0.0
        %3933 = vmatprep.subr.mxu0 0.0
        %3934 = vmatpush1.msra.mxu0 0.0
        %3935 = vmatprep.subr.mxu0 0.0
        %3936 = vmatpush1.msra.mxu0 0.0
        %3937 = vmatprep.subr.mxu0 0.0
        %3938 = vmatpush1.msra.mxu0 0.0
        %3939 = vmatprep.subr.mxu0 0.0
        %3940 = vmatpush1.msra.mxu0 0.0
        %3941 = vmatprep.subr.mxu0 0.0
        %3942 = vmatpush1.msra.mxu0 0.0
        %3943 = vmatprep.subr.mxu0 0.0
        %3944 = vmatpush1.msra.mxu0 0.0
        %3945 = vmatprep.subr.mxu0 0.0
        %3946 = vmatpush1.msra.mxu0 0.0
        %3947 = vmatprep.subr.mxu0 0.0
        %3948 = vmatpush1.msra.mxu0 0.0
        %3949 = vmatprep.subr.mxu0 0.0
        %3950 = vmatpush1.msra.mxu0 0.0
        %3951 = vmatprep.subr.mxu0 0.0
        %3952 = vmatpush1.msra.mxu0 0.0
        %3953 = vmatprep.subr.mxu0 0.0
        %3954 = vmatpush1.msra.mxu0 0.0
        %3955 = vmatprep.mubr.f32.mxu0 0.0
        %3956 = vmatmul.mubr.f32.gmra.mrb[0].mxu0 %v416
        %v3957 = vpop.f32.mrb[0].mxu0
        %v3958 = vadd.f32 0.0, %v3957
        %v3959 = vpop.f32.mrb[0].mxu0
        %3960 = vmatprep.mubr.f32.mxu0 0.0
        %3961 = vmatmul.mubr.f32.gmra.mrb[0].mxu0 %v419
        %v3962 = vpop.f32.mrb[0].mxu0
        %v3963 = vadd.f32 0.0, %v3962
        %v3964 = vpop.f32.mrb[0].mxu0
        %3965 = vdwg.mxu0
        %s3966 = scalar_lea.vmem [#allocation4], 3072
        %v3967 = vld [vmem:[%s3966] sm:$0xff]
        %v3968 = vld [vmem:[%s3966 + $0x8] sm:$0xff]
        %v3969 = vld [vmem:[%s3966 + $0x10] sm:$0xff]
        %v3970 = vld [vmem:[%s3966 + $0x18] sm:$0xff]
        %v3971 = vld [vmem:[%s3966 + $0x20] sm:$0xff]
        %v3972 = vld [vmem:[%s3966 + $0x28] sm:$0xff]
        %v3973 = vld [vmem:[%s3966 + $0x30] sm:$0xff]
        %v3974 = vld [vmem:[%s3966 + $0x38] sm:$0xff]
        %v3975 = vld [vmem:[%s3966 + $0x40] sm:$0xff]
        %v3976 = vld [vmem:[%s3966 + $0x48] sm:$0xff]
        %v3977 = vld [vmem:[%s3966 + $0x50] sm:$0xff]
        %v3978 = vld [vmem:[%s3966 + $0x58] sm:$0xff]
        %v3979 = vld [vmem:[%s3966 + $0x60] sm:$0xff]
        %v3980 = vld [vmem:[%s3966 + $0x68] sm:$0xff]
        %v3981 = vld [vmem:[%s3966 + $0x70] sm:$0xff]
        %v3982 = vld [vmem:[%s3966 + $0x78] sm:$0xff]
        %v3983 = vld [vmem:[%s3966 + $0x80] sm:$0xff]
        %v3984 = vld [vmem:[%s3966 + $0x88] sm:$0xff]
        %v3985 = vld [vmem:[%s3966 + $0x90] sm:$0xff]
        %v3986 = vld [vmem:[%s3966 + $0x98] sm:$0xff]
        %v3987 = vld [vmem:[%s3966 + $0xa0] sm:$0xff]
        %v3988 = vld [vmem:[%s3966 + $0xa8] sm:$0xff]
        %v3989 = vld [vmem:[%s3966 + $0xb0] sm:$0xff]
        %v3990 = vld [vmem:[%s3966 + $0xb8] sm:$0xff]
        %v3991 = vld [vmem:[%s3966 + $0xc0] sm:$0xff]
        %v3992 = vld [vmem:[%s3966 + $0xc8] sm:$0xff]
        %v3993 = vld [vmem:[%s3966 + $0xd0] sm:$0xff]
        %v3994 = vld [vmem:[%s3966 + $0xd8] sm:$0xff]
        %v3995 = vld [vmem:[%s3966 + $0xe0] sm:$0xff]
        %v3996 = vld [vmem:[%s3966 + $0xe8] sm:$0xff]
        %v3997 = vld [vmem:[%s3966 + $0xf0] sm:$0xff]
        %v3998 = vld [vmem:[%s3966 + $0xf8] sm:$0xff]
        %v3999 = vld [vmem:[%s3966 + $0x100] sm:$0xff]
        %v4000 = vld [vmem:[%s3966 + $0x108] sm:$0xff]
        %v4001 = vld [vmem:[%s3966 + $0x110] sm:$0xff]
        %v4002 = vld [vmem:[%s3966 + $0x118] sm:$0xff]
        %v4003 = vld [vmem:[%s3966 + $0x120] sm:$0xff]
        %v4004 = vld [vmem:[%s3966 + $0x128] sm:$0xff]
        %v4005 = vld [vmem:[%s3966 + $0x130] sm:$0xff]
        %v4006 = vld [vmem:[%s3966 + $0x138] sm:$0xff]
        %v4007 = vld [vmem:[%s3966 + $0x140] sm:$0xff]
        %v4008 = vld [vmem:[%s3966 + $0x148] sm:$0xff]
        %v4009 = vld [vmem:[%s3966 + $0x150] sm:$0xff]
        %v4010 = vld [vmem:[%s3966 + $0x158] sm:$0xff]
        %v4011 = vld [vmem:[%s3966 + $0x160] sm:$0xff]
        %v4012 = vld [vmem:[%s3966 + $0x168] sm:$0xff]
        %v4013 = vld [vmem:[%s3966 + $0x170] sm:$0xff]
        %v4014 = vld [vmem:[%s3966 + $0x178] sm:$0xff]
        %s4015 = scalar_lea.vmem [#allocation6], 8
        %v4016 = vld [vmem:[%s4015] sm:$0x1]
        %v4018 = vlaneseq
        %v4019 = vshrl.u32 %v4018, 7
        %v4020 = vsub.s32 0, %v4019
        %v4021 = vrot.slane %v4016, %v4020
        %4023 = vmatprep.subr.mxu0 0.0
        %4024 = vmatpush1.msra.mxu0 %v3967
        %4025 = vmatprep.subr.mxu0 0.0
        %4026 = vmatpush1.msra.mxu0 %v3968
        %4027 = vmatprep.subr.mxu0 0.0
        %4028 = vmatpush1.msra.mxu0 %v3969
        %4029 = vmatprep.subr.mxu0 0.0
        %4030 = vmatpush1.msra.mxu0 %v3970
        %4031 = vmatprep.subr.mxu0 0.0
        %4032 = vmatpush1.msra.mxu0 %v3971
        %4033 = vmatprep.subr.mxu0 0.0
        %4034 = vmatpush1.msra.mxu0 %v3972
        %4035 = vmatprep.subr.mxu0 0.0
        %4036 = vmatpush1.msra.mxu0 %v3973
        %4037 = vmatprep.subr.mxu0 0.0
        %4038 = vmatpush1.msra.mxu0 %v3974
        %4039 = vmatprep.subr.mxu0 0.0
        %4040 = vmatpush1.msra.mxu0 %v3975
        %4041 = vmatprep.subr.mxu0 0.0
        %4042 = vmatpush1.msra.mxu0 %v3976
        %4043 = vmatprep.subr.mxu0 0.0
        %4044 = vmatpush1.msra.mxu0 %v3977
        %4045 = vmatprep.subr.mxu0 0.0
        %4046 = vmatpush1.msra.mxu0 %v3978
        %4047 = vmatprep.subr.mxu0 0.0
        %4048 = vmatpush1.msra.mxu0 %v3979
        %4049 = vmatprep.subr.mxu0 0.0
        %4050 = vmatpush1.msra.mxu0 %v3980
        %4051 = vmatprep.subr.mxu0 0.0
        %4052 = vmatpush1.msra.mxu0 %v3981
        %4053 = vmatprep.subr.mxu0 0.0
        %4054 = vmatpush1.msra.mxu0 %v3982
        %4055 = vmatprep.subr.mxu0 0.0
        %4056 = vmatpush1.msra.mxu0 %v3983
        %4057 = vmatprep.subr.mxu0 0.0
        %4058 = vmatpush1.msra.mxu0 %v3984
        %4059 = vmatprep.subr.mxu0 0.0
        %4060 = vmatpush1.msra.mxu0 %v3985
        %4061 = vmatprep.subr.mxu0 0.0
        %4062 = vmatpush1.msra.mxu0 %v3986
        %4063 = vmatprep.subr.mxu0 0.0
        %4064 = vmatpush1.msra.mxu0 %v3987
        %4065 = vmatprep.subr.mxu0 0.0
        %4066 = vmatpush1.msra.mxu0 %v3988
        %4067 = vmatprep.subr.mxu0 0.0
        %4068 = vmatpush1.msra.mxu0 %v3989
        %4069 = vmatprep.subr.mxu0 0.0
        %4070 = vmatpush1.msra.mxu0 %v3990
        %4071 = vmatprep.subr.mxu0 0.0
        %4072 = vmatpush1.msra.mxu0 %v3991
        %4073 = vmatprep.subr.mxu0 0.0
        %4074 = vmatpush1.msra.mxu0 %v3992
        %4075 = vmatprep.subr.mxu0 0.0
        %4076 = vmatpush1.msra.mxu0 %v3993
        %4077 = vmatprep.subr.mxu0 0.0
        %4078 = vmatpush1.msra.mxu0 %v3994
        %4079 = vmatprep.subr.mxu0 0.0
        %4080 = vmatpush1.msra.mxu0 %v3995
        %4081 = vmatprep.subr.mxu0 0.0
        %4082 = vmatpush1.msra.mxu0 %v3996
        %4083 = vmatprep.subr.mxu0 0.0
        %4084 = vmatpush1.msra.mxu0 %v3997
        %4085 = vmatprep.subr.mxu0 0.0
        %4086 = vmatpush1.msra.mxu0 %v3998
        %4087 = vmatprep.mubr.f32.mxu0 %v3883
        %4088 = vmatmul.mubr.f32.gmra.mrb[0].mxu0 %v3808
        %v4089 = vpop.f32.mrb[0].mxu0
        %v4090 = vadd.f32 %v4021, %v4089
        %v4091 = vpop.f32.mrb[0].mxu0
        %4092 = vmatprep.mubr.f32.mxu0 %v3888
        %4093 = vmatmul.mubr.f32.gmra.mrb[0].mxu0 %v3813
        %v4094 = vpop.f32.mrb[0].mxu0
        %v4095 = vadd.f32 %v4021, %v4094
        %v4096 = vpop.f32.mrb[0].mxu0
        %4097 = vdwg.mxu0
        %4098 = vmatprep.subr.mxu0 0.0
        %4099 = vmatpush1.msra.mxu0 %v3999
        %4100 = vmatprep.subr.mxu0 0.0
        %4101 = vmatpush1.msra.mxu0 %v4000
        %4102 = vmatprep.subr.mxu0 0.0
        %4103 = vmatpush1.msra.mxu0 %v4001
        %4104 = vmatprep.subr.mxu0 0.0
        %4105 = vmatpush1.msra.mxu0 %v4002
        %4106 = vmatprep.subr.mxu0 0.0
        %4107 = vmatpush1.msra.mxu0 %v4003
        %4108 = vmatprep.subr.mxu0 0.0
        %4109 = vmatpush1.msra.mxu0 %v4004
        %4110 = vmatprep.subr.mxu0 0.0
        %4111 = vmatpush1.msra.mxu0 %v4005
        %4112 = vmatprep.subr.mxu0 0.0
        %4113 = vmatpush1.msra.mxu0 %v4006
        %4114 = vmatprep.subr.mxu0 0.0
        %4115 = vmatpush1.msra.mxu0 %v4007
        %4116 = vmatprep.subr.mxu0 0.0
        %4117 = vmatpush1.msra.mxu0 %v4008
        %4118 = vmatprep.subr.mxu0 0.0
        %4119 = vmatpush1.msra.mxu0 %v4009
        %4120 = vmatprep.subr.mxu0 0.0
        %4121 = vmatpush1.msra.mxu0 %v4010
        %4122 = vmatprep.subr.mxu0 0.0
        %4123 = vmatpush1.msra.mxu0 %v4011
        %4124 = vmatprep.subr.mxu0 0.0
        %4125 = vmatpush1.msra.mxu0 %v4012
        %4126 = vmatprep.subr.mxu0 0.0
        %4127 = vmatpush1.msra.mxu0 %v4013
        %4128 = vmatprep.subr.mxu0 0.0
        %4129 = vmatpush1.msra.mxu0 %v4014
        %4130 = vmatprep.subr.mxu0 0.0
        %4131 = vmatpush1.msra.mxu0 0.0
        %4132 = vmatprep.subr.mxu0 0.0
        %4133 = vmatpush1.msra.mxu0 0.0
        %4134 = vmatprep.subr.mxu0 0.0
        %4135 = vmatpush1.msra.mxu0 0.0
        %4136 = vmatprep.subr.mxu0 0.0
        %4137 = vmatpush1.msra.mxu0 0.0
        %4138 = vmatprep.subr.mxu0 0.0
        %4139 = vmatpush1.msra.mxu0 0.0
        %4140 = vmatprep.subr.mxu0 0.0
        %4141 = vmatpush1.msra.mxu0 0.0
        %4142 = vmatprep.subr.mxu0 0.0
        %4143 = vmatpush1.msra.mxu0 0.0
        %4144 = vmatprep.subr.mxu0 0.0
        %4145 = vmatpush1.msra.mxu0 0.0
        %4146 = vmatprep.subr.mxu0 0.0
        %4147 = vmatpush1.msra.mxu0 0.0
        %4148 = vmatprep.subr.mxu0 0.0
        %4149 = vmatpush1.msra.mxu0 0.0
        %4150 = vmatprep.subr.mxu0 0.0
        %4151 = vmatpush1.msra.mxu0 0.0
        %4152 = vmatprep.subr.mxu0 0.0
        %4153 = vmatpush1.msra.mxu0 0.0
        %4154 = vmatprep.subr.mxu0 0.0
        %4155 = vmatpush1.msra.mxu0 0.0
        %4156 = vmatprep.subr.mxu0 0.0
        %4157 = vmatpush1.msra.mxu0 0.0
        %4158 = vmatprep.subr.mxu0 0.0
        %4159 = vmatpush1.msra.mxu0 0.0
        %4160 = vmatprep.subr.mxu0 0.0
        %4161 = vmatpush1.msra.mxu0 0.0
        %4162 = vmatprep.mubr.f32.mxu0 0.0
        %4163 = vmatmul.mubr.f32.gmra.mrb[0].mxu0 %v3958
        %v4164 = vpop.f32.mrb[0].mxu0
        %v4165 = vadd.f32 %v4090, %v4164
        %v4166 = vpop.f32.mrb[0].mxu0
        %4167 = vmatprep.mubr.f32.mxu0 0.0
        %4168 = vmatmul.mubr.f32.gmra.mrb[0].mxu0 %v3963
        %v4169 = vpop.f32.mrb[0].mxu0
        %v4170 = vadd.f32 %v4095, %v4169
        %v4171 = vpop.f32.mrb[0].mxu0
        %4172 = vdwg.mxu0
        %v4173 = vmax.f32 %v4165, 0.0
        %v4174 = vmax.f32 %v4170, 0.0
        %4175 = vmatprep.subr.mxu0 0.0
        %4176 = vmatpush1.msra.mxu0 %v4173
        %4177 = vmatprep.subr.mxu0 0.0
        %4178 = vmatpush1.msra.mxu0 %v4174
        %4179 = vmatprep.subr.mxu0 0.0
        %4180 = vmatpush1.msra.mxu0 0.0
        %4181 = vmatprep.subr.mxu0 0.0
        %4182 = vmatpush1.msra.mxu0 0.0
        %4183 = vmatprep.subr.mxu0 0.0
        %4184 = vmatpush1.msra.mxu0 0.0
        %4185 = vmatprep.subr.mxu0 0.0
        %4186 = vmatpush1.msra.mxu0 0.0
        %4187 = vmatprep.subr.mxu0 0.0
        %4188 = vmatpush1.msra.mxu0 0.0
        %4189 = vmatprep.subr.mxu0 0.0
        %4190 = vmatpush1.msra.mxu0 0.0
        %4191 = vmatprep.subr.mxu0 0.0
        %4192 = vmatpush1.msra.mxu0 0.0
        %4193 = vmatprep.subr.mxu0 0.0
        %4194 = vmatpush1.msra.mxu0 0.0
        %4195 = vmatprep.subr.mxu0 0.0
        %4196 = vmatpush1.msra.mxu0 0.0
        %4197 = vmatprep.subr.mxu0 0.0
        %4198 = vmatpush1.msra.mxu0 0.0
        %4199 = vmatprep.subr.mxu0 0.0
        %4200 = vmatpush1.msra.mxu0 0.0
        %4201 = vmatprep.subr.mxu0 0.0
        %4202 = vmatpush1.msra.mxu0 0.0
        %4203 = vmatprep.subr.mxu0 0.0
        %4204 = vmatpush1.msra.mxu0 0.0
        %4205 = vmatprep.subr.mxu0 0.0
        %4206 = vmatpush1.msra.mxu0 0.0
        %4207 = vmatprep.subr.mxu0 0.0
        %4208 = vmatpush1.msra.mxu0 0.0
        %4209 = vmatprep.subr.mxu0 0.0
        %4210 = vmatpush1.msra.mxu0 0.0
        %4211 = vmatprep.subr.mxu0 0.0
        %4212 = vmatpush1.msra.mxu0 0.0
        %4213 = vmatprep.subr.mxu0 0.0
        %4214 = vmatpush1.msra.mxu0 0.0
        %4215 = vmatprep.subr.mxu0 0.0
        %4216 = vmatpush1.msra.mxu0 0.0
        %4217 = vmatprep.subr.mxu0 0.0
        %4218 = vmatpush1.msra.mxu0 0.0
        %4219 = vmatprep.subr.mxu0 0.0
        %4220 = vmatpush1.msra.mxu0 0.0
        %4221 = vmatprep.subr.mxu0 0.0
        %4222 = vmatpush1.msra.mxu0 0.0
        %4223 = vmatprep.subr.mxu0 0.0
        %4224 = vmatpush1.msra.mxu0 0.0
        %4225 = vmatprep.subr.mxu0 0.0
        %4226 = vmatpush1.msra.mxu0 0.0
        %4227 = vmatprep.subr.mxu0 0.0
        %4228 = vmatpush1.msra.mxu0 0.0
        %4229 = vmatprep.subr.mxu0 0.0
        %4230 = vmatpush1.msra.mxu0 0.0
        %4231 = vmatprep.subr.mxu0 0.0
        %4232 = vmatpush1.msra.mxu0 0.0
        %4233 = vmatprep.subr.mxu0 0.0
        %4234 = vmatpush1.msra.mxu0 0.0
        %4235 = vmatprep.subr.mxu0 0.0
        %4236 = vmatpush1.msra.mxu0 0.0
        %4237 = vmatprep.subr.mxu0 0.0
        %4238 = vmatpush1.msra.mxu0 0.0
        %4239 = vmatprep.mubr.f32.mxu0 0.0
        %4240 = vmatmul.mubr.f32.gmra.mrb[0].mxu0 %v248
        %v4241 = vpop.f32.mrb[0].mxu0
        %v4242 = vadd.f32 0.0, %v4241
        %v4243 = vpop.f32.mrb[0].mxu0
        %4244 = vmatprep.mubr.f32.mxu0 0.0
        %4245 = vmatmul.mubr.f32.gmra.mrb[0].mxu0 %v251
        %v4246 = vpop.f32.mrb[0].mxu0
        %v4247 = vadd.f32 0.0, %v4246
        %v4248 = vpop.f32.mrb[0].mxu0
        %4249 = vdwg.mxu0
        %4250 = vmatprep.subr.mxu0 0.0
        %4251 = vmatpush1.msra.mxu0 %v4173
        %4252 = vmatprep.subr.mxu0 0.0
        %4253 = vmatpush1.msra.mxu0 %v4174
        %4254 = vmatprep.subr.mxu0 0.0
        %4255 = vmatpush1.msra.mxu0 0.0
        %4256 = vmatprep.subr.mxu0 0.0
        %4257 = vmatpush1.msra.mxu0 0.0
        %4258 = vmatprep.subr.mxu0 0.0
        %4259 = vmatpush1.msra.mxu0 0.0
        %4260 = vmatprep.subr.mxu0 0.0
        %4261 = vmatpush1.msra.mxu0 0.0
        %4262 = vmatprep.subr.mxu0 0.0
        %4263 = vmatpush1.msra.mxu0 0.0
        %4264 = vmatprep.subr.mxu0 0.0
        %4265 = vmatpush1.msra.mxu0 0.0
        %4266 = vmatprep.subr.mxu0 0.0
        %4267 = vmatpush1.msra.mxu0 0.0
        %4268 = vmatprep.subr.mxu0 0.0
        %4269 = vmatpush1.msra.mxu0 0.0
        %4270 = vmatprep.subr.mxu0 0.0
        %4271 = vmatpush1.msra.mxu0 0.0
        %4272 = vmatprep.subr.mxu0 0.0
        %4273 = vmatpush1.msra.mxu0 0.0
        %4274 = vmatprep.subr.mxu0 0.0
        %4275 = vmatpush1.msra.mxu0 0.0
        %4276 = vmatprep.subr.mxu0 0.0
        %4277 = vmatpush1.msra.mxu0 0.0
        %4278 = vmatprep.subr.mxu0 0.0
        %4279 = vmatpush1.msra.mxu0 0.0
        %4280 = vmatprep.subr.mxu0 0.0
        %4281 = vmatpush1.msra.mxu0 0.0
        %4282 = vmatprep.subr.mxu0 0.0
        %4283 = vmatpush1.msra.mxu0 0.0
        %4284 = vmatprep.subr.mxu0 0.0
        %4285 = vmatpush1.msra.mxu0 0.0
        %4286 = vmatprep.subr.mxu0 0.0
        %4287 = vmatpush1.msra.mxu0 0.0
        %4288 = vmatprep.subr.mxu0 0.0
        %4289 = vmatpush1.msra.mxu0 0.0
        %4290 = vmatprep.subr.mxu0 0.0
        %4291 = vmatpush1.msra.mxu0 0.0
        %4292 = vmatprep.subr.mxu0 0.0
        %4293 = vmatpush1.msra.mxu0 0.0
        %4294 = vmatprep.subr.mxu0 0.0
        %4295 = vmatpush1.msra.mxu0 0.0
        %4296 = vmatprep.subr.mxu0 0.0
        %4297 = vmatpush1.msra.mxu0 0.0
        %4298 = vmatprep.subr.mxu0 0.0
        %4299 = vmatpush1.msra.mxu0 0.0
        %4300 = vmatprep.subr.mxu0 0.0
        %4301 = vmatpush1.msra.mxu0 0.0
        %4302 = vmatprep.subr.mxu0 0.0
        %4303 = vmatpush1.msra.mxu0 0.0
        %4304 = vmatprep.subr.mxu0 0.0
        %4305 = vmatpush1.msra.mxu0 0.0
        %4306 = vmatprep.subr.mxu0 0.0
        %4307 = vmatpush1.msra.mxu0 0.0
        %4308 = vmatprep.subr.mxu0 0.0
        %4309 = vmatpush1.msra.mxu0 0.0
        %4310 = vmatprep.subr.mxu0 0.0
        %4311 = vmatpush1.msra.mxu0 0.0
        %4312 = vmatprep.subr.mxu0 0.0
        %4313 = vmatpush1.msra.mxu0 0.0
        %4314 = vmatprep.mubr.f32.mxu0 0.0
        %4315 = vmatmul.mubr.f32.gmra.mrb[0].mxu0 %v332
        %v4316 = vpop.f32.mrb[0].mxu0
        %v4317 = vadd.f32 0.0, %v4316
        %v4318 = vpop.f32.mrb[0].mxu0
        %4319 = vmatprep.mubr.f32.mxu0 0.0
        %4320 = vmatmul.mubr.f32.gmra.mrb[0].mxu0 %v335
        %v4321 = vpop.f32.mrb[0].mxu0
        %v4322 = vadd.f32 0.0, %v4321
        %v4323 = vpop.f32.mrb[0].mxu0
        %4324 = vdwg.mxu0
        %4325 = vmatprep.subr.mxu0 0.0
        %4326 = vmatpush1.msra.mxu0 %v4173
        %4327 = vmatprep.subr.mxu0 0.0
        %4328 = vmatpush1.msra.mxu0 %v4174
        %4329 = vmatprep.subr.mxu0 0.0
        %4330 = vmatpush1.msra.mxu0 0.0
        %4331 = vmatprep.subr.mxu0 0.0
        %4332 = vmatpush1.msra.mxu0 0.0
        %4333 = vmatprep.subr.mxu0 0.0
        %4334 = vmatpush1.msra.mxu0 0.0
        %4335 = vmatprep.subr.mxu0 0.0
        %4336 = vmatpush1.msra.mxu0 0.0
        %4337 = vmatprep.subr.mxu0 0.0
        %4338 = vmatpush1.msra.mxu0 0.0
        %4339 = vmatprep.subr.mxu0 0.0
        %4340 = vmatpush1.msra.mxu0 0.0
        %4341 = vmatprep.subr.mxu0 0.0
        %4342 = vmatpush1.msra.mxu0 0.0
        %4343 = vmatprep.subr.mxu0 0.0
        %4344 = vmatpush1.msra.mxu0 0.0
        %4345 = vmatprep.subr.mxu0 0.0
        %4346 = vmatpush1.msra.mxu0 0.0
        %4347 = vmatprep.subr.mxu0 0.0
        %4348 = vmatpush1.msra.mxu0 0.0
        %4349 = vmatprep.subr.mxu0 0.0
        %4350 = vmatpush1.msra.mxu0 0.0
        %4351 = vmatprep.subr.mxu0 0.0
        %4352 = vmatpush1.msra.mxu0 0.0
        %4353 = vmatprep.subr.mxu0 0.0
        %4354 = vmatpush1.msra.mxu0 0.0
        %4355 = vmatprep.subr.mxu0 0.0
        %4356 = vmatpush1.msra.mxu0 0.0
        %4357 = vmatprep.subr.mxu0 0.0
        %4358 = vmatpush1.msra.mxu0 0.0
        %4359 = vmatprep.subr.mxu0 0.0
        %4360 = vmatpush1.msra.mxu0 0.0
        %4361 = vmatprep.subr.mxu0 0.0
        %4362 = vmatpush1.msra.mxu0 0.0
        %4363 = vmatprep.subr.mxu0 0.0
        %4364 = vmatpush1.msra.mxu0 0.0
        %4365 = vmatprep.subr.mxu0 0.0
        %4366 = vmatpush1.msra.mxu0 0.0
        %4367 = vmatprep.subr.mxu0 0.0
        %4368 = vmatpush1.msra.mxu0 0.0
        %4369 = vmatprep.subr.mxu0 0.0
        %4370 = vmatpush1.msra.mxu0 0.0
        %4371 = vmatprep.subr.mxu0 0.0
        %4372 = vmatpush1.msra.mxu0 0.0
        %4373 = vmatprep.subr.mxu0 0.0
        %4374 = vmatpush1.msra.mxu0 0.0
        %4375 = vmatprep.subr.mxu0 0.0
        %4376 = vmatpush1.msra.mxu0 0.0
        %4377 = vmatprep.subr.mxu0 0.0
        %4378 = vmatpush1.msra.mxu0 0.0
        %4379 = vmatprep.subr.mxu0 0.0
        %4380 = vmatpush1.msra.mxu0 0.0
        %4381 = vmatprep.subr.mxu0 0.0
        %4382 = vmatpush1.msra.mxu0 0.0
        %4383 = vmatprep.subr.mxu0 0.0
        %4384 = vmatpush1.msra.mxu0 0.0
        %4385 = vmatprep.subr.mxu0 0.0
        %4386 = vmatpush1.msra.mxu0 0.0
        %4387 = vmatprep.subr.mxu0 0.0
        %4388 = vmatpush1.msra.mxu0 0.0
        %4389 = vmatprep.mubr.f32.mxu0 0.0
        %4390 = vmatmul.mubr.f32.gmra.mrb[0].mxu0 %v416
        %v4391 = vpop.f32.mrb[0].mxu0
        %v4392 = vadd.f32 0.0, %v4391
        %v4393 = vpop.f32.mrb[0].mxu0
        %4394 = vmatprep.mubr.f32.mxu0 0.0
        %4395 = vmatmul.mubr.f32.gmra.mrb[0].mxu0 %v419
        %v4396 = vpop.f32.mrb[0].mxu0
        %v4397 = vadd.f32 0.0, %v4396
        %v4398 = vpop.f32.mrb[0].mxu0
        %4399 = vdwg.mxu0
        %s4400 = scalar_lea.vmem [#allocation4], 3456
        %v4401 = vld [vmem:[%s4400] sm:$0xff]
        %v4402 = vld [vmem:[%s4400 + $0x8] sm:$0xff]
        %v4403 = vld [vmem:[%s4400 + $0x10] sm:$0xff]
        %v4404 = vld [vmem:[%s4400 + $0x18] sm:$0xff]
        %v4405 = vld [vmem:[%s4400 + $0x20] sm:$0xff]
        %v4406 = vld [vmem:[%s4400 + $0x28] sm:$0xff]
        %v4407 = vld [vmem:[%s4400 + $0x30] sm:$0xff]
        %v4408 = vld [vmem:[%s4400 + $0x38] sm:$0xff]
        %v4409 = vld [vmem:[%s4400 + $0x40] sm:$0xff]
        %v4410 = vld [vmem:[%s4400 + $0x48] sm:$0xff]
        %v4411 = vld [vmem:[%s4400 + $0x50] sm:$0xff]
        %v4412 = vld [vmem:[%s4400 + $0x58] sm:$0xff]
        %v4413 = vld [vmem:[%s4400 + $0x60] sm:$0xff]
        %v4414 = vld [vmem:[%s4400 + $0x68] sm:$0xff]
        %v4415 = vld [vmem:[%s4400 + $0x70] sm:$0xff]
        %v4416 = vld [vmem:[%s4400 + $0x78] sm:$0xff]
        %v4417 = vld [vmem:[%s4400 + $0x80] sm:$0xff]
        %v4418 = vld [vmem:[%s4400 + $0x88] sm:$0xff]
        %v4419 = vld [vmem:[%s4400 + $0x90] sm:$0xff]
        %v4420 = vld [vmem:[%s4400 + $0x98] sm:$0xff]
        %v4421 = vld [vmem:[%s4400 + $0xa0] sm:$0xff]
        %v4422 = vld [vmem:[%s4400 + $0xa8] sm:$0xff]
        %v4423 = vld [vmem:[%s4400 + $0xb0] sm:$0xff]
        %v4424 = vld [vmem:[%s4400 + $0xb8] sm:$0xff]
        %v4425 = vld [vmem:[%s4400 + $0xc0] sm:$0xff]
        %v4426 = vld [vmem:[%s4400 + $0xc8] sm:$0xff]
        %v4427 = vld [vmem:[%s4400 + $0xd0] sm:$0xff]
        %v4428 = vld [vmem:[%s4400 + $0xd8] sm:$0xff]
        %v4429 = vld [vmem:[%s4400 + $0xe0] sm:$0xff]
        %v4430 = vld [vmem:[%s4400 + $0xe8] sm:$0xff]
        %v4431 = vld [vmem:[%s4400 + $0xf0] sm:$0xff]
        %v4432 = vld [vmem:[%s4400 + $0xf8] sm:$0xff]
        %v4433 = vld [vmem:[%s4400 + $0x100] sm:$0xff]
        %v4434 = vld [vmem:[%s4400 + $0x108] sm:$0xff]
        %v4435 = vld [vmem:[%s4400 + $0x110] sm:$0xff]
        %v4436 = vld [vmem:[%s4400 + $0x118] sm:$0xff]
        %v4437 = vld [vmem:[%s4400 + $0x120] sm:$0xff]
        %v4438 = vld [vmem:[%s4400 + $0x128] sm:$0xff]
        %v4439 = vld [vmem:[%s4400 + $0x130] sm:$0xff]
        %v4440 = vld [vmem:[%s4400 + $0x138] sm:$0xff]
        %v4441 = vld [vmem:[%s4400 + $0x140] sm:$0xff]
        %v4442 = vld [vmem:[%s4400 + $0x148] sm:$0xff]
        %v4443 = vld [vmem:[%s4400 + $0x150] sm:$0xff]
        %v4444 = vld [vmem:[%s4400 + $0x158] sm:$0xff]
        %v4445 = vld [vmem:[%s4400 + $0x160] sm:$0xff]
        %v4446 = vld [vmem:[%s4400 + $0x168] sm:$0xff]
        %v4447 = vld [vmem:[%s4400 + $0x170] sm:$0xff]
        %v4448 = vld [vmem:[%s4400 + $0x178] sm:$0xff]
        %s4449 = scalar_lea.vmem [#allocation6], 9
        %v4450 = vld [vmem:[%s4449] sm:$0x1]
        %v4452 = vlaneseq
        %v4453 = vshrl.u32 %v4452, 7
        %v4454 = vsub.s32 0, %v4453
        %v4455 = vrot.slane %v4450, %v4454
        %4457 = vmatprep.subr.mxu0 0.0
        %4458 = vmatpush1.msra.mxu0 %v4401
        %4459 = vmatprep.subr.mxu0 0.0
        %4460 = vmatpush1.msra.mxu0 %v4402
        %4461 = vmatprep.subr.mxu0 0.0
        %4462 = vmatpush1.msra.mxu0 %v4403
        %4463 = vmatprep.subr.mxu0 0.0
        %4464 = vmatpush1.msra.mxu0 %v4404
        %4465 = vmatprep.subr.mxu0 0.0
        %4466 = vmatpush1.msra.mxu0 %v4405
        %4467 = vmatprep.subr.mxu0 0.0
        %4468 = vmatpush1.msra.mxu0 %v4406
        %4469 = vmatprep.subr.mxu0 0.0
        %4470 = vmatpush1.msra.mxu0 %v4407
        %4471 = vmatprep.subr.mxu0 0.0
        %4472 = vmatpush1.msra.mxu0 %v4408
        %4473 = vmatprep.subr.mxu0 0.0
        %4474 = vmatpush1.msra.mxu0 %v4409
        %4475 = vmatprep.subr.mxu0 0.0
        %4476 = vmatpush1.msra.mxu0 %v4410
        %4477 = vmatprep.subr.mxu0 0.0
        %4478 = vmatpush1.msra.mxu0 %v4411
        %4479 = vmatprep.subr.mxu0 0.0
        %4480 = vmatpush1.msra.mxu0 %v4412
        %4481 = vmatprep.subr.mxu0 0.0
        %4482 = vmatpush1.msra.mxu0 %v4413
        %4483 = vmatprep.subr.mxu0 0.0
        %4484 = vmatpush1.msra.mxu0 %v4414
        %4485 = vmatprep.subr.mxu0 0.0
        %4486 = vmatpush1.msra.mxu0 %v4415
        %4487 = vmatprep.subr.mxu0 0.0
        %4488 = vmatpush1.msra.mxu0 %v4416
        %4489 = vmatprep.subr.mxu0 0.0
        %4490 = vmatpush1.msra.mxu0 %v4417
        %4491 = vmatprep.subr.mxu0 0.0
        %4492 = vmatpush1.msra.mxu0 %v4418
        %4493 = vmatprep.subr.mxu0 0.0
        %4494 = vmatpush1.msra.mxu0 %v4419
        %4495 = vmatprep.subr.mxu0 0.0
        %4496 = vmatpush1.msra.mxu0 %v4420
        %4497 = vmatprep.subr.mxu0 0.0
        %4498 = vmatpush1.msra.mxu0 %v4421
        %4499 = vmatprep.subr.mxu0 0.0
        %4500 = vmatpush1.msra.mxu0 %v4422
        %4501 = vmatprep.subr.mxu0 0.0
        %4502 = vmatpush1.msra.mxu0 %v4423
        %4503 = vmatprep.subr.mxu0 0.0
        %4504 = vmatpush1.msra.mxu0 %v4424
        %4505 = vmatprep.subr.mxu0 0.0
        %4506 = vmatpush1.msra.mxu0 %v4425
        %4507 = vmatprep.subr.mxu0 0.0
        %4508 = vmatpush1.msra.mxu0 %v4426
        %4509 = vmatprep.subr.mxu0 0.0
        %4510 = vmatpush1.msra.mxu0 %v4427
        %4511 = vmatprep.subr.mxu0 0.0
        %4512 = vmatpush1.msra.mxu0 %v4428
        %4513 = vmatprep.subr.mxu0 0.0
        %4514 = vmatpush1.msra.mxu0 %v4429
        %4515 = vmatprep.subr.mxu0 0.0
        %4516 = vmatpush1.msra.mxu0 %v4430
        %4517 = vmatprep.subr.mxu0 0.0
        %4518 = vmatpush1.msra.mxu0 %v4431
        %4519 = vmatprep.subr.mxu0 0.0
        %4520 = vmatpush1.msra.mxu0 %v4432
        %4521 = vmatprep.mubr.f32.mxu0 %v4317
        %4522 = vmatmul.mubr.f32.gmra.mrb[0].mxu0 %v4242
        %v4523 = vpop.f32.mrb[0].mxu0
        %v4524 = vadd.f32 %v4455, %v4523
        %v4525 = vpop.f32.mrb[0].mxu0
        %4526 = vmatprep.mubr.f32.mxu0 %v4322
        %4527 = vmatmul.mubr.f32.gmra.mrb[0].mxu0 %v4247
        %v4528 = vpop.f32.mrb[0].mxu0
        %v4529 = vadd.f32 %v4455, %v4528
        %v4530 = vpop.f32.mrb[0].mxu0
        %4531 = vdwg.mxu0
        %4532 = vmatprep.subr.mxu0 0.0
        %4533 = vmatpush1.msra.mxu0 %v4433
        %4534 = vmatprep.subr.mxu0 0.0
        %4535 = vmatpush1.msra.mxu0 %v4434
        %4536 = vmatprep.subr.mxu0 0.0
        %4537 = vmatpush1.msra.mxu0 %v4435
        %4538 = vmatprep.subr.mxu0 0.0
        %4539 = vmatpush1.msra.mxu0 %v4436
        %4540 = vmatprep.subr.mxu0 0.0
        %4541 = vmatpush1.msra.mxu0 %v4437
        %4542 = vmatprep.subr.mxu0 0.0
        %4543 = vmatpush1.msra.mxu0 %v4438
        %4544 = vmatprep.subr.mxu0 0.0
        %4545 = vmatpush1.msra.mxu0 %v4439
        %4546 = vmatprep.subr.mxu0 0.0
        %4547 = vmatpush1.msra.mxu0 %v4440
        %4548 = vmatprep.subr.mxu0 0.0
        %4549 = vmatpush1.msra.mxu0 %v4441
        %4550 = vmatprep.subr.mxu0 0.0
        %4551 = vmatpush1.msra.mxu0 %v4442
        %4552 = vmatprep.subr.mxu0 0.0
        %4553 = vmatpush1.msra.mxu0 %v4443
        %4554 = vmatprep.subr.mxu0 0.0
        %4555 = vmatpush1.msra.mxu0 %v4444
        %4556 = vmatprep.subr.mxu0 0.0
        %4557 = vmatpush1.msra.mxu0 %v4445
        %4558 = vmatprep.subr.mxu0 0.0
        %4559 = vmatpush1.msra.mxu0 %v4446
        %4560 = vmatprep.subr.mxu0 0.0
        %4561 = vmatpush1.msra.mxu0 %v4447
        %4562 = vmatprep.subr.mxu0 0.0
        %4563 = vmatpush1.msra.mxu0 %v4448
        %4564 = vmatprep.subr.mxu0 0.0
        %4565 = vmatpush1.msra.mxu0 0.0
        %4566 = vmatprep.subr.mxu0 0.0
        %4567 = vmatpush1.msra.mxu0 0.0
        %4568 = vmatprep.subr.mxu0 0.0
        %4569 = vmatpush1.msra.mxu0 0.0
        %4570 = vmatprep.subr.mxu0 0.0
        %4571 = vmatpush1.msra.mxu0 0.0
        %4572 = vmatprep.subr.mxu0 0.0
        %4573 = vmatpush1.msra.mxu0 0.0
        %4574 = vmatprep.subr.mxu0 0.0
        %4575 = vmatpush1.msra.mxu0 0.0
        %4576 = vmatprep.subr.mxu0 0.0
        %4577 = vmatpush1.msra.mxu0 0.0
        %4578 = vmatprep.subr.mxu0 0.0
        %4579 = vmatpush1.msra.mxu0 0.0
        %4580 = vmatprep.subr.mxu0 0.0
        %4581 = vmatpush1.msra.mxu0 0.0
        %4582 = vmatprep.subr.mxu0 0.0
        %4583 = vmatpush1.msra.mxu0 0.0
        %4584 = vmatprep.subr.mxu0 0.0
        %4585 = vmatpush1.msra.mxu0 0.0
        %4586 = vmatprep.subr.mxu0 0.0
        %4587 = vmatpush1.msra.mxu0 0.0
        %4588 = vmatprep.subr.mxu0 0.0
        %4589 = vmatpush1.msra.mxu0 0.0
        %4590 = vmatprep.subr.mxu0 0.0
        %4591 = vmatpush1.msra.mxu0 0.0
        %4592 = vmatprep.subr.mxu0 0.0
        %4593 = vmatpush1.msra.mxu0 0.0
        %4594 = vmatprep.subr.mxu0 0.0
        %4595 = vmatpush1.msra.mxu0 0.0
        %4596 = vmatprep.mubr.f32.mxu0 0.0
        %4597 = vmatmul.mubr.f32.gmra.mrb[0].mxu0 %v4392
        %v4598 = vpop.f32.mrb[0].mxu0
        %v4599 = vadd.f32 %v4524, %v4598
        %v4600 = vpop.f32.mrb[0].mxu0
        %4601 = vmatprep.mubr.f32.mxu0 0.0
        %4602 = vmatmul.mubr.f32.gmra.mrb[0].mxu0 %v4397
        %v4603 = vpop.f32.mrb[0].mxu0
        %v4604 = vadd.f32 %v4529, %v4603
        %v4605 = vpop.f32.mrb[0].mxu0
        %4606 = vdwg.mxu0
        %4607 = vst [vmem:[%s241] sm:$0xff] %v4599
        %4608 = vst [vmem:[%s241 + $0x8] sm:$0xff] %v4604
        %p4609 = scmp.lt.s32.totalorder %s17, 1
        %s4610 = scalar_select %p4609, %s17, 1
        %s4611 = smul.addr %s4610, 2
        %s4612 = smul.addr %s4611, 8
        %s4613 = scalar_lea.vmem %s4, %s4612
        // Predicated region
        $region49: #{_forward_impl.1} parent=35 // pred_check
          %p4614 = pneg %p124
        $region50: #{_forward_impl.1} parent=35 // pred_check_branch
          %4616 = sbr.rel (%p4614) target = $region52
        $region51: #{_forward_impl.1} parent=35 // pred_region
          _
        $region52: #{_forward_impl.1} parent=35 // pred_fallthru
          _
      $region36: #{_forward_impl.1} parent=5 // pred_fallthru
        _
      %p4617 = scmp.le.s32.totalorder 2, %s12
      // Predicated region
      $region53: #{_forward_impl.1} parent=5 // pred_check
        %p4618 = pneg %p4617
      $region54: #{_forward_impl.1} parent=5 // pred_check_branch
        %4620 = sbr.rel (%p4618) target = $region56
      $region55: #{_forward_impl.1} parent=5 // pred_region
        %s4621 = ssub.s32 %s12, 2
        // Predicated region
        $region57: #{_forward_impl.1} parent=55 // pred_check
          %p4622 = pneg %p130
        $region58: #{_forward_impl.1} parent=55 // pred_check_branch
          %4624 = sbr.rel (%p4622) target = $region60
        $region59: #{_forward_impl.1} parent=55 // pred_region
          %p4625 = scmp.lt.s32.totalorder %s18, 1
          %s4626 = scalar_select %p4625, %s18, 1
          %s4627 = smul.addr %s4626, 2
          %s4628 = smul.addr %s4627, 8
          %s4629 = scalar_lea.vmem %s4, %s4628
        $region60: #{_forward_impl.1} parent=55 // pred_fallthru
          _
      $region56: #{_forward_impl.1} parent=5 // pred_fallthru
        _
    $region6: #{_forward_impl.1} parent=1 // loop_footer
      %s16 = sadd.s32 1, %s12
    $region7: #{_forward_impl.1} parent=1 // loop_footer_branch
      %11 = sbr.rel target = $region3
    $region8: #{_forward_impl.1} parent=1 // loop_exit
      _
    %4630 = vsyncpa [#allocation3], 1
    %s4631 = scalar_lea.sflag [#allocation3], 1
    %4632 = vsyncpa %s4631, 1
    %4633 = vsyncpa [#allocation5], 1

</llo_original>
